<compile_context>
chip_gen: v7x
topology: tpu7x:2x2x1
jax: 0.10.0
libtpu: 0.0.40
codegen_flags: <defaults>
</compile_context>

<pallas_src>
import math
import functools

import jax
import jax.numpy as jnp
from jax import lax
from jax.experimental import pallas as pl
from jax.experimental.pallas import tpu as pltpu

LANE = 128     # lane width (last-dim tiling)
SUBLANE = 8    # sublane width (second-to-last-dim tiling)

VMEM_BUDGET = 40 << 20   # target working set for tile selection
VMEM_LIMIT = 56 << 20    # scoped VMEM limit: < v7x 64 MiB, << v5e/v6e 128 MiB

# PyTorch LSTM gate order is [i, f, g, o]; we pack as [i, f, o, g] so the
# three sigmoid gates are one contiguous 3*hp column slab.
GATE_ORDER = (0, 1, 3, 2)


def _round_up(x, m):
    return (x + m - 1) // m * m


# ----------------------------------------------------------------------------
# Kernel: one (T_BLK, B_BLK) slab of the sequence per grid iteration.
# h/c state lives in VMEM scratch and persists across the (sequential,
# innermost) time axis of the grid.
# ----------------------------------------------------------------------------
def _lstm_block_kernel(x_ref, wih_ref, whh_ref, b_ref, y_ref, gx_sc, h_sc, c_sc):
    t_blk, b_blk, dp = x_ref.shape
    hp = h_sc.shape[-1]

    # Zero initial state at the start of each batch-block's sequence.
    # NOTE: the carry relies on the default Pallas grid order — batch (axis 0,
    # "parallel") outer, time (axis 1, "arbitrary") innermost & sequential.
    @pl.when(pl.program_id(1) == 0)
    def _():
        h_sc[...] = jnp.zeros_like(h_sc)
        c_sc[...] = jnp.zeros_like(c_sc)

    # Hoisted input->gate projection for the whole time block, computed in
    # ~8-timestep chunks into VMEM scratch (bounds the live gate slab).
    # bf16 MXU operands, f32 accumulation, bias folded in once per block.
    wih = wih_ref[...]        # (dp, 4*hp) bf16
    bias = b_ref[...]         # (1, 4*hp) f32
    ch = 8 if (t_blk % 8 == 0) else t_blk
    for c0 in range(0, t_blk, ch):
        xc = x_ref[pl.ds(c0, ch), :, :].reshape(ch * b_blk, dp).astype(jnp.bfloat16)
        gxc = jnp.dot(xc, wih, preferred_element_type=jnp.float32) + bias
        gx_sc[pl.ds(c0, ch), :, :] = gxc.reshape(ch, b_blk, 4 * hp)

    whh = whh_ref[...]        # (hp, 4*hp) bf16, resident across the loop

    # Recurrence: partially unrolled fori_loop; per-step work is one small
    # h @ W_hh matmul plus the gate elementwise math.  Gate column order is
    # [i, f, o, g] -> one sigmoid over a contiguous 3*hp slab + one tanh.
    def step(t, carry):
        h = h_sc[...]
        c = c_sc[...]
        gates = gx_sc[t] + jnp.dot(h.astype(jnp.bfloat16), whh,
                                   preferred_element_type=jnp.float32)
        sig = jax.nn.sigmoid(gates[:, :3 * hp])
        i_g = sig[:, 0 * hp:1 * hp]
        f_g = sig[:, 1 * hp:2 * hp]
        o_g = sig[:, 2 * hp:3 * hp]
        g_g = jnp.tanh(gates[:, 3 * hp:4 * hp])
        c = f_g * c + i_g * g_g
        h = o_g * jnp.tanh(c)
        c_sc[...] = c
        h_sc[...] = h
        y_ref[t] = h.astype(y_ref.dtype)
        return carry

    lax.fori_loop(0, t_blk, step, 0, unroll=min(8, t_blk))


def _lstm_layer_pallas(x_tm, wih, whh, bias, *, t_blk, b_blk):
    """One LSTM layer over a padded, time-major input.

    x_tm: (Np, Bp, Dp) f32, time-major, padded (Np % t_blk == 0,
          Bp % b_blk == 0, Dp multiple of 128, padded entries 0).
    wih:  (Dp, 4*Hp) bf16, whh: (Hp, 4*Hp) bf16, bias: (1, 4*Hp) f32
          (gate-block padded, gate order [i, f, o, g]).
    returns y_tm: (Np, Bp, Hp) f32 with padded hidden lanes exactly 0.
    """
    np_, bp, dp = x_tm.shape
    hp4 = wih.shape[1]
    hp = hp4 // 4
    nb = bp // b_blk
    nt = np_ // t_blk

    return pl.pallas_call(
        _lstm_block_kernel,
        out_shape=jax.ShapeDtypeStruct((np_, bp, hp), jnp.float32),
        grid_spec=pltpu.PrefetchScalarGridSpec(
            num_scalar_prefetch=0,
            grid=(nb, nt),
            in_specs=[
                pl.BlockSpec((t_blk, b_blk, dp), lambda b, t: (t, b, 0)),
                pl.BlockSpec((dp, hp4), lambda b, t: (0, 0)),   # resident weight
                pl.BlockSpec((hp, hp4), lambda b, t: (0, 0)),   # resident weight
                pl.BlockSpec((1, hp4), lambda b, t: (0, 0)),    # resident bias
            ],
            out_specs=pl.BlockSpec((t_blk, b_blk, hp), lambda b, t: (t, b, 0)),
            scratch_shapes=[
                pltpu.VMEM((t_blk, b_blk, 4 * hp), jnp.float32),  # gx slab
                pltpu.VMEM((b_blk, hp), jnp.float32),             # h state
                pltpu.VMEM((b_blk, hp), jnp.float32),             # c state
            ],
        ),
        compiler_params=pltpu.CompilerParams(
            # batch blocks are independent (megacore-shardable on v7x); the
            # time axis carries the recurrence and must stay sequential.
            dimension_semantics=("parallel", "arbitrary"),
            vmem_limit_bytes=VMEM_LIMIT),
    )(x_tm, wih, whh, bias)


# ----------------------------------------------------------------------------
# VMEM-budget-driven tile selection.
# ----------------------------------------------------------------------------
def _vmem_estimate(t_blk, b_blk, dp, hp):
    f32, bf16 = 4, 2
    xb = 2 * t_blk * b_blk * dp * f32              # double-buffered input block
    yb = 2 * t_blk * b_blk * hp * f32              # double-buffered output block
    w = 2 * (dp + hp) * 4 * hp * bf16              # double-buffered bf16 weights
    bias = 2 * 4 * hp * f32
    gx = t_blk * b_blk * 4 * hp * f32              # gx scratch
    st = 2 * b_blk * hp * f32                      # h, c scratch
    live = 10 * b_blk * hp * f32                   # per-step values (rough)
    return xb + yb + w + bias + gx + st + live


def _choose_blocks(B, N, dp, hp):
    # TODO(synk): on v6e/v7x with B >= 256 a 256-row batch block fills the
    # 2x256 MXU better; kept at 128 (and nb>=2 when B permits helps v7x).
    b_blk = min(_round_up(B, SUBLANE), 128)
    t_blk = N if N <= 32 else 32
    while _vmem_estimate(t_blk, b_blk, dp, hp) > VMEM_BUDGET and t_blk > 8:
        t_blk = max(8, (t_blk + 1) // 2)
    while _vmem_estimate(t_blk, b_blk, dp, hp) > VMEM_BUDGET and b_blk > SUBLANE:
        b_blk = max(SUBLANE, _round_up(b_blk // 2, SUBLANE))
    return t_blk, b_blk


# ----------------------------------------------------------------------------
# Weight packing (done ONCE per model, outside the forward pass):
# PyTorch (4H, D) weights -> transposed, gate-reordered to [i, f, o, g],
# gate-block padded (D_pad, 4*H_pad) bf16 so every gate occupies its own
# 128-aligned column block; zero-padded columns keep padded lanes exactly 0.
# ----------------------------------------------------------------------------
def _pack_gate_weight(w, d_pad, h_pad):
    h = w.shape[0] // 4
    wt = jnp.transpose(w).astype(jnp.float32)            # (D, 4H)
    d = wt.shape[0]
    out = jnp.zeros((d_pad, 4 * h_pad), jnp.float32)
    for k_dst, k_src in enumerate(GATE_ORDER):
        out = out.at[:d, k_dst * h_pad:k_dst * h_pad + h].set(
            wt[:, k_src * h:(k_src + 1) * h])
    return out.astype(jnp.bfloat16)


def _pack_gate_bias(b, h_pad):
    h = b.shape[0] // 4
    out = jnp.zeros((1, 4 * h_pad), jnp.float32)
    for k_dst, k_src in enumerate(GATE_ORDER):
        out = out.at[0, k_dst * h_pad:k_dst * h_pad + h].set(
            b[k_src * h:(k_src + 1) * h])
    return out


def prepare_lrnn_params(params, in_dim):
    """Pack/pad all layer weights once; returns a jit-friendly pytree."""
    packed = []
    dp = _round_up(in_dim, LANE)
    for p in params:
        h = p["w_hh"].shape[1]
        hp = _round_up(h, LANE)
        packed.append(dict(
            wih=_pack_gate_weight(p["w_ih"], dp, hp),
            whh=_pack_gate_weight(p["w_hh"], hp, hp),
            bias=_pack_gate_bias(p["b_ih"] + p["b_hh"], hp),
        ))
        dp = hp
    return packed


# ----------------------------------------------------------------------------
# LRNN: recursive stack of single-layer LSTMs (matches the PyTorch module with
# num_rnn_layers=1 per level).  Transpose/pad once for the whole stack.
# ----------------------------------------------------------------------------
def lrnn_forward(packed, x, *, N, in_dim, out_dim):
    x = x.reshape(-1, N, in_dim).astype(jnp.float32)      # x.view(-1, N, in_dim)
    B = x.shape[0]

    dp_max = max(p["wih"].shape[0] for p in packed)
    hp_max = max(p["wih"].shape[1] // 4 for p in packed)
    t_blk, b_blk = _choose_blocks(B, N, max(dp_max, hp_max), hp_max)

    bp = _round_up(B, b_blk)
    np_ = _round_up(N, t_blk)
    dp0 = packed[0]["wih"].shape[0]

    # (B, N, D) -> (N, B, D), pad once for the whole layer stack.
    x_tm = jnp.transpose(x, (1, 0, 2))
    x_tm = jnp.pad(x_tm, ((0, np_ - N), (0, bp - B), (0, dp0 - in_dim)))

    y = x_tm
    for p in packed:
        y = _lstm_layer_pallas(y, p["wih"], p["whh"], p["bias"],
                               t_blk=t_blk, b_blk=b_blk)

    y = y[:N, :B, :out_dim]
    return jnp.transpose(y, (1, 0, 2))                    # back to (B, N, H)


def init_lrnn_params(key, dim):
    """Deterministic PyTorch-style init: U(-1/sqrt(H), 1/sqrt(H))."""
    layers = []
    for li in range(len(dim) - 1):
        d_in, h = dim[li], dim[li + 1]
        k = 1.0 / math.sqrt(h)
        key, k1, k2, k3, k4 = jax.random.split(key, 5)
        layers.append(dict(
            w_ih=jax.random.uniform(k1, (4 * h, d_in), jnp.float32, -k, k),
            w_hh=jax.random.uniform(k2, (4 * h, h), jnp.float32, -k, k),
            b_ih=jax.random.uniform(k3, (4 * h,), jnp.float32, -k, k),
            b_hh=jax.random.uniform(k4, (4 * h,), jnp.float32, -k, k),
        ))
    return layers


# ----------------------------------------------------------------------------
# Pure-JAX reference (lax.scan) for the sanity check.
# ----------------------------------------------------------------------------
def _lstm_ref(x, w_ih, w_hh, b_ih, b_hh):
    B, N, _ = x.shape
    H = w_hh.shape[1]

    def step(carry, x_t):
        h, c = carry
        gates = x_t @ w_ih.T + h @ w_hh.T + b_ih + b_hh
        i = jax.nn.sigmoid(gates[:, 0 * H:1 * H])
        f = jax.nn.sigmoid(gates[:, 1 * H:2 * H])
        g = jnp.tanh(gates[:, 2 * H:3 * H])
        o = jax.nn.sigmoid(gates[:, 3 * H:4 * H])
        c = f * c + i * g
        h = o * jnp.tanh(c)
        return (h, c), h

    h0 = jnp.zeros((B, H), jnp.float32)
    c0 = jnp.zeros((B, H), jnp.float32)
    _, ys = lax.scan(step, (h0, c0), jnp.transpose(x, (1, 0, 2)))
    return jnp.transpose(ys, (1, 0, 2))


def lrnn_ref(params, x, N, in_dim):
    y = x.reshape(-1, N, in_dim)
    for p in params:
        y = _lstm_ref(y, p["w_ih"], p["w_hh"], p["b_ih"], p["b_hh"])
    return y


if __name__ == "__main__":
    key = jax.random.PRNGKey(0)

    # LRNN(N=8, dim=[4, 32, 16]) -> LSTM(4->32) then nested LRNN LSTM(32->16)
    N = 8
    dim = [4, 32, 16]
    batch = 2

    pkey, xkey = jax.random.split(key)
    params = init_lrnn_params(pkey, dim)
    x = jax.random.normal(xkey, (batch, N, dim[0]), dtype=jnp.float32)

    packed = prepare_lrnn_params(params, in_dim=dim[0])   # packed once, reused
    fwd = jax.jit(functools.partial(lrnn_forward, N=N, in_dim=dim[0],
                                    out_dim=dim[-1]))
    y = fwd(packed, x)
    jax.block_until_ready(y)

    y_ref = lrnn_ref(params, x, N, dim[0])
    assert y.shape == (batch, N, dim[-1]), y.shape
    # bf16 MXU operands (f32 accumulation) => looser tolerance than pure f32.
    assert jnp.allclose(y, y_ref, atol=2e-2, rtol=2e-2), \
        float(jnp.max(jnp.abs(y - y_ref)))

    print("KERNEL_OK")
</pallas_src>

<mosaic_0001>
module attributes {stable_mosaic.version = 11 : i64} {
  func.func @_lstm_block_kernel(%arg0: i32, %arg1: i32, %arg2: memref<8x8x128xf32, #tpu.memory_space<vmem>>, %arg3: memref<128x512xbf16, #tpu.memory_space<vmem>>, %arg4: memref<128x512xbf16, #tpu.memory_space<vmem>>, %arg5: memref<1x512xf32, #tpu.memory_space<vmem>>, %arg6: memref<8x8x128xf32, #tpu.memory_space<vmem>>, %arg7: memref<8x8x512xf32, #tpu.memory_space<vmem>>, %arg8: memref<8x128xf32, #tpu.memory_space<vmem>>, %arg9: memref<8x128xf32, #tpu.memory_space<vmem>>) attributes {dimension_semantics = [#tpu.dimension_semantics<parallel>, #tpu.dimension_semantics<arbitrary>], iteration_bounds = array<i64: 1, 1>, scalar_prefetch = 0 : i64, scratch_operands = 3 : i64, tpu.core_type = #tpu.core_type<tc>, window_params = [{transform_indices = @transform_0, window_bounds = array<i64: 8, 8, 128>}, {pipeline_mode = #tpu.pipeline_mode<synchronous>, transform_indices = @transform_1, window_bounds = array<i64: 128, 512>}, {pipeline_mode = #tpu.pipeline_mode<synchronous>, transform_indices = @transform_2, window_bounds = array<i64: 128, 512>}, {pipeline_mode = #tpu.pipeline_mode<synchronous>, transform_indices = @transform_3, window_bounds = array<i64: 1, 512>}, {transform_indices = @transform_4, window_bounds = array<i64: 8, 8, 128>}]} {
    %c0_i32 = arith.constant 0 : i32
    %0 = arith.cmpi eq, %arg1, %c0_i32 : i32
    %1 = arith.extui %0 : i1 to i32
    %c0_i32_0 = arith.constant 0 : i32
    %2 = arith.cmpi ne, %1, %c0_i32_0 : i32
    scf.if %2 {
      %cst_125 = arith.constant 0.000000e+00 : f32
      %254 = vector.broadcast %cst_125 : f32 to vector<8x128xf32>
      %c0_126 = arith.constant 0 : index
      %c0_127 = arith.constant 0 : index
      %255 = vector.load %arg8[%c0_126, %c0_127] : memref<8x128xf32, #tpu.memory_space<vmem>>, vector<8x128xf32>
      tpu.vector_store %arg8[%c0_126, %c0_127], %254 {strides = array<i32>} : memref<8x128xf32, #tpu.memory_space<vmem>>, vector<8x128xf32>,
      %cst_128 = arith.constant 0.000000e+00 : f32
      %256 = vector.broadcast %cst_128 : f32 to vector<8x128xf32>
      %c0_129 = arith.constant 0 : index
      %c0_130 = arith.constant 0 : index
      %257 = vector.load %arg9[%c0_129, %c0_130] : memref<8x128xf32, #tpu.memory_space<vmem>>, vector<8x128xf32>
      tpu.vector_store %arg9[%c0_129, %c0_130], %256 {strides = array<i32>} : memref<8x128xf32, #tpu.memory_space<vmem>>, vector<8x128xf32>,
    } else {
    }
    %c0 = arith.constant 0 : index
    %c0_1 = arith.constant 0 : index
    %3 = vector.load %arg3[%c0, %c0_1] : memref<128x512xbf16, #tpu.memory_space<vmem>>, vector<128x512xbf16>
    %c0_2 = arith.constant 0 : index
    %c0_3 = arith.constant 0 : index
    %4 = vector.load %arg5[%c0_2, %c0_3] : memref<1x512xf32, #tpu.memory_space<vmem>>, vector<1x512xf32>
    %c0_4 = arith.constant 0 : index
    %c0_5 = arith.constant 0 : index
    %c0_6 = arith.constant 0 : index
    %5 = vector.load %arg2[%c0_4, %c0_5, %c0_6] : memref<8x8x128xf32, #tpu.memory_space<vmem>>, vector<8x8x128xf32>
    %6 = vector.shape_cast %5 : vector<8x8x128xf32> to vector<64x128xf32>
    %7 = arith.truncf %6 : vector<64x128xf32> to vector<64x128xbf16>
    %cst = arith.constant dense<0.000000e+00> : vector<64x512xf32>
    %8 = tpu.matmul %7, %3, %cst {dimension_numbers = #tpu.dot_dimension_numbers<[1], [0], [0], [1], [0, 0, 1, 1], [], []>} : vector<64x128xbf16>, vector<128x512xbf16>, vector<64x512xf32> -> vector<64x512xf32>
    %9 = vector.broadcast %4 : vector<1x512xf32> to vector<64x512xf32>
    %10 = arith.addf %8, %9 : vector<64x512xf32>
    %11 = vector.shape_cast %10 : vector<64x512xf32> to vector<8x8x512xf32>
    %c0_7 = arith.constant 0 : index
    %c0_8 = arith.constant 0 : index
    %c0_9 = arith.constant 0 : index
    %12 = vector.load %arg7[%c0_7, %c0_8, %c0_9] : memref<8x8x512xf32, #tpu.memory_space<vmem>>, vector<8x8x512xf32>
    tpu.vector_store %arg7[%c0_7, %c0_8, %c0_9], %11 {strides = array<i32>} : memref<8x8x512xf32, #tpu.memory_space<vmem>>, vector<8x8x512xf32>,
    %c0_10 = arith.constant 0 : index
    %c0_11 = arith.constant 0 : index
    %13 = vector.load %arg4[%c0_10, %c0_11] : memref<128x512xbf16, #tpu.memory_space<vmem>>, vector<128x512xbf16>
    %c0_i32_12 = arith.constant 0 : i32
    %c0_13 = arith.constant 0 : index
    %c0_14 = arith.constant 0 : index
    %14 = vector.load %arg8[%c0_13, %c0_14] : memref<8x128xf32, #tpu.memory_space<vmem>>, vector<8x128xf32>
    %c0_15 = arith.constant 0 : index
    %c0_16 = arith.constant 0 : index
    %15 = vector.load %arg9[%c0_15, %c0_16] : memref<8x128xf32, #tpu.memory_space<vmem>>, vector<8x128xf32>
    %16 = arith.index_cast %c0_i32_12 : i32 to index
    %c0_17 = arith.constant 0 : index
    %c0_18 = arith.constant 0 : index
    %17 = vector.load %arg7[%16, %c0_17, %c0_18] : memref<8x8x512xf32, #tpu.memory_space<vmem>>, vector<1x8x512xf32>
    %18 = vector.shape_cast %17 : vector<1x8x512xf32> to vector<8x512xf32>
    %19 = arith.truncf %14 : vector<8x128xf32> to vector<8x128xbf16>
    %cst_19 = arith.constant dense<0.000000e+00> : vector<8x512xf32>
    %20 = tpu.matmul %19, %13, %cst_19 {dimension_numbers = #tpu.dot_dimension_numbers<[1], [0], [0], [1], [0, 0, 1, 1], [], []>} : vector<8x128xbf16>, vector<128x512xbf16>, vector<8x512xf32> -> vector<8x512xf32>
    %21 = arith.addf %18, %20 : vector<8x512xf32>
    %22 = vector.extract_strided_slice %21 {offsets = [0, 0], sizes = [8, 384], strides = [1, 1]} : vector<8x512xf32> to vector<8x384xf32>
    %23 = arith.negf %22 : vector<8x384xf32>
    %24 = math.exp %23 : vector<8x384xf32>
    %cst_20 = arith.constant 1.000000e+00 : f32
    %25 = vector.broadcast %cst_20 : f32 to vector<8x384xf32>
    %26 = arith.addf %25, %24 : vector<8x384xf32>
    %27 = arith.divf %25, %26 : vector<8x384xf32>
    %28 = vector.extract_strided_slice %27 {offsets = [0, 0], sizes = [8, 128], strides = [1, 1]} : vector<8x384xf32> to vector<8x128xf32>
    %29 = vector.extract_strided_slice %27 {offsets = [0, 128], sizes = [8, 128], strides = [1, 1]} : vector<8x384xf32> to vector<8x128xf32>
    %30 = vector.extract_strided_slice %27 {offsets = [0, 256], sizes = [8, 128], strides = [1, 1]} : vector<8x384xf32> to vector<8x128xf32>
    %31 = vector.extract_strided_slice %21 {offsets = [0, 384], sizes = [8, 128], strides = [1, 1]} : vector<8x512xf32> to vector<8x128xf32>
    %32 = math.tanh %31 : vector<8x128xf32>
    %33 = arith.mulf %29, %15 : vector<8x128xf32>
    %34 = arith.mulf %28, %32 : vector<8x128xf32>
    %35 = arith.addf %33, %34 : vector<8x128xf32>
    %36 = math.tanh %35 : vector<8x128xf32>
    %37 = arith.mulf %30, %36 : vector<8x128xf32>
    %c0_21 = arith.constant 0 : index
    %c0_22 = arith.constant 0 : index
    %38 = vector.load %arg9[%c0_21, %c0_22] : memref<8x128xf32, #tpu.memory_space<vmem>>, vector<8x128xf32>
    tpu.vector_store %arg9[%c0_21, %c0_22], %35 {strides = array<i32>} : memref<8x128xf32, #tpu.memory_space<vmem>>, vector<8x128xf32>,
    %c0_23 = arith.constant 0 : index
    %c0_24 = arith.constant 0 : index
    %39 = vector.load %arg8[%c0_23, %c0_24] : memref<8x128xf32, #tpu.memory_space<vmem>>, vector<8x128xf32>
    tpu.vector_store %arg8[%c0_23, %c0_24], %37 {strides = array<i32>} : memref<8x128xf32, #tpu.memory_space<vmem>>, vector<8x128xf32>,
    %40 = arith.index_cast %c0_i32_12 : i32 to index
    %c0_25 = arith.constant 0 : index
    %c0_26 = arith.constant 0 : index
    %41 = vector.load %arg6[%40, %c0_25, %c0_26] : memref<8x8x128xf32, #tpu.memory_space<vmem>>, vector<1x8x128xf32>
    %42 = vector.shape_cast %41 : vector<1x8x128xf32> to vector<8x128xf32>
    %43 = vector.shape_cast %37 : vector<8x128xf32> to vector<1x8x128xf32>
    tpu.vector_store %arg6[%40, %c0_25, %c0_26], %43 {strides = array<i32>} : memref<8x8x128xf32, #tpu.memory_space<vmem>>, vector<1x8x128xf32>,
    %c1_i32 = arith.constant 1 : i32
    %c0_27 = arith.constant 0 : index
    %c0_28 = arith.constant 0 : index
    %44 = vector.load %arg8[%c0_27, %c0_28] : memref<8x128xf32, #tpu.memory_space<vmem>>, vector<8x128xf32>
    %c0_29 = arith.constant 0 : index
    %c0_30 = arith.constant 0 : index
    %45 = vector.load %arg9[%c0_29, %c0_30] : memref<8x128xf32, #tpu.memory_space<vmem>>, vector<8x128xf32>
    %46 = arith.index_cast %c1_i32 : i32 to index
    %c0_31 = arith.constant 0 : index
    %c0_32 = arith.constant 0 : index
    %47 = vector.load %arg7[%46, %c0_31, %c0_32] : memref<8x8x512xf32, #tpu.memory_space<vmem>>, vector<1x8x512xf32>
    %48 = vector.shape_cast %47 : vector<1x8x512xf32> to vector<8x512xf32>
    %49 = arith.truncf %44 : vector<8x128xf32> to vector<8x128xbf16>
    %cst_33 = arith.constant dense<0.000000e+00> : vector<8x512xf32>
    %50 = tpu.matmul %49, %13, %cst_33 {dimension_numbers = #tpu.dot_dimension_numbers<[1], [0], [0], [1], [0, 0, 1, 1], [], []>} : vector<8x128xbf16>, vector<128x512xbf16>, vector<8x512xf32> -> vector<8x512xf32>
    %51 = arith.addf %48, %50 : vector<8x512xf32>
    %52 = vector.extract_strided_slice %51 {offsets = [0, 0], sizes = [8, 384], strides = [1, 1]} : vector<8x512xf32> to vector<8x384xf32>
    %53 = arith.negf %52 : vector<8x384xf32>
    %54 = math.exp %53 : vector<8x384xf32>
    %cst_34 = arith.constant 1.000000e+00 : f32
    %55 = vector.broadcast %cst_34 : f32 to vector<8x384xf32>
    %56 = arith.addf %55, %54 : vector<8x384xf32>
    %57 = arith.divf %55, %56 : vector<8x384xf32>
    %58 = vector.extract_strided_slice %57 {offsets = [0, 0], sizes = [8, 128], strides = [1, 1]} : vector<8x384xf32> to vector<8x128xf32>
    %59 = vector.extract_strided_slice %57 {offsets = [0, 128], sizes = [8, 128], strides = [1, 1]} : vector<8x384xf32> to vector<8x128xf32>
    %60 = vector.extract_strided_slice %57 {offsets = [0, 256], sizes = [8, 128], strides = [1, 1]} : vector<8x384xf32> to vector<8x128xf32>
    %61 = vector.extract_strided_slice %51 {offsets = [0, 384], sizes = [8, 128], strides = [1, 1]} : vector<8x512xf32> to vector<8x128xf32>
    %62 = math.tanh %61 : vector<8x128xf32>
    %63 = arith.mulf %59, %45 : vector<8x128xf32>
    %64 = arith.mulf %58, %62 : vector<8x128xf32>
    %65 = arith.addf %63, %64 : vector<8x128xf32>
    %66 = math.tanh %65 : vector<8x128xf32>
    %67 = arith.mulf %60, %66 : vector<8x128xf32>
    %c0_35 = arith.constant 0 : index
    %c0_36 = arith.constant 0 : index
    %68 = vector.load %arg9[%c0_35, %c0_36] : memref<8x128xf32, #tpu.memory_space<vmem>>, vector<8x128xf32>
    tpu.vector_store %arg9[%c0_35, %c0_36], %65 {strides = array<i32>} : memref<8x128xf32, #tpu.memory_space<vmem>>, vector<8x128xf32>,
    %c0_37 = arith.constant 0 : index
    %c0_38 = arith.constant 0 : index
    %69 = vector.load %arg8[%c0_37, %c0_38] : memref<8x128xf32, #tpu.memory_space<vmem>>, vector<8x128xf32>
    tpu.vector_store %arg8[%c0_37, %c0_38], %67 {strides = array<i32>} : memref<8x128xf32, #tpu.memory_space<vmem>>, vector<8x128xf32>,
    %70 = arith.index_cast %c1_i32 : i32 to index
    %c0_39 = arith.constant 0 : index
    %c0_40 = arith.constant 0 : index
    %71 = vector.load %arg6[%70, %c0_39, %c0_40] : memref<8x8x128xf32, #tpu.memory_space<vmem>>, vector<1x8x128xf32>
    %72 = vector.shape_cast %71 : vector<1x8x128xf32> to vector<8x128xf32>
    %73 = vector.shape_cast %67 : vector<8x128xf32> to vector<1x8x128xf32>
    tpu.vector_store %arg6[%70, %c0_39, %c0_40], %73 {strides = array<i32>} : memref<8x8x128xf32, #tpu.memory_space<vmem>>, vector<1x8x128xf32>,
    %c2_i32 = arith.constant 2 : i32
    %c0_41 = arith.constant 0 : index
    %c0_42 = arith.constant 0 : index
    %74 = vector.load %arg8[%c0_41, %c0_42] : memref<8x128xf32, #tpu.memory_space<vmem>>, vector<8x128xf32>
    %c0_43 = arith.constant 0 : index
    %c0_44 = arith.constant 0 : index
    %75 = vector.load %arg9[%c0_43, %c0_44] : memref<8x128xf32, #tpu.memory_space<vmem>>, vector<8x128xf32>
    %76 = arith.index_cast %c2_i32 : i32 to index
    %c0_45 = arith.constant 0 : index
    %c0_46 = arith.constant 0 : index
    %77 = vector.load %arg7[%76, %c0_45, %c0_46] : memref<8x8x512xf32, #tpu.memory_space<vmem>>, vector<1x8x512xf32>
    %78 = vector.shape_cast %77 : vector<1x8x512xf32> to vector<8x512xf32>
    %79 = arith.truncf %74 : vector<8x128xf32> to vector<8x128xbf16>
    %cst_47 = arith.constant dense<0.000000e+00> : vector<8x512xf32>
    %80 = tpu.matmul %79, %13, %cst_47 {dimension_numbers = #tpu.dot_dimension_numbers<[1], [0], [0], [1], [0, 0, 1, 1], [], []>} : vector<8x128xbf16>, vector<128x512xbf16>, vector<8x512xf32> -> vector<8x512xf32>
    %81 = arith.addf %78, %80 : vector<8x512xf32>
    %82 = vector.extract_strided_slice %81 {offsets = [0, 0], sizes = [8, 384], strides = [1, 1]} : vector<8x512xf32> to vector<8x384xf32>
    %83 = arith.negf %82 : vector<8x384xf32>
    %84 = math.exp %83 : vector<8x384xf32>
    %cst_48 = arith.constant 1.000000e+00 : f32
    %85 = vector.broadcast %cst_48 : f32 to vector<8x384xf32>
    %86 = arith.addf %85, %84 : vector<8x384xf32>
    %87 = arith.divf %85, %86 : vector<8x384xf32>
    %88 = vector.extract_strided_slice %87 {offsets = [0, 0], sizes = [8, 128], strides = [1, 1]} : vector<8x384xf32> to vector<8x128xf32>
    %89 = vector.extract_strided_slice %87 {offsets = [0, 128], sizes = [8, 128], strides = [1, 1]} : vector<8x384xf32> to vector<8x128xf32>
    %90 = vector.extract_strided_slice %87 {offsets = [0, 256], sizes = [8, 128], strides = [1, 1]} : vector<8x384xf32> to vector<8x128xf32>
    %91 = vector.extract_strided_slice %81 {offsets = [0, 384], sizes = [8, 128], strides = [1, 1]} : vector<8x512xf32> to vector<8x128xf32>
    %92 = math.tanh %91 : vector<8x128xf32>
    %93 = arith.mulf %89, %75 : vector<8x128xf32>
    %94 = arith.mulf %88, %92 : vector<8x128xf32>
    %95 = arith.addf %93, %94 : vector<8x128xf32>
    %96 = math.tanh %95 : vector<8x128xf32>
    %97 = arith.mulf %90, %96 : vector<8x128xf32>
    %c0_49 = arith.constant 0 : index
    %c0_50 = arith.constant 0 : index
    %98 = vector.load %arg9[%c0_49, %c0_50] : memref<8x128xf32, #tpu.memory_space<vmem>>, vector<8x128xf32>
    tpu.vector_store %arg9[%c0_49, %c0_50], %95 {strides = array<i32>} : memref<8x128xf32, #tpu.memory_space<vmem>>, vector<8x128xf32>,
    %c0_51 = arith.constant 0 : index
    %c0_52 = arith.constant 0 : index
    %99 = vector.load %arg8[%c0_51, %c0_52] : memref<8x128xf32, #tpu.memory_space<vmem>>, vector<8x128xf32>
    tpu.vector_store %arg8[%c0_51, %c0_52], %97 {strides = array<i32>} : memref<8x128xf32, #tpu.memory_space<vmem>>, vector<8x128xf32>,
    %100 = arith.index_cast %c2_i32 : i32 to index
    %c0_53 = arith.constant 0 : index
    %c0_54 = arith.constant 0 : index
    %101 = vector.load %arg6[%100, %c0_53, %c0_54] : memref<8x8x128xf32, #tpu.memory_space<vmem>>, vector<1x8x128xf32>
    %102 = vector.shape_cast %101 : vector<1x8x128xf32> to vector<8x128xf32>
    %103 = vector.shape_cast %97 : vector<8x128xf32> to vector<1x8x128xf32>
    tpu.vector_store %arg6[%100, %c0_53, %c0_54], %103 {strides = array<i32>} : memref<8x8x128xf32, #tpu.memory_space<vmem>>, vector<1x8x128xf32>,
    %c3_i32 = arith.constant 3 : i32
    %c0_55 = arith.constant 0 : index
    %c0_56 = arith.constant 0 : index
    %104 = vector.load %arg8[%c0_55, %c0_56] : memref<8x128xf32, #tpu.memory_space<vmem>>, vector<8x128xf32>
    %c0_57 = arith.constant 0 : index
    %c0_58 = arith.constant 0 : index
    %105 = vector.load %arg9[%c0_57, %c0_58] : memref<8x128xf32, #tpu.memory_space<vmem>>, vector<8x128xf32>
    %106 = arith.index_cast %c3_i32 : i32 to index
    %c0_59 = arith.constant 0 : index
    %c0_60 = arith.constant 0 : index
    %107 = vector.load %arg7[%106, %c0_59, %c0_60] : memref<8x8x512xf32, #tpu.memory_space<vmem>>, vector<1x8x512xf32>
    %108 = vector.shape_cast %107 : vector<1x8x512xf32> to vector<8x512xf32>
    %109 = arith.truncf %104 : vector<8x128xf32> to vector<8x128xbf16>
    %cst_61 = arith.constant dense<0.000000e+00> : vector<8x512xf32>
    %110 = tpu.matmul %109, %13, %cst_61 {dimension_numbers = #tpu.dot_dimension_numbers<[1], [0], [0], [1], [0, 0, 1, 1], [], []>} : vector<8x128xbf16>, vector<128x512xbf16>, vector<8x512xf32> -> vector<8x512xf32>
    %111 = arith.addf %108, %110 : vector<8x512xf32>
    %112 = vector.extract_strided_slice %111 {offsets = [0, 0], sizes = [8, 384], strides = [1, 1]} : vector<8x512xf32> to vector<8x384xf32>
    %113 = arith.negf %112 : vector<8x384xf32>
    %114 = math.exp %113 : vector<8x384xf32>
    %cst_62 = arith.constant 1.000000e+00 : f32
    %115 = vector.broadcast %cst_62 : f32 to vector<8x384xf32>
    %116 = arith.addf %115, %114 : vector<8x384xf32>
    %117 = arith.divf %115, %116 : vector<8x384xf32>
    %118 = vector.extract_strided_slice %117 {offsets = [0, 0], sizes = [8, 128], strides = [1, 1]} : vector<8x384xf32> to vector<8x128xf32>
    %119 = vector.extract_strided_slice %117 {offsets = [0, 128], sizes = [8, 128], strides = [1, 1]} : vector<8x384xf32> to vector<8x128xf32>
    %120 = vector.extract_strided_slice %117 {offsets = [0, 256], sizes = [8, 128], strides = [1, 1]} : vector<8x384xf32> to vector<8x128xf32>
    %121 = vector.extract_strided_slice %111 {offsets = [0, 384], sizes = [8, 128], strides = [1, 1]} : vector<8x512xf32> to vector<8x128xf32>
    %122 = math.tanh %121 : vector<8x128xf32>
    %123 = arith.mulf %119, %105 : vector<8x128xf32>
    %124 = arith.mulf %118, %122 : vector<8x128xf32>
    %125 = arith.addf %123, %124 : vector<8x128xf32>
    %126 = math.tanh %125 : vector<8x128xf32>
    %127 = arith.mulf %120, %126 : vector<8x128xf32>
    %c0_63 = arith.constant 0 : index
    %c0_64 = arith.constant 0 : index
    %128 = vector.load %arg9[%c0_63, %c0_64] : memref<8x128xf32, #tpu.memory_space<vmem>>, vector<8x128xf32>
    tpu.vector_store %arg9[%c0_63, %c0_64], %125 {strides = array<i32>} : memref<8x128xf32, #tpu.memory_space<vmem>>, vector<8x128xf32>,
    %c0_65 = arith.constant 0 : index
    %c0_66 = arith.constant 0 : index
    %129 = vector.load %arg8[%c0_65, %c0_66] : memref<8x128xf32, #tpu.memory_space<vmem>>, vector<8x128xf32>
    tpu.vector_store %arg8[%c0_65, %c0_66], %127 {strides = array<i32>} : memref<8x128xf32, #tpu.memory_space<vmem>>, vector<8x128xf32>,
    %130 = arith.index_cast %c3_i32 : i32 to index
    %c0_67 = arith.constant 0 : index
    %c0_68 = arith.constant 0 : index
    %131 = vector.load %arg6[%130, %c0_67, %c0_68] : memref<8x8x128xf32, #tpu.memory_space<vmem>>, vector<1x8x128xf32>
    %132 = vector.shape_cast %131 : vector<1x8x128xf32> to vector<8x128xf32>
    %133 = vector.shape_cast %127 : vector<8x128xf32> to vector<1x8x128xf32>
    tpu.vector_store %arg6[%130, %c0_67, %c0_68], %133 {strides = array<i32>} : memref<8x8x128xf32, #tpu.memory_space<vmem>>, vector<1x8x128xf32>,
    %c4_i32 = arith.constant 4 : i32
    %c0_69 = arith.constant 0 : index
    %c0_70 = arith.constant 0 : index
    %134 = vector.load %arg8[%c0_69, %c0_70] : memref<8x128xf32, #tpu.memory_space<vmem>>, vector<8x128xf32>
    %c0_71 = arith.constant 0 : index
    %c0_72 = arith.constant 0 : index
    %135 = vector.load %arg9[%c0_71, %c0_72] : memref<8x128xf32, #tpu.memory_space<vmem>>, vector<8x128xf32>
    %136 = arith.index_cast %c4_i32 : i32 to index
    %c0_73 = arith.constant 0 : index
    %c0_74 = arith.constant 0 : index
    %137 = vector.load %arg7[%136, %c0_73, %c0_74] : memref<8x8x512xf32, #tpu.memory_space<vmem>>, vector<1x8x512xf32>
    %138 = vector.shape_cast %137 : vector<1x8x512xf32> to vector<8x512xf32>
    %139 = arith.truncf %134 : vector<8x128xf32> to vector<8x128xbf16>
    %cst_75 = arith.constant dense<0.000000e+00> : vector<8x512xf32>
    %140 = tpu.matmul %139, %13, %cst_75 {dimension_numbers = #tpu.dot_dimension_numbers<[1], [0], [0], [1], [0, 0, 1, 1], [], []>} : vector<8x128xbf16>, vector<128x512xbf16>, vector<8x512xf32> -> vector<8x512xf32>
    %141 = arith.addf %138, %140 : vector<8x512xf32>
    %142 = vector.extract_strided_slice %141 {offsets = [0, 0], sizes = [8, 384], strides = [1, 1]} : vector<8x512xf32> to vector<8x384xf32>
    %143 = arith.negf %142 : vector<8x384xf32>
    %144 = math.exp %143 : vector<8x384xf32>
    %cst_76 = arith.constant 1.000000e+00 : f32
    %145 = vector.broadcast %cst_76 : f32 to vector<8x384xf32>
    %146 = arith.addf %145, %144 : vector<8x384xf32>
    %147 = arith.divf %145, %146 : vector<8x384xf32>
    %148 = vector.extract_strided_slice %147 {offsets = [0, 0], sizes = [8, 128], strides = [1, 1]} : vector<8x384xf32> to vector<8x128xf32>
    %149 = vector.extract_strided_slice %147 {offsets = [0, 128], sizes = [8, 128], strides = [1, 1]} : vector<8x384xf32> to vector<8x128xf32>
    %150 = vector.extract_strided_slice %147 {offsets = [0, 256], sizes = [8, 128], strides = [1, 1]} : vector<8x384xf32> to vector<8x128xf32>
    %151 = vector.extract_strided_slice %141 {offsets = [0, 384], sizes = [8, 128], strides = [1, 1]} : vector<8x512xf32> to vector<8x128xf32>
    %152 = math.tanh %151 : vector<8x128xf32>
    %153 = arith.mulf %149, %135 : vector<8x128xf32>
    %154 = arith.mulf %148, %152 : vector<8x128xf32>
    %155 = arith.addf %153, %154 : vector<8x128xf32>
    %156 = math.tanh %155 : vector<8x128xf32>
    %157 = arith.mulf %150, %156 : vector<8x128xf32>
    %c0_77 = arith.constant 0 : index
    %c0_78 = arith.constant 0 : index
    %158 = vector.load %arg9[%c0_77, %c0_78] : memref<8x128xf32, #tpu.memory_space<vmem>>, vector<8x128xf32>
    tpu.vector_store %arg9[%c0_77, %c0_78], %155 {strides = array<i32>} : memref<8x128xf32, #tpu.memory_space<vmem>>, vector<8x128xf32>,
    %c0_79 = arith.constant 0 : index
    %c0_80 = arith.constant 0 : index
    %159 = vector.load %arg8[%c0_79, %c0_80] : memref<8x128xf32, #tpu.memory_space<vmem>>, vector<8x128xf32>
    tpu.vector_store %arg8[%c0_79, %c0_80], %157 {strides = array<i32>} : memref<8x128xf32, #tpu.memory_space<vmem>>, vector<8x128xf32>,
    %160 = arith.index_cast %c4_i32 : i32 to index
    %c0_81 = arith.constant 0 : index
    %c0_82 = arith.constant 0 : index
    %161 = vector.load %arg6[%160, %c0_81, %c0_82] : memref<8x8x128xf32, #tpu.memory_space<vmem>>, vector<1x8x128xf32>
    %162 = vector.shape_cast %161 : vector<1x8x128xf32> to vector<8x128xf32>
    %163 = vector.shape_cast %157 : vector<8x128xf32> to vector<1x8x128xf32>
    tpu.vector_store %arg6[%160, %c0_81, %c0_82], %163 {strides = array<i32>} : memref<8x8x128xf32, #tpu.memory_space<vmem>>, vector<1x8x128xf32>,
    %c5_i32 = arith.constant 5 : i32
    %c0_83 = arith.constant 0 : index
    %c0_84 = arith.constant 0 : index
    %164 = vector.load %arg8[%c0_83, %c0_84] : memref<8x128xf32, #tpu.memory_space<vmem>>, vector<8x128xf32>
    %c0_85 = arith.constant 0 : index
    %c0_86 = arith.constant 0 : index
    %165 = vector.load %arg9[%c0_85, %c0_86] : memref<8x128xf32, #tpu.memory_space<vmem>>, vector<8x128xf32>
    %166 = arith.index_cast %c5_i32 : i32 to index
    %c0_87 = arith.constant 0 : index
    %c0_88 = arith.constant 0 : index
    %167 = vector.load %arg7[%166, %c0_87, %c0_88] : memref<8x8x512xf32, #tpu.memory_space<vmem>>, vector<1x8x512xf32>
    %168 = vector.shape_cast %167 : vector<1x8x512xf32> to vector<8x512xf32>
    %169 = arith.truncf %164 : vector<8x128xf32> to vector<8x128xbf16>
    %cst_89 = arith.constant dense<0.000000e+00> : vector<8x512xf32>
    %170 = tpu.matmul %169, %13, %cst_89 {dimension_numbers = #tpu.dot_dimension_numbers<[1], [0], [0], [1], [0, 0, 1, 1], [], []>} : vector<8x128xbf16>, vector<128x512xbf16>, vector<8x512xf32> -> vector<8x512xf32>
    %171 = arith.addf %168, %170 : vector<8x512xf32>
    %172 = vector.extract_strided_slice %171 {offsets = [0, 0], sizes = [8, 384], strides = [1, 1]} : vector<8x512xf32> to vector<8x384xf32>
    %173 = arith.negf %172 : vector<8x384xf32>
    %174 = math.exp %173 : vector<8x384xf32>
    %cst_90 = arith.constant 1.000000e+00 : f32
    %175 = vector.broadcast %cst_90 : f32 to vector<8x384xf32>
    %176 = arith.addf %175, %174 : vector<8x384xf32>
    %177 = arith.divf %175, %176 : vector<8x384xf32>
    %178 = vector.extract_strided_slice %177 {offsets = [0, 0], sizes = [8, 128], strides = [1, 1]} : vector<8x384xf32> to vector<8x128xf32>
    %179 = vector.extract_strided_slice %177 {offsets = [0, 128], sizes = [8, 128], strides = [1, 1]} : vector<8x384xf32> to vector<8x128xf32>
    %180 = vector.extract_strided_slice %177 {offsets = [0, 256], sizes = [8, 128], strides = [1, 1]} : vector<8x384xf32> to vector<8x128xf32>
    %181 = vector.extract_strided_slice %171 {offsets = [0, 384], sizes = [8, 128], strides = [1, 1]} : vector<8x512xf32> to vector<8x128xf32>
    %182 = math.tanh %181 : vector<8x128xf32>
    %183 = arith.mulf %179, %165 : vector<8x128xf32>
    %184 = arith.mulf %178, %182 : vector<8x128xf32>
    %185 = arith.addf %183, %184 : vector<8x128xf32>
    %186 = math.tanh %185 : vector<8x128xf32>
    %187 = arith.mulf %180, %186 : vector<8x128xf32>
    %c0_91 = arith.constant 0 : index
    %c0_92 = arith.constant 0 : index
    %188 = vector.load %arg9[%c0_91, %c0_92] : memref<8x128xf32, #tpu.memory_space<vmem>>, vector<8x128xf32>
    tpu.vector_store %arg9[%c0_91, %c0_92], %185 {strides = array<i32>} : memref<8x128xf32, #tpu.memory_space<vmem>>, vector<8x128xf32>,
    %c0_93 = arith.constant 0 : index
    %c0_94 = arith.constant 0 : index
    %189 = vector.load %arg8[%c0_93, %c0_94] : memref<8x128xf32, #tpu.memory_space<vmem>>, vector<8x128xf32>
    tpu.vector_store %arg8[%c0_93, %c0_94], %187 {strides = array<i32>} : memref<8x128xf32, #tpu.memory_space<vmem>>, vector<8x128xf32>,
    %190 = arith.index_cast %c5_i32 : i32 to index
    %c0_95 = arith.constant 0 : index
    %c0_96 = arith.constant 0 : index
    %191 = vector.load %arg6[%190, %c0_95, %c0_96] : memref<8x8x128xf32, #tpu.memory_space<vmem>>, vector<1x8x128xf32>
    %192 = vector.shape_cast %191 : vector<1x8x128xf32> to vector<8x128xf32>
    %193 = vector.shape_cast %187 : vector<8x128xf32> to vector<1x8x128xf32>
    tpu.vector_store %arg6[%190, %c0_95, %c0_96], %193 {strides = array<i32>} : memref<8x8x128xf32, #tpu.memory_space<vmem>>, vector<1x8x128xf32>,
    %c6_i32 = arith.constant 6 : i32
    %c0_97 = arith.constant 0 : index
    %c0_98 = arith.constant 0 : index
    %194 = vector.load %arg8[%c0_97, %c0_98] : memref<8x128xf32, #tpu.memory_space<vmem>>, vector<8x128xf32>
    %c0_99 = arith.constant 0 : index
    %c0_100 = arith.constant 0 : index
    %195 = vector.load %arg9[%c0_99, %c0_100] : memref<8x128xf32, #tpu.memory_space<vmem>>, vector<8x128xf32>
    %196 = arith.index_cast %c6_i32 : i32 to index
    %c0_101 = arith.constant 0 : index
    %c0_102 = arith.constant 0 : index
    %197 = vector.load %arg7[%196, %c0_101, %c0_102] : memref<8x8x512xf32, #tpu.memory_space<vmem>>, vector<1x8x512xf32>
    %198 = vector.shape_cast %197 : vector<1x8x512xf32> to vector<8x512xf32>
    %199 = arith.truncf %194 : vector<8x128xf32> to vector<8x128xbf16>
    %cst_103 = arith.constant dense<0.000000e+00> : vector<8x512xf32>
    %200 = tpu.matmul %199, %13, %cst_103 {dimension_numbers = #tpu.dot_dimension_numbers<[1], [0], [0], [1], [0, 0, 1, 1], [], []>} : vector<8x128xbf16>, vector<128x512xbf16>, vector<8x512xf32> -> vector<8x512xf32>
    %201 = arith.addf %198, %200 : vector<8x512xf32>
    %202 = vector.extract_strided_slice %201 {offsets = [0, 0], sizes = [8, 384], strides = [1, 1]} : vector<8x512xf32> to vector<8x384xf32>
    %203 = arith.negf %202 : vector<8x384xf32>
    %204 = math.exp %203 : vector<8x384xf32>
    %cst_104 = arith.constant 1.000000e+00 : f32
    %205 = vector.broadcast %cst_104 : f32 to vector<8x384xf32>
    %206 = arith.addf %205, %204 : vector<8x384xf32>
    %207 = arith.divf %205, %206 : vector<8x384xf32>
    %208 = vector.extract_strided_slice %207 {offsets = [0, 0], sizes = [8, 128], strides = [1, 1]} : vector<8x384xf32> to vector<8x128xf32>
    %209 = vector.extract_strided_slice %207 {offsets = [0, 128], sizes = [8, 128], strides = [1, 1]} : vector<8x384xf32> to vector<8x128xf32>
    %210 = vector.extract_strided_slice %207 {offsets = [0, 256], sizes = [8, 128], strides = [1, 1]} : vector<8x384xf32> to vector<8x128xf32>
    %211 = vector.extract_strided_slice %201 {offsets = [0, 384], sizes = [8, 128], strides = [1, 1]} : vector<8x512xf32> to vector<8x128xf32>
    %212 = math.tanh %211 : vector<8x128xf32>
    %213 = arith.mulf %209, %195 : vector<8x128xf32>
    %214 = arith.mulf %208, %212 : vector<8x128xf32>
    %215 = arith.addf %213, %214 : vector<8x128xf32>
    %216 = math.tanh %215 : vector<8x128xf32>
    %217 = arith.mulf %210, %216 : vector<8x128xf32>
    %c0_105 = arith.constant 0 : index
    %c0_106 = arith.constant 0 : index
    %218 = vector.load %arg9[%c0_105, %c0_106] : memref<8x128xf32, #tpu.memory_space<vmem>>, vector<8x128xf32>
    tpu.vector_store %arg9[%c0_105, %c0_106], %215 {strides = array<i32>} : memref<8x128xf32, #tpu.memory_space<vmem>>, vector<8x128xf32>,
    %c0_107 = arith.constant 0 : index
    %c0_108 = arith.constant 0 : index
    %219 = vector.load %arg8[%c0_107, %c0_108] : memref<8x128xf32, #tpu.memory_space<vmem>>, vector<8x128xf32>
    tpu.vector_store %arg8[%c0_107, %c0_108], %217 {strides = array<i32>} : memref<8x128xf32, #tpu.memory_space<vmem>>, vector<8x128xf32>,
    %220 = arith.index_cast %c6_i32 : i32 to index
    %c0_109 = arith.constant 0 : index
    %c0_110 = arith.constant 0 : index
    %221 = vector.load %arg6[%220, %c0_109, %c0_110] : memref<8x8x128xf32, #tpu.memory_space<vmem>>, vector<1x8x128xf32>
    %222 = vector.shape_cast %221 : vector<1x8x128xf32> to vector<8x128xf32>
    %223 = vector.shape_cast %217 : vector<8x128xf32> to vector<1x8x128xf32>
    tpu.vector_store %arg6[%220, %c0_109, %c0_110], %223 {strides = array<i32>} : memref<8x8x128xf32, #tpu.memory_space<vmem>>, vector<1x8x128xf32>,
    %c7_i32 = arith.constant 7 : i32
    %c0_111 = arith.constant 0 : index
    %c0_112 = arith.constant 0 : index
    %224 = vector.load %arg8[%c0_111, %c0_112] : memref<8x128xf32, #tpu.memory_space<vmem>>, vector<8x128xf32>
    %c0_113 = arith.constant 0 : index
    %c0_114 = arith.constant 0 : index
    %225 = vector.load %arg9[%c0_113, %c0_114] : memref<8x128xf32, #tpu.memory_space<vmem>>, vector<8x128xf32>
    %226 = arith.index_cast %c7_i32 : i32 to index
    %c0_115 = arith.constant 0 : index
    %c0_116 = arith.constant 0 : index
    %227 = vector.load %arg7[%226, %c0_115, %c0_116] : memref<8x8x512xf32, #tpu.memory_space<vmem>>, vector<1x8x512xf32>
    %228 = vector.shape_cast %227 : vector<1x8x512xf32> to vector<8x512xf32>
    %229 = arith.truncf %224 : vector<8x128xf32> to vector<8x128xbf16>
    %cst_117 = arith.constant dense<0.000000e+00> : vector<8x512xf32>
    %230 = tpu.matmul %229, %13, %cst_117 {dimension_numbers = #tpu.dot_dimension_numbers<[1], [0], [0], [1], [0, 0, 1, 1], [], []>} : vector<8x128xbf16>, vector<128x512xbf16>, vector<8x512xf32> -> vector<8x512xf32>
    %231 = arith.addf %228, %230 : vector<8x512xf32>
    %232 = vector.extract_strided_slice %231 {offsets = [0, 0], sizes = [8, 384], strides = [1, 1]} : vector<8x512xf32> to vector<8x384xf32>
    %233 = arith.negf %232 : vector<8x384xf32>
    %234 = math.exp %233 : vector<8x384xf32>
    %cst_118 = arith.constant 1.000000e+00 : f32
    %235 = vector.broadcast %cst_118 : f32 to vector<8x384xf32>
    %236 = arith.addf %235, %234 : vector<8x384xf32>
    %237 = arith.divf %235, %236 : vector<8x384xf32>
    %238 = vector.extract_strided_slice %237 {offsets = [0, 0], sizes = [8, 128], strides = [1, 1]} : vector<8x384xf32> to vector<8x128xf32>
    %239 = vector.extract_strided_slice %237 {offsets = [0, 128], sizes = [8, 128], strides = [1, 1]} : vector<8x384xf32> to vector<8x128xf32>
    %240 = vector.extract_strided_slice %237 {offsets = [0, 256], sizes = [8, 128], strides = [1, 1]} : vector<8x384xf32> to vector<8x128xf32>
    %241 = vector.extract_strided_slice %231 {offsets = [0, 384], sizes = [8, 128], strides = [1, 1]} : vector<8x512xf32> to vector<8x128xf32>
    %242 = math.tanh %241 : vector<8x128xf32>
    %243 = arith.mulf %239, %225 : vector<8x128xf32>
    %244 = arith.mulf %238, %242 : vector<8x128xf32>
    %245 = arith.addf %243, %244 : vector<8x128xf32>
    %246 = math.tanh %245 : vector<8x128xf32>
    %247 = arith.mulf %240, %246 : vector<8x128xf32>
    %c0_119 = arith.constant 0 : index
    %c0_120 = arith.constant 0 : index
    %248 = vector.load %arg9[%c0_119, %c0_120] : memref<8x128xf32, #tpu.memory_space<vmem>>, vector<8x128xf32>
    tpu.vector_store %arg9[%c0_119, %c0_120], %245 {strides = array<i32>} : memref<8x128xf32, #tpu.memory_space<vmem>>, vector<8x128xf32>,
    %c0_121 = arith.constant 0 : index
    %c0_122 = arith.constant 0 : index
    %249 = vector.load %arg8[%c0_121, %c0_122] : memref<8x128xf32, #tpu.memory_space<vmem>>, vector<8x128xf32>
    tpu.vector_store %arg8[%c0_121, %c0_122], %247 {strides = array<i32>} : memref<8x128xf32, #tpu.memory_space<vmem>>, vector<8x128xf32>,
    %250 = arith.index_cast %c7_i32 : i32 to index
    %c0_123 = arith.constant 0 : index
    %c0_124 = arith.constant 0 : index
    %251 = vector.load %arg6[%250, %c0_123, %c0_124] : memref<8x8x128xf32, #tpu.memory_space<vmem>>, vector<1x8x128xf32>
    %252 = vector.shape_cast %251 : vector<1x8x128xf32> to vector<8x128xf32>
    %253 = vector.shape_cast %247 : vector<8x128xf32> to vector<1x8x128xf32>
    tpu.vector_store %arg6[%250, %c0_123, %c0_124], %253 {strides = array<i32>} : memref<8x8x128xf32, #tpu.memory_space<vmem>>, vector<1x8x128xf32>,
    %c8_i32 = arith.constant 8 : i32
    return
  }
  func.func @transform_0(%arg0: i32, %arg1: i32) -> (i32, i32, i32) {
    %c0_i32 = arith.constant 0 : i32
    %c0_i32_0 = arith.constant 0 : i32
    return %arg1, %arg0, %c0_i32 : i32, i32, i32
  }
  func.func @transform_1(%arg0: i32, %arg1: i32) -> (i32, i32) {
    %c0_i32 = arith.constant 0 : i32
    %c0_i32_0 = arith.constant 0 : i32
    %c0_i32_1 = arith.constant 0 : i32
    return %c0_i32, %c0_i32_0 : i32, i32
  }
  func.func @transform_2(%arg0: i32, %arg1: i32) -> (i32, i32) {
    %c0_i32 = arith.constant 0 : i32
    %c0_i32_0 = arith.constant 0 : i32
    %c0_i32_1 = arith.constant 0 : i32
    return %c0_i32, %c0_i32_0 : i32, i32
  }
  func.func @transform_3(%arg0: i32, %arg1: i32) -> (i32, i32) {
    %c0_i32 = arith.constant 0 : i32
    %c0_i32_0 = arith.constant 0 : i32
    %c0_i32_1 = arith.constant 0 : i32
    return %c0_i32, %c0_i32_0 : i32, i32
  }
  func.func @transform_4(%arg0: i32, %arg1: i32) -> (i32, i32, i32) {
    %c0_i32 = arith.constant 0 : i32
    %c0_i32_0 = arith.constant 0 : i32
    return %arg1, %arg0, %c0_i32 : i32, i32, i32
  }
}

module attributes {stable_mosaic.version = 11 : i64} {
  func.func @_lstm_block_kernel(%arg0: i32, %arg1: i32, %arg2: memref<8x8x128xf32, #tpu.memory_space<vmem>>, %arg3: memref<128x512xbf16, #tpu.memory_space<vmem>>, %arg4: memref<128x512xbf16, #tpu.memory_space<vmem>>, %arg5: memref<1x512xf32, #tpu.memory_space<vmem>>, %arg6: memref<8x8x128xf32, #tpu.memory_space<vmem>>, %arg7: memref<8x8x512xf32, #tpu.memory_space<vmem>>, %arg8: memref<8x128xf32, #tpu.memory_space<vmem>>, %arg9: memref<8x128xf32, #tpu.memory_space<vmem>>) attributes {dimension_semantics = [#tpu.dimension_semantics<parallel>, #tpu.dimension_semantics<arbitrary>], iteration_bounds = array<i64: 1, 1>, scalar_prefetch = 0 : i64, scratch_operands = 3 : i64, tpu.core_type = #tpu.core_type<tc>, window_params = [{transform_indices = @transform_0, window_bounds = array<i64: 8, 8, 128>}, {pipeline_mode = #tpu.pipeline_mode<synchronous>, transform_indices = @transform_1, window_bounds = array<i64: 128, 512>}, {pipeline_mode = #tpu.pipeline_mode<synchronous>, transform_indices = @transform_2, window_bounds = array<i64: 128, 512>}, {pipeline_mode = #tpu.pipeline_mode<synchronous>, transform_indices = @transform_3, window_bounds = array<i64: 1, 512>}, {transform_indices = @transform_4, window_bounds = array<i64: 8, 8, 128>}]} {
    %c0_i32 = arith.constant 0 : i32
    %0 = arith.cmpi eq, %arg1, %c0_i32 : i32
    %1 = arith.extui %0 : i1 to i32
    %c0_i32_0 = arith.constant 0 : i32
    %2 = arith.cmpi ne, %1, %c0_i32_0 : i32
    scf.if %2 {
      %cst_125 = arith.constant 0.000000e+00 : f32
      %254 = vector.broadcast %cst_125 : f32 to vector<8x128xf32>
      %c0_126 = arith.constant 0 : index
      %c0_127 = arith.constant 0 : index
      %255 = vector.load %arg8[%c0_126, %c0_127] : memref<8x128xf32, #tpu.memory_space<vmem>>, vector<8x128xf32>
      tpu.vector_store %arg8[%c0_126, %c0_127], %254 {strides = array<i32>} : memref<8x128xf32, #tpu.memory_space<vmem>>, vector<8x128xf32>,
      %cst_128 = arith.constant 0.000000e+00 : f32
      %256 = vector.broadcast %cst_128 : f32 to vector<8x128xf32>
      %c0_129 = arith.constant 0 : index
      %c0_130 = arith.constant 0 : index
      %257 = vector.load %arg9[%c0_129, %c0_130] : memref<8x128xf32, #tpu.memory_space<vmem>>, vector<8x128xf32>
      tpu.vector_store %arg9[%c0_129, %c0_130], %256 {strides = array<i32>} : memref<8x128xf32, #tpu.memory_space<vmem>>, vector<8x128xf32>,
    } else {
    }
    %c0 = arith.constant 0 : index
    %c0_1 = arith.constant 0 : index
    %3 = vector.load %arg3[%c0, %c0_1] : memref<128x512xbf16, #tpu.memory_space<vmem>>, vector<128x512xbf16>
    %c0_2 = arith.constant 0 : index
    %c0_3 = arith.constant 0 : index
    %4 = vector.load %arg5[%c0_2, %c0_3] : memref<1x512xf32, #tpu.memory_space<vmem>>, vector<1x512xf32>
    %c0_4 = arith.constant 0 : index
    %c0_5 = arith.constant 0 : index
    %c0_6 = arith.constant 0 : index
    %5 = vector.load %arg2[%c0_4, %c0_5, %c0_6] : memref<8x8x128xf32, #tpu.memory_space<vmem>>, vector<8x8x128xf32>
    %6 = vector.shape_cast %5 : vector<8x8x128xf32> to vector<64x128xf32>
    %7 = arith.truncf %6 : vector<64x128xf32> to vector<64x128xbf16>
    %cst = arith.constant dense<0.000000e+00> : vector<64x512xf32>
    %8 = tpu.matmul %7, %3, %cst {dimension_numbers = #tpu.dot_dimension_numbers<[1], [0], [0], [1], [0, 0, 1, 1], [], []>} : vector<64x128xbf16>, vector<128x512xbf16>, vector<64x512xf32> -> vector<64x512xf32>
    %9 = vector.broadcast %4 : vector<1x512xf32> to vector<64x512xf32>
    %10 = arith.addf %8, %9 : vector<64x512xf32>
    %11 = vector.shape_cast %10 : vector<64x512xf32> to vector<8x8x512xf32>
    %c0_7 = arith.constant 0 : index
    %c0_8 = arith.constant 0 : index
    %c0_9 = arith.constant 0 : index
    %12 = vector.load %arg7[%c0_7, %c0_8, %c0_9] : memref<8x8x512xf32, #tpu.memory_space<vmem>>, vector<8x8x512xf32>
    tpu.vector_store %arg7[%c0_7, %c0_8, %c0_9], %11 {strides = array<i32>} : memref<8x8x512xf32, #tpu.memory_space<vmem>>, vector<8x8x512xf32>,
    %c0_10 = arith.constant 0 : index
    %c0_11 = arith.constant 0 : index
    %13 = vector.load %arg4[%c0_10, %c0_11] : memref<128x512xbf16, #tpu.memory_space<vmem>>, vector<128x512xbf16>
    %c0_i32_12 = arith.constant 0 : i32
    %c0_13 = arith.constant 0 : index
    %c0_14 = arith.constant 0 : index
    %14 = vector.load %arg8[%c0_13, %c0_14] : memref<8x128xf32, #tpu.memory_space<vmem>>, vector<8x128xf32>
    %c0_15 = arith.constant 0 : index
    %c0_16 = arith.constant 0 : index
    %15 = vector.load %arg9[%c0_15, %c0_16] : memref<8x128xf32, #tpu.memory_space<vmem>>, vector<8x128xf32>
    %16 = arith.index_cast %c0_i32_12 : i32 to index
    %c0_17 = arith.constant 0 : index
    %c0_18 = arith.constant 0 : index
    %17 = vector.load %arg7[%16, %c0_17, %c0_18] : memref<8x8x512xf32, #tpu.memory_space<vmem>>, vector<1x8x512xf32>
    %18 = vector.shape_cast %17 : vector<1x8x512xf32> to vector<8x512xf32>
    %19 = arith.truncf %14 : vector<8x128xf32> to vector<8x128xbf16>
    %cst_19 = arith.constant dense<0.000000e+00> : vector<8x512xf32>
    %20 = tpu.matmul %19, %13, %cst_19 {dimension_numbers = #tpu.dot_dimension_numbers<[1], [0], [0], [1], [0, 0, 1, 1], [], []>} : vector<8x128xbf16>, vector<128x512xbf16>, vector<8x512xf32> -> vector<8x512xf32>
    %21 = arith.addf %18, %20 : vector<8x512xf32>
    %22 = vector.extract_strided_slice %21 {offsets = [0, 0], sizes = [8, 384], strides = [1, 1]} : vector<8x512xf32> to vector<8x384xf32>
    %23 = arith.negf %22 : vector<8x384xf32>
    %24 = math.exp %23 : vector<8x384xf32>
    %cst_20 = arith.constant 1.000000e+00 : f32
    %25 = vector.broadcast %cst_20 : f32 to vector<8x384xf32>
    %26 = arith.addf %25, %24 : vector<8x384xf32>
    %27 = arith.divf %25, %26 : vector<8x384xf32>
    %28 = vector.extract_strided_slice %27 {offsets = [0, 0], sizes = [8, 128], strides = [1, 1]} : vector<8x384xf32> to vector<8x128xf32>
    %29 = vector.extract_strided_slice %27 {offsets = [0, 128], sizes = [8, 128], strides = [1, 1]} : vector<8x384xf32> to vector<8x128xf32>
    %30 = vector.extract_strided_slice %27 {offsets = [0, 256], sizes = [8, 128], strides = [1, 1]} : vector<8x384xf32> to vector<8x128xf32>
    %31 = vector.extract_strided_slice %21 {offsets = [0, 384], sizes = [8, 128], strides = [1, 1]} : vector<8x512xf32> to vector<8x128xf32>
    %32 = math.tanh %31 : vector<8x128xf32>
    %33 = arith.mulf %29, %15 : vector<8x128xf32>
    %34 = arith.mulf %28, %32 : vector<8x128xf32>
    %35 = arith.addf %33, %34 : vector<8x128xf32>
    %36 = math.tanh %35 : vector<8x128xf32>
    %37 = arith.mulf %30, %36 : vector<8x128xf32>
    %c0_21 = arith.constant 0 : index
    %c0_22 = arith.constant 0 : index
    %38 = vector.load %arg9[%c0_21, %c0_22] : memref<8x128xf32, #tpu.memory_space<vmem>>, vector<8x128xf32>
    tpu.vector_store %arg9[%c0_21, %c0_22], %35 {strides = array<i32>} : memref<8x128xf32, #tpu.memory_space<vmem>>, vector<8x128xf32>,
    %c0_23 = arith.constant 0 : index
    %c0_24 = arith.constant 0 : index
    %39 = vector.load %arg8[%c0_23, %c0_24] : memref<8x128xf32, #tpu.memory_space<vmem>>, vector<8x128xf32>
    tpu.vector_store %arg8[%c0_23, %c0_24], %37 {strides = array<i32>} : memref<8x128xf32, #tpu.memory_space<vmem>>, vector<8x128xf32>,
    %40 = arith.index_cast %c0_i32_12 : i32 to index
    %c0_25 = arith.constant 0 : index
    %c0_26 = arith.constant 0 : index
    %41 = vector.load %arg6[%40, %c0_25, %c0_26] : memref<8x8x128xf32, #tpu.memory_space<vmem>>, vector<1x8x128xf32>
    %42 = vector.shape_cast %41 : vector<1x8x128xf32> to vector<8x128xf32>
    %43 = vector.shape_cast %37 : vector<8x128xf32> to vector<1x8x128xf32>
    tpu.vector_store %arg6[%40, %c0_25, %c0_26], %43 {strides = array<i32>} : memref<8x8x128xf32, #tpu.memory_space<vmem>>, vector<1x8x128xf32>,
    %c1_i32 = arith.constant 1 : i32
    %c0_27 = arith.constant 0 : index
    %c0_28 = arith.constant 0 : index
    %44 = vector.load %arg8[%c0_27, %c0_28] : memref<8x128xf32, #tpu.memory_space<vmem>>, vector<8x128xf32>
    %c0_29 = arith.constant 0 : index
    %c0_30 = arith.constant 0 : index
    %45 = vector.load %arg9[%c0_29, %c0_30] : memref<8x128xf32, #tpu.memory_space<vmem>>, vector<8x128xf32>
    %46 = arith.index_cast %c1_i32 : i32 to index
    %c0_31 = arith.constant 0 : index
    %c0_32 = arith.constant 0 : index
    %47 = vector.load %arg7[%46, %c0_31, %c0_32] : memref<8x8x512xf32, #tpu.memory_space<vmem>>, vector<1x8x512xf32>
    %48 = vector.shape_cast %47 : vector<1x8x512xf32> to vector<8x512xf32>
    %49 = arith.truncf %44 : vector<8x128xf32> to vector<8x128xbf16>
    %cst_33 = arith.constant dense<0.000000e+00> : vector<8x512xf32>
    %50 = tpu.matmul %49, %13, %cst_33 {dimension_numbers = #tpu.dot_dimension_numbers<[1], [0], [0], [1], [0, 0, 1, 1], [], []>} : vector<8x128xbf16>, vector<128x512xbf16>, vector<8x512xf32> -> vector<8x512xf32>
    %51 = arith.addf %48, %50 : vector<8x512xf32>
    %52 = vector.extract_strided_slice %51 {offsets = [0, 0], sizes = [8, 384], strides = [1, 1]} : vector<8x512xf32> to vector<8x384xf32>
    %53 = arith.negf %52 : vector<8x384xf32>
    %54 = math.exp %53 : vector<8x384xf32>
    %cst_34 = arith.constant 1.000000e+00 : f32
    %55 = vector.broadcast %cst_34 : f32 to vector<8x384xf32>
    %56 = arith.addf %55, %54 : vector<8x384xf32>
    %57 = arith.divf %55, %56 : vector<8x384xf32>
    %58 = vector.extract_strided_slice %57 {offsets = [0, 0], sizes = [8, 128], strides = [1, 1]} : vector<8x384xf32> to vector<8x128xf32>
    %59 = vector.extract_strided_slice %57 {offsets = [0, 128], sizes = [8, 128], strides = [1, 1]} : vector<8x384xf32> to vector<8x128xf32>
    %60 = vector.extract_strided_slice %57 {offsets = [0, 256], sizes = [8, 128], strides = [1, 1]} : vector<8x384xf32> to vector<8x128xf32>
    %61 = vector.extract_strided_slice %51 {offsets = [0, 384], sizes = [8, 128], strides = [1, 1]} : vector<8x512xf32> to vector<8x128xf32>
    %62 = math.tanh %61 : vector<8x128xf32>
    %63 = arith.mulf %59, %45 : vector<8x128xf32>
    %64 = arith.mulf %58, %62 : vector<8x128xf32>
    %65 = arith.addf %63, %64 : vector<8x128xf32>
    %66 = math.tanh %65 : vector<8x128xf32>
    %67 = arith.mulf %60, %66 : vector<8x128xf32>
    %c0_35 = arith.constant 0 : index
    %c0_36 = arith.constant 0 : index
    %68 = vector.load %arg9[%c0_35, %c0_36] : memref<8x128xf32, #tpu.memory_space<vmem>>, vector<8x128xf32>
    tpu.vector_store %arg9[%c0_35, %c0_36], %65 {strides = array<i32>} : memref<8x128xf32, #tpu.memory_space<vmem>>, vector<8x128xf32>,
    %c0_37 = arith.constant 0 : index
    %c0_38 = arith.constant 0 : index
    %69 = vector.load %arg8[%c0_37, %c0_38] : memref<8x128xf32, #tpu.memory_space<vmem>>, vector<8x128xf32>
    tpu.vector_store %arg8[%c0_37, %c0_38], %67 {strides = array<i32>} : memref<8x128xf32, #tpu.memory_space<vmem>>, vector<8x128xf32>,
    %70 = arith.index_cast %c1_i32 : i32 to index
    %c0_39 = arith.constant 0 : index
    %c0_40 = arith.constant 0 : index
    %71 = vector.load %arg6[%70, %c0_39, %c0_40] : memref<8x8x128xf32, #tpu.memory_space<vmem>>, vector<1x8x128xf32>
    %72 = vector.shape_cast %71 : vector<1x8x128xf32> to vector<8x128xf32>
    %73 = vector.shape_cast %67 : vector<8x128xf32> to vector<1x8x128xf32>
    tpu.vector_store %arg6[%70, %c0_39, %c0_40], %73 {strides = array<i32>} : memref<8x8x128xf32, #tpu.memory_space<vmem>>, vector<1x8x128xf32>,
    %c2_i32 = arith.constant 2 : i32
    %c0_41 = arith.constant 0 : index
    %c0_42 = arith.constant 0 : index
    %74 = vector.load %arg8[%c0_41, %c0_42] : memref<8x128xf32, #tpu.memory_space<vmem>>, vector<8x128xf32>
    %c0_43 = arith.constant 0 : index
    %c0_44 = arith.constant 0 : index
    %75 = vector.load %arg9[%c0_43, %c0_44] : memref<8x128xf32, #tpu.memory_space<vmem>>, vector<8x128xf32>
    %76 = arith.index_cast %c2_i32 : i32 to index
    %c0_45 = arith.constant 0 : index
    %c0_46 = arith.constant 0 : index
    %77 = vector.load %arg7[%76, %c0_45, %c0_46] : memref<8x8x512xf32, #tpu.memory_space<vmem>>, vector<1x8x512xf32>
    %78 = vector.shape_cast %77 : vector<1x8x512xf32> to vector<8x512xf32>
    %79 = arith.truncf %74 : vector<8x128xf32> to vector<8x128xbf16>
    %cst_47 = arith.constant dense<0.000000e+00> : vector<8x512xf32>
    %80 = tpu.matmul %79, %13, %cst_47 {dimension_numbers = #tpu.dot_dimension_numbers<[1], [0], [0], [1], [0, 0, 1, 1], [], []>} : vector<8x128xbf16>, vector<128x512xbf16>, vector<8x512xf32> -> vector<8x512xf32>
    %81 = arith.addf %78, %80 : vector<8x512xf32>
    %82 = vector.extract_strided_slice %81 {offsets = [0, 0], sizes = [8, 384], strides = [1, 1]} : vector<8x512xf32> to vector<8x384xf32>
    %83 = arith.negf %82 : vector<8x384xf32>
    %84 = math.exp %83 : vector<8x384xf32>
    %cst_48 = arith.constant 1.000000e+00 : f32
    %85 = vector.broadcast %cst_48 : f32 to vector<8x384xf32>
    %86 = arith.addf %85, %84 : vector<8x384xf32>
    %87 = arith.divf %85, %86 : vector<8x384xf32>
    %88 = vector.extract_strided_slice %87 {offsets = [0, 0], sizes = [8, 128], strides = [1, 1]} : vector<8x384xf32> to vector<8x128xf32>
    %89 = vector.extract_strided_slice %87 {offsets = [0, 128], sizes = [8, 128], strides = [1, 1]} : vector<8x384xf32> to vector<8x128xf32>
    %90 = vector.extract_strided_slice %87 {offsets = [0, 256], sizes = [8, 128], strides = [1, 1]} : vector<8x384xf32> to vector<8x128xf32>
    %91 = vector.extract_strided_slice %81 {offsets = [0, 384], sizes = [8, 128], strides = [1, 1]} : vector<8x512xf32> to vector<8x128xf32>
    %92 = math.tanh %91 : vector<8x128xf32>
    %93 = arith.mulf %89, %75 : vector<8x128xf32>
    %94 = arith.mulf %88, %92 : vector<8x128xf32>
    %95 = arith.addf %93, %94 : vector<8x128xf32>
    %96 = math.tanh %95 : vector<8x128xf32>
    %97 = arith.mulf %90, %96 : vector<8x128xf32>
    %c0_49 = arith.constant 0 : index
    %c0_50 = arith.constant 0 : index
    %98 = vector.load %arg9[%c0_49, %c0_50] : memref<8x128xf32, #tpu.memory_space<vmem>>, vector<8x128xf32>
    tpu.vector_store %arg9[%c0_49, %c0_50], %95 {strides = array<i32>} : memref<8x128xf32, #tpu.memory_space<vmem>>, vector<8x128xf32>,
    %c0_51 = arith.constant 0 : index
    %c0_52 = arith.constant 0 : index
    %99 = vector.load %arg8[%c0_51, %c0_52] : memref<8x128xf32, #tpu.memory_space<vmem>>, vector<8x128xf32>
    tpu.vector_store %arg8[%c0_51, %c0_52], %97 {strides = array<i32>} : memref<8x128xf32, #tpu.memory_space<vmem>>, vector<8x128xf32>,
    %100 = arith.index_cast %c2_i32 : i32 to index
    %c0_53 = arith.constant 0 : index
    %c0_54 = arith.constant 0 : index
    %101 = vector.load %arg6[%100, %c0_53, %c0_54] : memref<8x8x128xf32, #tpu.memory_space<vmem>>, vector<1x8x128xf32>
    %102 = vector.shape_cast %101 : vector<1x8x128xf32> to vector<8x128xf32>
    %103 = vector.shape_cast %97 : vector<8x128xf32> to vector<1x8x128xf32>
    tpu.vector_store %arg6[%100, %c0_53, %c0_54], %103 {strides = array<i32>} : memref<8x8x128xf32, #tpu.memory_space<vmem>>, vector<1x8x128xf32>,
    %c3_i32 = arith.constant 3 : i32
    %c0_55 = arith.constant 0 : index
    %c0_56 = arith.constant 0 : index
    %104 = vector.load %arg8[%c0_55, %c0_56] : memref<8x128xf32, #tpu.memory_space<vmem>>, vector<8x128xf32>
    %c0_57 = arith.constant 0 : index
    %c0_58 = arith.constant 0 : index
    %105 = vector.load %arg9[%c0_57, %c0_58] : memref<8x128xf32, #tpu.memory_space<vmem>>, vector<8x128xf32>
    %106 = arith.index_cast %c3_i32 : i32 to index
    %c0_59 = arith.constant 0 : index
    %c0_60 = arith.constant 0 : index
    %107 = vector.load %arg7[%106, %c0_59, %c0_60] : memref<8x8x512xf32, #tpu.memory_space<vmem>>, vector<1x8x512xf32>
    %108 = vector.shape_cast %107 : vector<1x8x512xf32> to vector<8x512xf32>
    %109 = arith.truncf %104 : vector<8x128xf32> to vector<8x128xbf16>
    %cst_61 = arith.constant dense<0.000000e+00> : vector<8x512xf32>
    %110 = tpu.matmul %109, %13, %cst_61 {dimension_numbers = #tpu.dot_dimension_numbers<[1], [0], [0], [1], [0, 0, 1, 1], [], []>} : vector<8x128xbf16>, vector<128x512xbf16>, vector<8x512xf32> -> vector<8x512xf32>
    %111 = arith.addf %108, %110 : vector<8x512xf32>
    %112 = vector.extract_strided_slice %111 {offsets = [0, 0], sizes = [8, 384], strides = [1, 1]} : vector<8x512xf32> to vector<8x384xf32>
    %113 = arith.negf %112 : vector<8x384xf32>
    %114 = math.exp %113 : vector<8x384xf32>
    %cst_62 = arith.constant 1.000000e+00 : f32
    %115 = vector.broadcast %cst_62 : f32 to vector<8x384xf32>
    %116 = arith.addf %115, %114 : vector<8x384xf32>
    %117 = arith.divf %115, %116 : vector<8x384xf32>
    %118 = vector.extract_strided_slice %117 {offsets = [0, 0], sizes = [8, 128], strides = [1, 1]} : vector<8x384xf32> to vector<8x128xf32>
    %119 = vector.extract_strided_slice %117 {offsets = [0, 128], sizes = [8, 128], strides = [1, 1]} : vector<8x384xf32> to vector<8x128xf32>
    %120 = vector.extract_strided_slice %117 {offsets = [0, 256], sizes = [8, 128], strides = [1, 1]} : vector<8x384xf32> to vector<8x128xf32>
    %121 = vector.extract_strided_slice %111 {offsets = [0, 384], sizes = [8, 128], strides = [1, 1]} : vector<8x512xf32> to vector<8x128xf32>
    %122 = math.tanh %121 : vector<8x128xf32>
    %123 = arith.mulf %119, %105 : vector<8x128xf32>
    %124 = arith.mulf %118, %122 : vector<8x128xf32>
    %125 = arith.addf %123, %124 : vector<8x128xf32>
    %126 = math.tanh %125 : vector<8x128xf32>
    %127 = arith.mulf %120, %126 : vector<8x128xf32>
    %c0_63 = arith.constant 0 : index
    %c0_64 = arith.constant 0 : index
    %128 = vector.load %arg9[%c0_63, %c0_64] : memref<8x128xf32, #tpu.memory_space<vmem>>, vector<8x128xf32>
    tpu.vector_store %arg9[%c0_63, %c0_64], %125 {strides = array<i32>} : memref<8x128xf32, #tpu.memory_space<vmem>>, vector<8x128xf32>,
    %c0_65 = arith.constant 0 : index
    %c0_66 = arith.constant 0 : index
    %129 = vector.load %arg8[%c0_65, %c0_66] : memref<8x128xf32, #tpu.memory_space<vmem>>, vector<8x128xf32>
    tpu.vector_store %arg8[%c0_65, %c0_66], %127 {strides = array<i32>} : memref<8x128xf32, #tpu.memory_space<vmem>>, vector<8x128xf32>,
    %130 = arith.index_cast %c3_i32 : i32 to index
    %c0_67 = arith.constant 0 : index
    %c0_68 = arith.constant 0 : index
    %131 = vector.load %arg6[%130, %c0_67, %c0_68] : memref<8x8x128xf32, #tpu.memory_space<vmem>>, vector<1x8x128xf32>
    %132 = vector.shape_cast %131 : vector<1x8x128xf32> to vector<8x128xf32>
    %133 = vector.shape_cast %127 : vector<8x128xf32> to vector<1x8x128xf32>
    tpu.vector_store %arg6[%130, %c0_67, %c0_68], %133 {strides = array<i32>} : memref<8x8x128xf32, #tpu.memory_space<vmem>>, vector<1x8x128xf32>,
    %c4_i32 = arith.constant 4 : i32
    %c0_69 = arith.constant 0 : index
    %c0_70 = arith.constant 0 : index
    %134 = vector.load %arg8[%c0_69, %c0_70] : memref<8x128xf32, #tpu.memory_space<vmem>>, vector<8x128xf32>
    %c0_71 = arith.constant 0 : index
    %c0_72 = arith.constant 0 : index
    %135 = vector.load %arg9[%c0_71, %c0_72] : memref<8x128xf32, #tpu.memory_space<vmem>>, vector<8x128xf32>
    %136 = arith.index_cast %c4_i32 : i32 to index
    %c0_73 = arith.constant 0 : index
    %c0_74 = arith.constant 0 : index
    %137 = vector.load %arg7[%136, %c0_73, %c0_74] : memref<8x8x512xf32, #tpu.memory_space<vmem>>, vector<1x8x512xf32>
    %138 = vector.shape_cast %137 : vector<1x8x512xf32> to vector<8x512xf32>
    %139 = arith.truncf %134 : vector<8x128xf32> to vector<8x128xbf16>
    %cst_75 = arith.constant dense<0.000000e+00> : vector<8x512xf32>
    %140 = tpu.matmul %139, %13, %cst_75 {dimension_numbers = #tpu.dot_dimension_numbers<[1], [0], [0], [1], [0, 0, 1, 1], [], []>} : vector<8x128xbf16>, vector<128x512xbf16>, vector<8x512xf32> -> vector<8x512xf32>
    %141 = arith.addf %138, %140 : vector<8x512xf32>
    %142 = vector.extract_strided_slice %141 {offsets = [0, 0], sizes = [8, 384], strides = [1, 1]} : vector<8x512xf32> to vector<8x384xf32>
    %143 = arith.negf %142 : vector<8x384xf32>
    %144 = math.exp %143 : vector<8x384xf32>
    %cst_76 = arith.constant 1.000000e+00 : f32
    %145 = vector.broadcast %cst_76 : f32 to vector<8x384xf32>
    %146 = arith.addf %145, %144 : vector<8x384xf32>
    %147 = arith.divf %145, %146 : vector<8x384xf32>
    %148 = vector.extract_strided_slice %147 {offsets = [0, 0], sizes = [8, 128], strides = [1, 1]} : vector<8x384xf32> to vector<8x128xf32>
    %149 = vector.extract_strided_slice %147 {offsets = [0, 128], sizes = [8, 128], strides = [1, 1]} : vector<8x384xf32> to vector<8x128xf32>
    %150 = vector.extract_strided_slice %147 {offsets = [0, 256], sizes = [8, 128], strides = [1, 1]} : vector<8x384xf32> to vector<8x128xf32>
    %151 = vector.extract_strided_slice %141 {offsets = [0, 384], sizes = [8, 128], strides = [1, 1]} : vector<8x512xf32> to vector<8x128xf32>
    %152 = math.tanh %151 : vector<8x128xf32>
    %153 = arith.mulf %149, %135 : vector<8x128xf32>
    %154 = arith.mulf %148, %152 : vector<8x128xf32>
    %155 = arith.addf %153, %154 : vector<8x128xf32>
    %156 = math.tanh %155 : vector<8x128xf32>
    %157 = arith.mulf %150, %156 : vector<8x128xf32>
    %c0_77 = arith.constant 0 : index
    %c0_78 = arith.constant 0 : index
    %158 = vector.load %arg9[%c0_77, %c0_78] : memref<8x128xf32, #tpu.memory_space<vmem>>, vector<8x128xf32>
    tpu.vector_store %arg9[%c0_77, %c0_78], %155 {strides = array<i32>} : memref<8x128xf32, #tpu.memory_space<vmem>>, vector<8x128xf32>,
    %c0_79 = arith.constant 0 : index
    %c0_80 = arith.constant 0 : index
    %159 = vector.load %arg8[%c0_79, %c0_80] : memref<8x128xf32, #tpu.memory_space<vmem>>, vector<8x128xf32>
    tpu.vector_store %arg8[%c0_79, %c0_80], %157 {strides = array<i32>} : memref<8x128xf32, #tpu.memory_space<vmem>>, vector<8x128xf32>,
    %160 = arith.index_cast %c4_i32 : i32 to index
    %c0_81 = arith.constant 0 : index
    %c0_82 = arith.constant 0 : index
    %161 = vector.load %arg6[%160, %c0_81, %c0_82] : memref<8x8x128xf32, #tpu.memory_space<vmem>>, vector<1x8x128xf32>
    %162 = vector.shape_cast %161 : vector<1x8x128xf32> to vector<8x128xf32>
    %163 = vector.shape_cast %157 : vector<8x128xf32> to vector<1x8x128xf32>
    tpu.vector_store %arg6[%160, %c0_81, %c0_82], %163 {strides = array<i32>} : memref<8x8x128xf32, #tpu.memory_space<vmem>>, vector<1x8x128xf32>,
    %c5_i32 = arith.constant 5 : i32
    %c0_83 = arith.constant 0 : index
    %c0_84 = arith.constant 0 : index
    %164 = vector.load %arg8[%c0_83, %c0_84] : memref<8x128xf32, #tpu.memory_space<vmem>>, vector<8x128xf32>
    %c0_85 = arith.constant 0 : index
    %c0_86 = arith.constant 0 : index
    %165 = vector.load %arg9[%c0_85, %c0_86] : memref<8x128xf32, #tpu.memory_space<vmem>>, vector<8x128xf32>
    %166 = arith.index_cast %c5_i32 : i32 to index
    %c0_87 = arith.constant 0 : index
    %c0_88 = arith.constant 0 : index
    %167 = vector.load %arg7[%166, %c0_87, %c0_88] : memref<8x8x512xf32, #tpu.memory_space<vmem>>, vector<1x8x512xf32>
    %168 = vector.shape_cast %167 : vector<1x8x512xf32> to vector<8x512xf32>
    %169 = arith.truncf %164 : vector<8x128xf32> to vector<8x128xbf16>
    %cst_89 = arith.constant dense<0.000000e+00> : vector<8x512xf32>
    %170 = tpu.matmul %169, %13, %cst_89 {dimension_numbers = #tpu.dot_dimension_numbers<[1], [0], [0], [1], [0, 0, 1, 1], [], []>} : vector<8x128xbf16>, vector<128x512xbf16>, vector<8x512xf32> -> vector<8x512xf32>
    %171 = arith.addf %168, %170 : vector<8x512xf32>
    %172 = vector.extract_strided_slice %171 {offsets = [0, 0], sizes = [8, 384], strides = [1, 1]} : vector<8x512xf32> to vector<8x384xf32>
    %173 = arith.negf %172 : vector<8x384xf32>
    %174 = math.exp %173 : vector<8x384xf32>
    %cst_90 = arith.constant 1.000000e+00 : f32
    %175 = vector.broadcast %cst_90 : f32 to vector<8x384xf32>
    %176 = arith.addf %175, %174 : vector<8x384xf32>
    %177 = arith.divf %175, %176 : vector<8x384xf32>
    %178 = vector.extract_strided_slice %177 {offsets = [0, 0], sizes = [8, 128], strides = [1, 1]} : vector<8x384xf32> to vector<8x128xf32>
    %179 = vector.extract_strided_slice %177 {offsets = [0, 128], sizes = [8, 128], strides = [1, 1]} : vector<8x384xf32> to vector<8x128xf32>
    %180 = vector.extract_strided_slice %177 {offsets = [0, 256], sizes = [8, 128], strides = [1, 1]} : vector<8x384xf32> to vector<8x128xf32>
    %181 = vector.extract_strided_slice %171 {offsets = [0, 384], sizes = [8, 128], strides = [1, 1]} : vector<8x512xf32> to vector<8x128xf32>
    %182 = math.tanh %181 : vector<8x128xf32>
    %183 = arith.mulf %179, %165 : vector<8x128xf32>
    %184 = arith.mulf %178, %182 : vector<8x128xf32>
    %185 = arith.addf %183, %184 : vector<8x128xf32>
    %186 = math.tanh %185 : vector<8x128xf32>
    %187 = arith.mulf %180, %186 : vector<8x128xf32>
    %c0_91 = arith.constant 0 : index
    %c0_92 = arith.constant 0 : index
    %188 = vector.load %arg9[%c0_91, %c0_92] : memref<8x128xf32, #tpu.memory_space<vmem>>, vector<8x128xf32>
    tpu.vector_store %arg9[%c0_91, %c0_92], %185 {strides = array<i32>} : memref<8x128xf32, #tpu.memory_space<vmem>>, vector<8x128xf32>,
    %c0_93 = arith.constant 0 : index
    %c0_94 = arith.constant 0 : index
    %189 = vector.load %arg8[%c0_93, %c0_94] : memref<8x128xf32, #tpu.memory_space<vmem>>, vector<8x128xf32>
    tpu.vector_store %arg8[%c0_93, %c0_94], %187 {strides = array<i32>} : memref<8x128xf32, #tpu.memory_space<vmem>>, vector<8x128xf32>,
    %190 = arith.index_cast %c5_i32 : i32 to index
    %c0_95 = arith.constant 0 : index
    %c0_96 = arith.constant 0 : index
    %191 = vector.load %arg6[%190, %c0_95, %c0_96] : memref<8x8x128xf32, #tpu.memory_space<vmem>>, vector<1x8x128xf32>
    %192 = vector.shape_cast %191 : vector<1x8x128xf32> to vector<8x128xf32>
    %193 = vector.shape_cast %187 : vector<8x128xf32> to vector<1x8x128xf32>
    tpu.vector_store %arg6[%190, %c0_95, %c0_96], %193 {strides = array<i32>} : memref<8x8x128xf32, #tpu.memory_space<vmem>>, vector<1x8x128xf32>,
    %c6_i32 = arith.constant 6 : i32
    %c0_97 = arith.constant 0 : index
    %c0_98 = arith.constant 0 : index
    %194 = vector.load %arg8[%c0_97, %c0_98] : memref<8x128xf32, #tpu.memory_space<vmem>>, vector<8x128xf32>
    %c0_99 = arith.constant 0 : index
    %c0_100 = arith.constant 0 : index
    %195 = vector.load %arg9[%c0_99, %c0_100] : memref<8x128xf32, #tpu.memory_space<vmem>>, vector<8x128xf32>
    %196 = arith.index_cast %c6_i32 : i32 to index
    %c0_101 = arith.constant 0 : index
    %c0_102 = arith.constant 0 : index
    %197 = vector.load %arg7[%196, %c0_101, %c0_102] : memref<8x8x512xf32, #tpu.memory_space<vmem>>, vector<1x8x512xf32>
    %198 = vector.shape_cast %197 : vector<1x8x512xf32> to vector<8x512xf32>
    %199 = arith.truncf %194 : vector<8x128xf32> to vector<8x128xbf16>
    %cst_103 = arith.constant dense<0.000000e+00> : vector<8x512xf32>
    %200 = tpu.matmul %199, %13, %cst_103 {dimension_numbers = #tpu.dot_dimension_numbers<[1], [0], [0], [1], [0, 0, 1, 1], [], []>} : vector<8x128xbf16>, vector<128x512xbf16>, vector<8x512xf32> -> vector<8x512xf32>
    %201 = arith.addf %198, %200 : vector<8x512xf32>
    %202 = vector.extract_strided_slice %201 {offsets = [0, 0], sizes = [8, 384], strides = [1, 1]} : vector<8x512xf32> to vector<8x384xf32>
    %203 = arith.negf %202 : vector<8x384xf32>
    %204 = math.exp %203 : vector<8x384xf32>
    %cst_104 = arith.constant 1.000000e+00 : f32
    %205 = vector.broadcast %cst_104 : f32 to vector<8x384xf32>
    %206 = arith.addf %205, %204 : vector<8x384xf32>
    %207 = arith.divf %205, %206 : vector<8x384xf32>
    %208 = vector.extract_strided_slice %207 {offsets = [0, 0], sizes = [8, 128], strides = [1, 1]} : vector<8x384xf32> to vector<8x128xf32>
    %209 = vector.extract_strided_slice %207 {offsets = [0, 128], sizes = [8, 128], strides = [1, 1]} : vector<8x384xf32> to vector<8x128xf32>
    %210 = vector.extract_strided_slice %207 {offsets = [0, 256], sizes = [8, 128], strides = [1, 1]} : vector<8x384xf32> to vector<8x128xf32>
    %211 = vector.extract_strided_slice %201 {offsets = [0, 384], sizes = [8, 128], strides = [1, 1]} : vector<8x512xf32> to vector<8x128xf32>
    %212 = math.tanh %211 : vector<8x128xf32>
    %213 = arith.mulf %209, %195 : vector<8x128xf32>
    %214 = arith.mulf %208, %212 : vector<8x128xf32>
    %215 = arith.addf %213, %214 : vector<8x128xf32>
    %216 = math.tanh %215 : vector<8x128xf32>
    %217 = arith.mulf %210, %216 : vector<8x128xf32>
    %c0_105 = arith.constant 0 : index
    %c0_106 = arith.constant 0 : index
    %218 = vector.load %arg9[%c0_105, %c0_106] : memref<8x128xf32, #tpu.memory_space<vmem>>, vector<8x128xf32>
    tpu.vector_store %arg9[%c0_105, %c0_106], %215 {strides = array<i32>} : memref<8x128xf32, #tpu.memory_space<vmem>>, vector<8x128xf32>,
    %c0_107 = arith.constant 0 : index
    %c0_108 = arith.constant 0 : index
    %219 = vector.load %arg8[%c0_107, %c0_108] : memref<8x128xf32, #tpu.memory_space<vmem>>, vector<8x128xf32>
    tpu.vector_store %arg8[%c0_107, %c0_108], %217 {strides = array<i32>} : memref<8x128xf32, #tpu.memory_space<vmem>>, vector<8x128xf32>,
    %220 = arith.index_cast %c6_i32 : i32 to index
    %c0_109 = arith.constant 0 : index
    %c0_110 = arith.constant 0 : index
    %221 = vector.load %arg6[%220, %c0_109, %c0_110] : memref<8x8x128xf32, #tpu.memory_space<vmem>>, vector<1x8x128xf32>
    %222 = vector.shape_cast %221 : vector<1x8x128xf32> to vector<8x128xf32>
    %223 = vector.shape_cast %217 : vector<8x128xf32> to vector<1x8x128xf32>
    tpu.vector_store %arg6[%220, %c0_109, %c0_110], %223 {strides = array<i32>} : memref<8x8x128xf32, #tpu.memory_space<vmem>>, vector<1x8x128xf32>,
    %c7_i32 = arith.constant 7 : i32
    %c0_111 = arith.constant 0 : index
    %c0_112 = arith.constant 0 : index
    %224 = vector.load %arg8[%c0_111, %c0_112] : memref<8x128xf32, #tpu.memory_space<vmem>>, vector<8x128xf32>
    %c0_113 = arith.constant 0 : index
    %c0_114 = arith.constant 0 : index
    %225 = vector.load %arg9[%c0_113, %c0_114] : memref<8x128xf32, #tpu.memory_space<vmem>>, vector<8x128xf32>
    %226 = arith.index_cast %c7_i32 : i32 to index
    %c0_115 = arith.constant 0 : index
    %c0_116 = arith.constant 0 : index
    %227 = vector.load %arg7[%226, %c0_115, %c0_116] : memref<8x8x512xf32, #tpu.memory_space<vmem>>, vector<1x8x512xf32>
    %228 = vector.shape_cast %227 : vector<1x8x512xf32> to vector<8x512xf32>
    %229 = arith.truncf %224 : vector<8x128xf32> to vector<8x128xbf16>
    %cst_117 = arith.constant dense<0.000000e+00> : vector<8x512xf32>
    %230 = tpu.matmul %229, %13, %cst_117 {dimension_numbers = #tpu.dot_dimension_numbers<[1], [0], [0], [1], [0, 0, 1, 1], [], []>} : vector<8x128xbf16>, vector<128x512xbf16>, vector<8x512xf32> -> vector<8x512xf32>
    %231 = arith.addf %228, %230 : vector<8x512xf32>
    %232 = vector.extract_strided_slice %231 {offsets = [0, 0], sizes = [8, 384], strides = [1, 1]} : vector<8x512xf32> to vector<8x384xf32>
    %233 = arith.negf %232 : vector<8x384xf32>
    %234 = math.exp %233 : vector<8x384xf32>
    %cst_118 = arith.constant 1.000000e+00 : f32
    %235 = vector.broadcast %cst_118 : f32 to vector<8x384xf32>
    %236 = arith.addf %235, %234 : vector<8x384xf32>
    %237 = arith.divf %235, %236 : vector<8x384xf32>
    %238 = vector.extract_strided_slice %237 {offsets = [0, 0], sizes = [8, 128], strides = [1, 1]} : vector<8x384xf32> to vector<8x128xf32>
    %239 = vector.extract_strided_slice %237 {offsets = [0, 128], sizes = [8, 128], strides = [1, 1]} : vector<8x384xf32> to vector<8x128xf32>
    %240 = vector.extract_strided_slice %237 {offsets = [0, 256], sizes = [8, 128], strides = [1, 1]} : vector<8x384xf32> to vector<8x128xf32>
    %241 = vector.extract_strided_slice %231 {offsets = [0, 384], sizes = [8, 128], strides = [1, 1]} : vector<8x512xf32> to vector<8x128xf32>
    %242 = math.tanh %241 : vector<8x128xf32>
    %243 = arith.mulf %239, %225 : vector<8x128xf32>
    %244 = arith.mulf %238, %242 : vector<8x128xf32>
    %245 = arith.addf %243, %244 : vector<8x128xf32>
    %246 = math.tanh %245 : vector<8x128xf32>
    %247 = arith.mulf %240, %246 : vector<8x128xf32>
    %c0_119 = arith.constant 0 : index
    %c0_120 = arith.constant 0 : index
    %248 = vector.load %arg9[%c0_119, %c0_120] : memref<8x128xf32, #tpu.memory_space<vmem>>, vector<8x128xf32>
    tpu.vector_store %arg9[%c0_119, %c0_120], %245 {strides = array<i32>} : memref<8x128xf32, #tpu.memory_space<vmem>>, vector<8x128xf32>,
    %c0_121 = arith.constant 0 : index
    %c0_122 = arith.constant 0 : index
    %249 = vector.load %arg8[%c0_121, %c0_122] : memref<8x128xf32, #tpu.memory_space<vmem>>, vector<8x128xf32>
    tpu.vector_store %arg8[%c0_121, %c0_122], %247 {strides = array<i32>} : memref<8x128xf32, #tpu.memory_space<vmem>>, vector<8x128xf32>,
    %250 = arith.index_cast %c7_i32 : i32 to index
    %c0_123 = arith.constant 0 : index
    %c0_124 = arith.constant 0 : index
    %251 = vector.load %arg6[%250, %c0_123, %c0_124] : memref<8x8x128xf32, #tpu.memory_space<vmem>>, vector<1x8x128xf32>
    %252 = vector.shape_cast %251 : vector<1x8x128xf32> to vector<8x128xf32>
    %253 = vector.shape_cast %247 : vector<8x128xf32> to vector<1x8x128xf32>
    tpu.vector_store %arg6[%250, %c0_123, %c0_124], %253 {strides = array<i32>} : memref<8x8x128xf32, #tpu.memory_space<vmem>>, vector<1x8x128xf32>,
    %c8_i32 = arith.constant 8 : i32
    return
  }
  func.func @transform_0(%arg0: i32, %arg1: i32) -> (i32, i32, i32) {
    %c0_i32 = arith.constant 0 : i32
    %c0_i32_0 = arith.constant 0 : i32
    return %arg1, %arg0, %c0_i32 : i32, i32, i32
  }
  func.func @transform_1(%arg0: i32, %arg1: i32) -> (i32, i32) {
    %c0_i32 = arith.constant 0 : i32
    %c0_i32_0 = arith.constant 0 : i32
    %c0_i32_1 = arith.constant 0 : i32
    return %c0_i32, %c0_i32_0 : i32, i32
  }
  func.func @transform_2(%arg0: i32, %arg1: i32) -> (i32, i32) {
    %c0_i32 = arith.constant 0 : i32
    %c0_i32_0 = arith.constant 0 : i32
    %c0_i32_1 = arith.constant 0 : i32
    return %c0_i32, %c0_i32_0 : i32, i32
  }
  func.func @transform_3(%arg0: i32, %arg1: i32) -> (i32, i32) {
    %c0_i32 = arith.constant 0 : i32
    %c0_i32_0 = arith.constant 0 : i32
    %c0_i32_1 = arith.constant 0 : i32
    return %c0_i32, %c0_i32_0 : i32, i32
  }
  func.func @transform_4(%arg0: i32, %arg1: i32) -> (i32, i32, i32) {
    %c0_i32 = arith.constant 0 : i32
    %c0_i32_0 = arith.constant 0 : i32
    return %arg1, %arg0, %c0_i32 : i32, i32, i32
  }
}

</mosaic_0001>

<llo_original>
// kernel: lrnn_forward.3
$region0: #{lrnn_forward.3}
  #allocation0 [shape = 'u32[]', space=smem, size = 0x4, offset = 0x4, fixed_abs, tag = 'smem constant byte address 0x4 - core index']
  #allocation1 [shape = 'u32[144,128]{1,0:T(1,128)}', space=vmem, size = 0x12000, scoped, tag = 'internal scratch']
  #allocation2 [shape = 'f32[8,8,512]{2,1,0:T(8,128)}', space=vmem, size = 0x20000, scoped, tag = 'scratch operand']
  #allocation3 [shape = 'f32[8,128]{1,0:T(8,128)}', space=vmem, size = 0x1000, scoped, tag = 'scratch operand']
  #allocation4 [shape = 'f32[8,128]{1,0:T(8,128)}', space=vmem, size = 0x1000, scoped, tag = 'scratch operand']
  %s0 = inlined_call_operand.vmem [shape: f32[8,8,128], index: 0, kind: input, shape index: {}]
  %s1 = inlined_call_operand.vmem [shape: bf16[128,512], index: 1, kind: input, shape index: {}]
  %s2 = inlined_call_operand.vmem [shape: bf16[128,512], index: 2, kind: input, shape index: {}]
  %s3 = inlined_call_operand.vmem [shape: f32[1,512], index: 3, kind: input, shape index: {}]
  %s4 = inlined_call_operand.vmem [shape: f32[8,8,128], index: 4, kind: output, shape index: {}]
  %s5 = sld [smem:[#allocation0]]
  $region30: #{lrnn_forward.3} parent=0
    _
  %s7 = ssub.s32 1, %s5
  %s8 = scalar_select 0, %s7, %s5
  // Predicated region
  $region2: #{lrnn_forward.3} parent=0 // pred_check
    _
  $region3: #{lrnn_forward.3} parent=0 // pred_check_branch
    %10 = sbr.rel (0) target = $region5
  $region4: #{lrnn_forward.3} parent=0 // pred_region
    _
  $region5: #{lrnn_forward.3} parent=0 // pred_fallthru
    _
  // Predicated region
  $region6: #{lrnn_forward.3} parent=0 // pred_check
    _
  $region7: #{lrnn_forward.3} parent=0 // pred_check_branch
    %12 = sbr.rel (0) target = $region9
  $region8: #{lrnn_forward.3} parent=0 // pred_region
    _
  $region9: #{lrnn_forward.3} parent=0 // pred_fallthru
    _
  // Predicated region
  $region10: #{lrnn_forward.3} parent=0 // pred_check
    _
  $region11: #{lrnn_forward.3} parent=0 // pred_check_branch
    %14 = sbr.rel (0) target = $region13
  $region12: #{lrnn_forward.3} parent=0 // pred_region
    _
  $region13: #{lrnn_forward.3} parent=0 // pred_fallthru
    _
  // Predicated region
  $region14: #{lrnn_forward.3} parent=0 // pred_check
    _
  $region15: #{lrnn_forward.3} parent=0 // pred_check_branch
    %16 = sbr.rel (0) target = $region17
  $region16: #{lrnn_forward.3} parent=0 // pred_region
    _
  $region17: #{lrnn_forward.3} parent=0 // pred_fallthru
    _
  %p18 = scmp.eq.s32.totalorder 0, 0
  // Predicated region
  $region18: #{lrnn_forward.3} parent=0 // pred_check
    %p19 = pneg %p18
  $region19: #{lrnn_forward.3} parent=0 // pred_check_branch
    %21 = sbr.rel (%p19) target = $region21
  $region20: #{lrnn_forward.3} parent=0 // pred_region
    %22 = vst [vmem:[#allocation3] sm:$0xff] 0.0
    %23 = vst [vmem:[#allocation4] sm:$0xff] 0.0
  $region21: #{lrnn_forward.3} parent=0 // pred_fallthru
    _
  %v24 = vld [vmem:[%s1] sm:$0xff]
  %v25 = vld [vmem:[%s1 + $0x8] sm:$0xff]
  %v26 = vld [vmem:[%s1 + $0x10] sm:$0xff]
  %v27 = vld [vmem:[%s1 + $0x18] sm:$0xff]
  %v28 = vld [vmem:[%s1 + $0x20] sm:$0xff]
  %v29 = vld [vmem:[%s1 + $0x28] sm:$0xff]
  %v30 = vld [vmem:[%s1 + $0x30] sm:$0xff]
  %v31 = vld [vmem:[%s1 + $0x38] sm:$0xff]
  %v32 = vld [vmem:[%s1 + $0x40] sm:$0xff]
  %v33 = vld [vmem:[%s1 + $0x48] sm:$0xff]
  %v34 = vld [vmem:[%s1 + $0x50] sm:$0xff]
  %v35 = vld [vmem:[%s1 + $0x58] sm:$0xff]
  %v36 = vld [vmem:[%s1 + $0x60] sm:$0xff]
  %v37 = vld [vmem:[%s1 + $0x68] sm:$0xff]
  %v38 = vld [vmem:[%s1 + $0x70] sm:$0xff]
  %v39 = vld [vmem:[%s1 + $0x78] sm:$0xff]
  %v40 = vld [vmem:[%s1 + $0x80] sm:$0xff]
  %v41 = vld [vmem:[%s1 + $0x88] sm:$0xff]
  %v42 = vld [vmem:[%s1 + $0x90] sm:$0xff]
  %v43 = vld [vmem:[%s1 + $0x98] sm:$0xff]
  %v44 = vld [vmem:[%s1 + $0xa0] sm:$0xff]
  %v45 = vld [vmem:[%s1 + $0xa8] sm:$0xff]
  %v46 = vld [vmem:[%s1 + $0xb0] sm:$0xff]
  %v47 = vld [vmem:[%s1 + $0xb8] sm:$0xff]
  %v48 = vld [vmem:[%s1 + $0xc0] sm:$0xff]
  %v49 = vld [vmem:[%s1 + $0xc8] sm:$0xff]
  %v50 = vld [vmem:[%s1 + $0xd0] sm:$0xff]
  %v51 = vld [vmem:[%s1 + $0xd8] sm:$0xff]
  %v52 = vld [vmem:[%s1 + $0xe0] sm:$0xff]
  %v53 = vld [vmem:[%s1 + $0xe8] sm:$0xff]
  %v54 = vld [vmem:[%s1 + $0xf0] sm:$0xff]
  %v55 = vld [vmem:[%s1 + $0xf8] sm:$0xff]
  %v56 = vld [vmem:[%s3] sm:$0xf]
  %v57 = vld [vmem:[%s0] sm:$0xff]
  %v58 = vld [vmem:[%s0 + $0x8] sm:$0xff]
  %v59 = vld [vmem:[%s0 + $0x10] sm:$0xff]
  %v60 = vld [vmem:[%s0 + $0x18] sm:$0xff]
  %v61 = vld [vmem:[%s0 + $0x20] sm:$0xff]
  %v62 = vld [vmem:[%s0 + $0x28] sm:$0xff]
  %v63 = vld [vmem:[%s0 + $0x30] sm:$0xff]
  %v64 = vld [vmem:[%s0 + $0x38] sm:$0xff]
  %v65 = vpack.c.bf16 %v58, %v57
  %v66 = vpack.c.bf16 %v60, %v59
  %v67 = vpack.c.bf16 %v62, %v61
  %v68 = vpack.c.bf16 %v64, %v63
  %v70 = vlaneseq
  %v71 = vshrl.u32 %v70, 7
  %v72 = vsub.s32 0, %v71
  %v73 = vrot.slane %v56, %v72
  %v74 = vlaneseq
  %v75 = vshrl.u32 %v74, 7
  %v76 = vsub.s32 1, %v75
  %v77 = vrot.slane %v56, %v76
  %v78 = vlaneseq
  %v79 = vshrl.u32 %v78, 7
  %v80 = vsub.s32 2, %v79
  %v81 = vrot.slane %v56, %v80
  %v82 = vlaneseq
  %v83 = vshrl.u32 %v82, 7
  %v84 = vsub.s32 3, %v83
  %v85 = vrot.slane %v56, %v84
  %v122 = vunpack.c.l.b16 %v24
  %v123 = vunpack.c.h.b16 %v24
  %v124 = vunpack.c.l.b16 %v25
  %v125 = vunpack.c.h.b16 %v25
  %v126 = vunpack.c.l.b16 %v26
  %v127 = vunpack.c.h.b16 %v26
  %v128 = vunpack.c.l.b16 %v27
  %v129 = vunpack.c.h.b16 %v27
  %v130 = vunpack.c.l.b16 %v28
  %v131 = vunpack.c.h.b16 %v28
  %v132 = vunpack.c.l.b16 %v29
  %v133 = vunpack.c.h.b16 %v29
  %v134 = vunpack.c.l.b16 %v30
  %v135 = vunpack.c.h.b16 %v30
  %v136 = vunpack.c.l.b16 %v31
  %v137 = vunpack.c.h.b16 %v31
  %v138 = vunpack.c.l.b16 %v32
  %v139 = vunpack.c.h.b16 %v32
  %v140 = vunpack.c.l.b16 %v33
  %v141 = vunpack.c.h.b16 %v33
  %v142 = vunpack.c.l.b16 %v34
  %v143 = vunpack.c.h.b16 %v34
  %v144 = vunpack.c.l.b16 %v35
  %v145 = vunpack.c.h.b16 %v35
  %v146 = vunpack.c.l.b16 %v36
  %v147 = vunpack.c.h.b16 %v36
  %v148 = vunpack.c.l.b16 %v37
  %v149 = vunpack.c.h.b16 %v37
  %v150 = vunpack.c.l.b16 %v38
  %v151 = vunpack.c.h.b16 %v38
  %v152 = vunpack.c.l.b16 %v39
  %v153 = vunpack.c.h.b16 %v39
  %v154 = vunpack.c.l.b16 %v40
  %v155 = vunpack.c.h.b16 %v40
  %v156 = vunpack.c.l.b16 %v41
  %v157 = vunpack.c.h.b16 %v41
  %v158 = vunpack.c.l.b16 %v42
  %v159 = vunpack.c.h.b16 %v42
  %v160 = vunpack.c.l.b16 %v43
  %v161 = vunpack.c.h.b16 %v43
  %v162 = vunpack.c.l.b16 %v44
  %v163 = vunpack.c.h.b16 %v44
  %v164 = vunpack.c.l.b16 %v45
  %v165 = vunpack.c.h.b16 %v45
  %v166 = vunpack.c.l.b16 %v46
  %v167 = vunpack.c.h.b16 %v46
  %v168 = vunpack.c.l.b16 %v47
  %v169 = vunpack.c.h.b16 %v47
  %v170 = vunpack.c.l.b16 %v48
  %v171 = vunpack.c.h.b16 %v48
  %v172 = vunpack.c.l.b16 %v49
  %v173 = vunpack.c.h.b16 %v49
  %v174 = vunpack.c.l.b16 %v50
  %v175 = vunpack.c.h.b16 %v50
  %v176 = vunpack.c.l.b16 %v51
  %v177 = vunpack.c.h.b16 %v51
  %v178 = vunpack.c.l.b16 %v52
  %v179 = vunpack.c.h.b16 %v52
  %v180 = vunpack.c.l.b16 %v53
  %v181 = vunpack.c.h.b16 %v53
  %v182 = vunpack.c.l.b16 %v54
  %v183 = vunpack.c.h.b16 %v54
  %v184 = vunpack.c.l.b16 %v55
  %v185 = vunpack.c.h.b16 %v55
  %v186 = vpack.c.b16 %v126, %v122
  %v187 = vpack.c.b16 %v127, %v123
  %v188 = vpack.c.b16 %v128, %v124
  %v189 = vpack.c.b16 %v129, %v125
  %v190 = vpack.c.b16 %v134, %v130
  %v191 = vpack.c.b16 %v135, %v131
  %v192 = vpack.c.b16 %v136, %v132
  %v193 = vpack.c.b16 %v137, %v133
  %v194 = vpack.c.b16 %v142, %v138
  %v195 = vpack.c.b16 %v143, %v139
  %v196 = vpack.c.b16 %v144, %v140
  %v197 = vpack.c.b16 %v145, %v141
  %v198 = vpack.c.b16 %v150, %v146
  %v199 = vpack.c.b16 %v151, %v147
  %v200 = vpack.c.b16 %v152, %v148
  %v201 = vpack.c.b16 %v153, %v149
  %v202 = vpack.c.b16 %v158, %v154
  %v203 = vpack.c.b16 %v159, %v155
  %v204 = vpack.c.b16 %v160, %v156
  %v205 = vpack.c.b16 %v161, %v157
  %v206 = vpack.c.b16 %v166, %v162
  %v207 = vpack.c.b16 %v167, %v163
  %v208 = vpack.c.b16 %v168, %v164
  %v209 = vpack.c.b16 %v169, %v165
  %v210 = vpack.c.b16 %v174, %v170
  %v211 = vpack.c.b16 %v175, %v171
  %v212 = vpack.c.b16 %v176, %v172
  %v213 = vpack.c.b16 %v177, %v173
  %v214 = vpack.c.b16 %v182, %v178
  %v215 = vpack.c.b16 %v183, %v179
  %v216 = vpack.c.b16 %v184, %v180
  %v217 = vpack.c.b16 %v185, %v181
  %250 = vmatprep.subr.bf16.mxu0 %v187
  %251 = vmatpush1.bf16.msra.mxu0 %v186
  %252 = vmatprep.subr.bf16.mxu0 %v191
  %253 = vmatpush1.bf16.msra.mxu0 %v190
  %254 = vmatprep.subr.bf16.mxu0 %v195
  %255 = vmatpush1.bf16.msra.mxu0 %v194
  %256 = vmatprep.subr.bf16.mxu0 %v199
  %257 = vmatpush1.bf16.msra.mxu0 %v198
  %258 = vmatprep.subr.bf16.mxu0 %v203
  %259 = vmatpush1.bf16.msra.mxu0 %v202
  %260 = vmatprep.subr.bf16.mxu0 %v207
  %261 = vmatpush1.bf16.msra.mxu0 %v206
  %262 = vmatprep.subr.bf16.mxu0 %v211
  %263 = vmatpush1.bf16.msra.mxu0 %v210
  %264 = vmatprep.subr.bf16.mxu0 %v215
  %265 = vmatpush1.bf16.msra.mxu0 %v214
  %266 = vmatprep.subr.bf16.mxu0 0
  %267 = vmatpush1.bf16.msra.mxu0 0
  %268 = vmatprep.subr.bf16.mxu0 0
  %269 = vmatpush1.bf16.msra.mxu0 0
  %270 = vmatprep.subr.bf16.mxu0 0
  %271 = vmatpush1.bf16.msra.mxu0 0
  %272 = vmatprep.subr.bf16.mxu0 0
  %273 = vmatpush1.bf16.msra.mxu0 0
  %274 = vmatprep.subr.bf16.mxu0 0
  %275 = vmatpush1.bf16.msra.mxu0 0
  %276 = vmatprep.subr.bf16.mxu0 0
  %277 = vmatpush1.bf16.msra.mxu0 0
  %278 = vmatprep.subr.bf16.mxu0 0
  %279 = vmatpush1.bf16.msra.mxu0 0
  %280 = vmatprep.subr.bf16.mxu0 0
  %281 = vmatpush1.bf16.msra.mxu0 0
  %282 = vmatprep.mubr.bf16.mxu0 0
  %283 = vmatmul.mubr.bf16.gmra.mrb[0].mxu0 %v65
  %v284 = vpop.f32.mrb[0].mxu0
  %v285 = vadd.f32 %v73, %v284
  %v286 = vpop.f32.mrb[0].mxu0
  %v287 = vadd.f32 %v77, %v286
  %v288 = vpop.f32.mrb[0].mxu0
  %v289 = vadd.f32 %v73, %v288
  %v290 = vpop.f32.mrb[0].mxu0
  %v291 = vadd.f32 %v77, %v290
  %292 = vmatprep.mubr.bf16.mxu0 0
  %293 = vmatmul.mubr.bf16.gmra.mrb[0].mxu0 %v66
  %v294 = vpop.f32.mrb[0].mxu0
  %v295 = vadd.f32 %v73, %v294
  %v296 = vpop.f32.mrb[0].mxu0
  %v297 = vadd.f32 %v77, %v296
  %v298 = vpop.f32.mrb[0].mxu0
  %v299 = vadd.f32 %v73, %v298
  %v300 = vpop.f32.mrb[0].mxu0
  %v301 = vadd.f32 %v77, %v300
  %302 = vmatprep.mubr.bf16.mxu0 0
  %303 = vmatmul.mubr.bf16.gmra.mrb[0].mxu0 %v67
  %v304 = vpop.f32.mrb[0].mxu0
  %v305 = vadd.f32 %v73, %v304
  %v306 = vpop.f32.mrb[0].mxu0
  %v307 = vadd.f32 %v77, %v306
  %v308 = vpop.f32.mrb[0].mxu0
  %v309 = vadd.f32 %v73, %v308
  %v310 = vpop.f32.mrb[0].mxu0
  %v311 = vadd.f32 %v77, %v310
  %312 = vmatprep.mubr.bf16.mxu0 0
  %313 = vmatmul.mubr.bf16.gmra.mrb[0].mxu0 %v68
  %v314 = vpop.f32.mrb[0].mxu0
  %v315 = vadd.f32 %v73, %v314
  %v316 = vpop.f32.mrb[0].mxu0
  %v317 = vadd.f32 %v77, %v316
  %v318 = vpop.f32.mrb[0].mxu0
  %v319 = vadd.f32 %v73, %v318
  %v320 = vpop.f32.mrb[0].mxu0
  %v321 = vadd.f32 %v77, %v320
  %322 = vdwg.mxu0
  %323 = vmatprep.subr.bf16.mxu0 %v189
  %324 = vmatpush1.bf16.msra.mxu0 %v188
  %325 = vmatprep.subr.bf16.mxu0 %v193
  %326 = vmatpush1.bf16.msra.mxu0 %v192
  %327 = vmatprep.subr.bf16.mxu0 %v197
  %328 = vmatpush1.bf16.msra.mxu0 %v196
  %329 = vmatprep.subr.bf16.mxu0 %v201
  %330 = vmatpush1.bf16.msra.mxu0 %v200
  %331 = vmatprep.subr.bf16.mxu0 %v205
  %332 = vmatpush1.bf16.msra.mxu0 %v204
  %333 = vmatprep.subr.bf16.mxu0 %v209
  %334 = vmatpush1.bf16.msra.mxu0 %v208
  %335 = vmatprep.subr.bf16.mxu0 %v213
  %336 = vmatpush1.bf16.msra.mxu0 %v212
  %337 = vmatprep.subr.bf16.mxu0 %v217
  %338 = vmatpush1.bf16.msra.mxu0 %v216
  %339 = vmatprep.subr.bf16.mxu0 0
  %340 = vmatpush1.bf16.msra.mxu0 0
  %341 = vmatprep.subr.bf16.mxu0 0
  %342 = vmatpush1.bf16.msra.mxu0 0
  %343 = vmatprep.subr.bf16.mxu0 0
  %344 = vmatpush1.bf16.msra.mxu0 0
  %345 = vmatprep.subr.bf16.mxu0 0
  %346 = vmatpush1.bf16.msra.mxu0 0
  %347 = vmatprep.subr.bf16.mxu0 0
  %348 = vmatpush1.bf16.msra.mxu0 0
  %349 = vmatprep.subr.bf16.mxu0 0
  %350 = vmatpush1.bf16.msra.mxu0 0
  %351 = vmatprep.subr.bf16.mxu0 0
  %352 = vmatpush1.bf16.msra.mxu0 0
  %353 = vmatprep.subr.bf16.mxu0 0
  %354 = vmatpush1.bf16.msra.mxu0 0
  %355 = vmatprep.mubr.bf16.mxu0 0
  %356 = vmatmul.mubr.bf16.gmra.mrb[0].mxu0 %v65
  %v357 = vpop.f32.mrb[0].mxu0
  %v358 = vadd.f32 %v81, %v357
  %v359 = vpop.f32.mrb[0].mxu0
  %v360 = vadd.f32 %v85, %v359
  %v361 = vpop.f32.mrb[0].mxu0
  %v362 = vadd.f32 %v81, %v361
  %v363 = vpop.f32.mrb[0].mxu0
  %v364 = vadd.f32 %v85, %v363
  %365 = vmatprep.mubr.bf16.mxu0 0
  %366 = vmatmul.mubr.bf16.gmra.mrb[0].mxu0 %v66
  %v367 = vpop.f32.mrb[0].mxu0
  %v368 = vadd.f32 %v81, %v367
  %v369 = vpop.f32.mrb[0].mxu0
  %v370 = vadd.f32 %v85, %v369
  %v371 = vpop.f32.mrb[0].mxu0
  %v372 = vadd.f32 %v81, %v371
  %v373 = vpop.f32.mrb[0].mxu0
  %v374 = vadd.f32 %v85, %v373
  %375 = vmatprep.mubr.bf16.mxu0 0
  %376 = vmatmul.mubr.bf16.gmra.mrb[0].mxu0 %v67
  %v377 = vpop.f32.mrb[0].mxu0
  %v378 = vadd.f32 %v81, %v377
  %v379 = vpop.f32.mrb[0].mxu0
  %v380 = vadd.f32 %v85, %v379
  %v381 = vpop.f32.mrb[0].mxu0
  %v382 = vadd.f32 %v81, %v381
  %v383 = vpop.f32.mrb[0].mxu0
  %v384 = vadd.f32 %v85, %v383
  %385 = vmatprep.mubr.bf16.mxu0 0
  %386 = vmatmul.mubr.bf16.gmra.mrb[0].mxu0 %v68
  %v387 = vpop.f32.mrb[0].mxu0
  %v388 = vadd.f32 %v81, %v387
  %v389 = vpop.f32.mrb[0].mxu0
  %v390 = vadd.f32 %v85, %v389
  %v391 = vpop.f32.mrb[0].mxu0
  %v392 = vadd.f32 %v81, %v391
  %v393 = vpop.f32.mrb[0].mxu0
  %v394 = vadd.f32 %v85, %v393
  %395 = vdwg.mxu0
  %396 = vst [vmem:[#allocation2] sm:$0xff] %v285
  %397 = vst [vmem:[#allocation2 + $0x8] sm:$0xff] %v287
  %398 = vst [vmem:[#allocation2 + $0x10] sm:$0xff] %v358
  %399 = vst [vmem:[#allocation2 + $0x18] sm:$0xff] %v360
  %400 = vst [vmem:[#allocation2 + $0x20] sm:$0xff] %v289
  %401 = vst [vmem:[#allocation2 + $0x28] sm:$0xff] %v291
  %402 = vst [vmem:[#allocation2 + $0x30] sm:$0xff] %v362
  %403 = vst [vmem:[#allocation2 + $0x38] sm:$0xff] %v364
  %404 = vst [vmem:[#allocation2 + $0x40] sm:$0xff] %v295
  %405 = vst [vmem:[#allocation2 + $0x48] sm:$0xff] %v297
  %406 = vst [vmem:[#allocation2 + $0x50] sm:$0xff] %v368
  %407 = vst [vmem:[#allocation2 + $0x58] sm:$0xff] %v370
  %408 = vst [vmem:[#allocation2 + $0x60] sm:$0xff] %v299
  %409 = vst [vmem:[#allocation2 + $0x68] sm:$0xff] %v301
  %410 = vst [vmem:[#allocation2 + $0x70] sm:$0xff] %v372
  %411 = vst [vmem:[#allocation2 + $0x78] sm:$0xff] %v374
  %412 = vst [vmem:[#allocation2 + $0x80] sm:$0xff] %v305
  %413 = vst [vmem:[#allocation2 + $0x88] sm:$0xff] %v307
  %414 = vst [vmem:[#allocation2 + $0x90] sm:$0xff] %v378
  %415 = vst [vmem:[#allocation2 + $0x98] sm:$0xff] %v380
  %416 = vst [vmem:[#allocation2 + $0xa0] sm:$0xff] %v309
  %417 = vst [vmem:[#allocation2 + $0xa8] sm:$0xff] %v311
  %418 = vst [vmem:[#allocation2 + $0xb0] sm:$0xff] %v382
  %419 = vst [vmem:[#allocation2 + $0xb8] sm:$0xff] %v384
  %420 = vst [vmem:[#allocation2 + $0xc0] sm:$0xff] %v315
  %421 = vst [vmem:[#allocation2 + $0xc8] sm:$0xff] %v317
  %422 = vst [vmem:[#allocation2 + $0xd0] sm:$0xff] %v388
  %423 = vst [vmem:[#allocation2 + $0xd8] sm:$0xff] %v390
  %424 = vst [vmem:[#allocation2 + $0xe0] sm:$0xff] %v319
  %425 = vst [vmem:[#allocation2 + $0xe8] sm:$0xff] %v321
  %426 = vst [vmem:[#allocation2 + $0xf0] sm:$0xff] %v392
  %427 = vst [vmem:[#allocation2 + $0xf8] sm:$0xff] %v394
  %v428 = vld [vmem:[%s2] sm:$0xff]
  %v429 = vld [vmem:[%s2 + $0x8] sm:$0xff]
  %v430 = vld [vmem:[%s2 + $0x10] sm:$0xff]
  %v431 = vld [vmem:[%s2 + $0x18] sm:$0xff]
  %v432 = vld [vmem:[%s2 + $0x20] sm:$0xff]
  %v433 = vld [vmem:[%s2 + $0x28] sm:$0xff]
  %v434 = vld [vmem:[%s2 + $0x30] sm:$0xff]
  %v435 = vld [vmem:[%s2 + $0x38] sm:$0xff]
  %v436 = vld [vmem:[%s2 + $0x40] sm:$0xff]
  %v437 = vld [vmem:[%s2 + $0x48] sm:$0xff]
  %v438 = vld [vmem:[%s2 + $0x50] sm:$0xff]
  %v439 = vld [vmem:[%s2 + $0x58] sm:$0xff]
  %v440 = vld [vmem:[%s2 + $0x60] sm:$0xff]
  %v441 = vld [vmem:[%s2 + $0x68] sm:$0xff]
  %v442 = vld [vmem:[%s2 + $0x70] sm:$0xff]
  %v443 = vld [vmem:[%s2 + $0x78] sm:$0xff]
  %v444 = vld [vmem:[%s2 + $0x80] sm:$0xff]
  %v445 = vld [vmem:[%s2 + $0x88] sm:$0xff]
  %v446 = vld [vmem:[%s2 + $0x90] sm:$0xff]
  %v447 = vld [vmem:[%s2 + $0x98] sm:$0xff]
  %v448 = vld [vmem:[%s2 + $0xa0] sm:$0xff]
  %v449 = vld [vmem:[%s2 + $0xa8] sm:$0xff]
  %v450 = vld [vmem:[%s2 + $0xb0] sm:$0xff]
  %v451 = vld [vmem:[%s2 + $0xb8] sm:$0xff]
  %v452 = vld [vmem:[%s2 + $0xc0] sm:$0xff]
  %v453 = vld [vmem:[%s2 + $0xc8] sm:$0xff]
  %v454 = vld [vmem:[%s2 + $0xd0] sm:$0xff]
  %v455 = vld [vmem:[%s2 + $0xd8] sm:$0xff]
  %v456 = vld [vmem:[%s2 + $0xe0] sm:$0xff]
  %v457 = vld [vmem:[%s2 + $0xe8] sm:$0xff]
  %v458 = vld [vmem:[%s2 + $0xf0] sm:$0xff]
  %v459 = vld [vmem:[%s2 + $0xf8] sm:$0xff]
  %v460 = vld [vmem:[#allocation3] sm:$0xff]
  %v461 = vld [vmem:[#allocation4] sm:$0xff]
  %v462 = vld [vmem:[#allocation2] sm:$0xff]
  %v463 = vld [vmem:[#allocation2 + $0x8] sm:$0xff]
  %v464 = vld [vmem:[#allocation2 + $0x10] sm:$0xff]
  %v465 = vld [vmem:[#allocation2 + $0x18] sm:$0xff]
  %v466 = vpack.c.bf16 %v460, %v460
  %v499 = vunpack.c.l.b16 %v428
  %v500 = vunpack.c.h.b16 %v428
  %v501 = vunpack.c.l.b16 %v429
  %v502 = vunpack.c.h.b16 %v429
  %v503 = vunpack.c.l.b16 %v430
  %v504 = vunpack.c.h.b16 %v430
  %v505 = vunpack.c.l.b16 %v431
  %v506 = vunpack.c.h.b16 %v431
  %v507 = vunpack.c.l.b16 %v432
  %v508 = vunpack.c.h.b16 %v432
  %v509 = vunpack.c.l.b16 %v433
  %v510 = vunpack.c.h.b16 %v433
  %v511 = vunpack.c.l.b16 %v434
  %v512 = vunpack.c.h.b16 %v434
  %v513 = vunpack.c.l.b16 %v435
  %v514 = vunpack.c.h.b16 %v435
  %v515 = vunpack.c.l.b16 %v436
  %v516 = vunpack.c.h.b16 %v436
  %v517 = vunpack.c.l.b16 %v437
  %v518 = vunpack.c.h.b16 %v437
  %v519 = vunpack.c.l.b16 %v438
  %v520 = vunpack.c.h.b16 %v438
  %v521 = vunpack.c.l.b16 %v439
  %v522 = vunpack.c.h.b16 %v439
  %v523 = vunpack.c.l.b16 %v440
  %v524 = vunpack.c.h.b16 %v440
  %v525 = vunpack.c.l.b16 %v441
  %v526 = vunpack.c.h.b16 %v441
  %v527 = vunpack.c.l.b16 %v442
  %v528 = vunpack.c.h.b16 %v442
  %v529 = vunpack.c.l.b16 %v443
  %v530 = vunpack.c.h.b16 %v443
  %v531 = vunpack.c.l.b16 %v444
  %v532 = vunpack.c.h.b16 %v444
  %v533 = vunpack.c.l.b16 %v445
  %v534 = vunpack.c.h.b16 %v445
  %v535 = vunpack.c.l.b16 %v446
  %v536 = vunpack.c.h.b16 %v446
  %v537 = vunpack.c.l.b16 %v447
  %v538 = vunpack.c.h.b16 %v447
  %v539 = vunpack.c.l.b16 %v448
  %v540 = vunpack.c.h.b16 %v448
  %v541 = vunpack.c.l.b16 %v449
  %v542 = vunpack.c.h.b16 %v449
  %v543 = vunpack.c.l.b16 %v450
  %v544 = vunpack.c.h.b16 %v450
  %v545 = vunpack.c.l.b16 %v451
  %v546 = vunpack.c.h.b16 %v451
  %v547 = vunpack.c.l.b16 %v452
  %v548 = vunpack.c.h.b16 %v452
  %v549 = vunpack.c.l.b16 %v453
  %v550 = vunpack.c.h.b16 %v453
  %v551 = vunpack.c.l.b16 %v454
  %v552 = vunpack.c.h.b16 %v454
  %v553 = vunpack.c.l.b16 %v455
  %v554 = vunpack.c.h.b16 %v455
  %v555 = vunpack.c.l.b16 %v456
  %v556 = vunpack.c.h.b16 %v456
  %v557 = vunpack.c.l.b16 %v457
  %v558 = vunpack.c.h.b16 %v457
  %v559 = vunpack.c.l.b16 %v458
  %v560 = vunpack.c.h.b16 %v458
  %v561 = vunpack.c.l.b16 %v459
  %v562 = vunpack.c.h.b16 %v459
  %v563 = vpack.c.b16 %v503, %v499
  %v564 = vpack.c.b16 %v504, %v500
  %v565 = vpack.c.b16 %v505, %v501
  %v566 = vpack.c.b16 %v506, %v502
  %v567 = vpack.c.b16 %v511, %v507
  %v568 = vpack.c.b16 %v512, %v508
  %v569 = vpack.c.b16 %v513, %v509
  %v570 = vpack.c.b16 %v514, %v510
  %v571 = vpack.c.b16 %v519, %v515
  %v572 = vpack.c.b16 %v520, %v516
  %v573 = vpack.c.b16 %v521, %v517
  %v574 = vpack.c.b16 %v522, %v518
  %v575 = vpack.c.b16 %v527, %v523
  %v576 = vpack.c.b16 %v528, %v524
  %v577 = vpack.c.b16 %v529, %v525
  %v578 = vpack.c.b16 %v530, %v526
  %v579 = vpack.c.b16 %v535, %v531
  %v580 = vpack.c.b16 %v536, %v532
  %v581 = vpack.c.b16 %v537, %v533
  %v582 = vpack.c.b16 %v538, %v534
  %v583 = vpack.c.b16 %v543, %v539
  %v584 = vpack.c.b16 %v544, %v540
  %v585 = vpack.c.b16 %v545, %v541
  %v586 = vpack.c.b16 %v546, %v542
  %v587 = vpack.c.b16 %v551, %v547
  %v588 = vpack.c.b16 %v552, %v548
  %v589 = vpack.c.b16 %v553, %v549
  %v590 = vpack.c.b16 %v554, %v550
  %v591 = vpack.c.b16 %v559, %v555
  %v592 = vpack.c.b16 %v560, %v556
  %v593 = vpack.c.b16 %v561, %v557
  %v594 = vpack.c.b16 %v562, %v558
  %627 = vmatprep.subr.bf16.mxu0 %v564
  %628 = vmatpush1.bf16.msra.mxu0 %v563
  %629 = vmatprep.subr.bf16.mxu0 %v568
  %630 = vmatpush1.bf16.msra.mxu0 %v567
  %631 = vmatprep.subr.bf16.mxu0 %v572
  %632 = vmatpush1.bf16.msra.mxu0 %v571
  %633 = vmatprep.subr.bf16.mxu0 %v576
  %634 = vmatpush1.bf16.msra.mxu0 %v575
  %635 = vmatprep.subr.bf16.mxu0 %v580
  %636 = vmatpush1.bf16.msra.mxu0 %v579
  %637 = vmatprep.subr.bf16.mxu0 %v584
  %638 = vmatpush1.bf16.msra.mxu0 %v583
  %639 = vmatprep.subr.bf16.mxu0 %v588
  %640 = vmatpush1.bf16.msra.mxu0 %v587
  %641 = vmatprep.subr.bf16.mxu0 %v592
  %642 = vmatpush1.bf16.msra.mxu0 %v591
  %643 = vmatprep.subr.bf16.mxu0 0
  %644 = vmatpush1.bf16.msra.mxu0 0
  %645 = vmatprep.subr.bf16.mxu0 0
  %646 = vmatpush1.bf16.msra.mxu0 0
  %647 = vmatprep.subr.bf16.mxu0 0
  %648 = vmatpush1.bf16.msra.mxu0 0
  %649 = vmatprep.subr.bf16.mxu0 0
  %650 = vmatpush1.bf16.msra.mxu0 0
  %651 = vmatprep.subr.bf16.mxu0 0
  %652 = vmatpush1.bf16.msra.mxu0 0
  %653 = vmatprep.subr.bf16.mxu0 0
  %654 = vmatpush1.bf16.msra.mxu0 0
  %655 = vmatprep.subr.bf16.mxu0 0
  %656 = vmatpush1.bf16.msra.mxu0 0
  %657 = vmatprep.subr.bf16.mxu0 0
  %658 = vmatpush1.bf16.msra.mxu0 0
  %659 = vmatprep.mubr.bf16.mxu0 0
  %660 = vmatmul.mubr.bf16.gmra.mrb[0].mxu0 %v466
  %v661 = vpop.f32.mrb[0].mxu0
  %v662 = vadd.f32 0.0, %v661
  %v663 = vpop.f32.mrb[0].mxu0
  %v664 = vadd.f32 0.0, %v663
  %v665 = vpop.f32.mrb[0].mxu0
  %v666 = vpop.f32.mrb[0].mxu0
  %667 = vdwg.mxu0
  %668 = vmatprep.subr.bf16.mxu0 %v566
  %669 = vmatpush1.bf16.msra.mxu0 %v565
  %670 = vmatprep.subr.bf16.mxu0 %v570
  %671 = vmatpush1.bf16.msra.mxu0 %v569
  %672 = vmatprep.subr.bf16.mxu0 %v574
  %673 = vmatpush1.bf16.msra.mxu0 %v573
  %674 = vmatprep.subr.bf16.mxu0 %v578
  %675 = vmatpush1.bf16.msra.mxu0 %v577
  %676 = vmatprep.subr.bf16.mxu0 %v582
  %677 = vmatpush1.bf16.msra.mxu0 %v581
  %678 = vmatprep.subr.bf16.mxu0 %v586
  %679 = vmatpush1.bf16.msra.mxu0 %v585
  %680 = vmatprep.subr.bf16.mxu0 %v590
  %681 = vmatpush1.bf16.msra.mxu0 %v589
  %682 = vmatprep.subr.bf16.mxu0 %v594
  %683 = vmatpush1.bf16.msra.mxu0 %v593
  %684 = vmatprep.subr.bf16.mxu0 0
  %685 = vmatpush1.bf16.msra.mxu0 0
  %686 = vmatprep.subr.bf16.mxu0 0
  %687 = vmatpush1.bf16.msra.mxu0 0
  %688 = vmatprep.subr.bf16.mxu0 0
  %689 = vmatpush1.bf16.msra.mxu0 0
  %690 = vmatprep.subr.bf16.mxu0 0
  %691 = vmatpush1.bf16.msra.mxu0 0
  %692 = vmatprep.subr.bf16.mxu0 0
  %693 = vmatpush1.bf16.msra.mxu0 0
  %694 = vmatprep.subr.bf16.mxu0 0
  %695 = vmatpush1.bf16.msra.mxu0 0
  %696 = vmatprep.subr.bf16.mxu0 0
  %697 = vmatpush1.bf16.msra.mxu0 0
  %698 = vmatprep.subr.bf16.mxu0 0
  %699 = vmatpush1.bf16.msra.mxu0 0
  %700 = vmatprep.mubr.bf16.mxu0 0
  %701 = vmatmul.mubr.bf16.gmra.mrb[0].mxu0 %v466
  %v702 = vpop.f32.mrb[0].mxu0
  %v703 = vadd.f32 0.0, %v702
  %v704 = vpop.f32.mrb[0].mxu0
  %v705 = vadd.f32 0.0, %v704
  %v706 = vpop.f32.mrb[0].mxu0
  %v707 = vpop.f32.mrb[0].mxu0
  %708 = vdwg.mxu0
  %v709 = vadd.f32 %v462, %v662
  %v710 = vadd.f32 %v463, %v664
  %v711 = vadd.f32 %v464, %v703
  %v712 = vadd.f32 %v465, %v705
  %v713 = vxor.u32 %v709, 2147483648
  %v714 = vxor.u32 %v710, 2147483648
  %v715 = vxor.u32 %v711, 2147483648
  %v716 = vmul.f32 %v713, 1.442695
  %v717 = vpow.pop %v716
  %v718 = vmul.f32 %v714, 1.442695
  %v719 = vpow.pop %v718
  %v720 = vmul.f32 %v715, 1.442695
  %v721 = vpow.pop %v720
  %v722 = vadd.f32 %v717, 1.0
  %v723 = vadd.f32 %v719, 1.0
  %v724 = vadd.f32 %v721, 1.0
  %v725 = vrcp.pop %v722
  %v726 = vmul.f32 1.0, %v725
  %v727 = vrcp.pop %v723
  %v728 = vmul.f32 1.0, %v727
  %v729 = vrcp.pop %v724
  %v730 = vmul.f32 1.0, %v729
  %v731 = vtanh.pop %v712
  %v732 = vmul.f32 %v728, %v461
  %v733 = vmul.f32 %v726, %v731
  %v734 = vadd.f32 %v732, %v733
  %v735 = vtanh.pop %v734
  %v736 = vmul.f32 %v730, %v735
  %737 = vst [vmem:[#allocation4] sm:$0xff] %v734
  %738 = vst [vmem:[#allocation3] sm:$0xff] %v736
  %739 = vst [vmem:[%s4] sm:$0xff] %v736
  %v740 = vld [vmem:[#allocation3] sm:$0xff]
  %v741 = vld [vmem:[#allocation4] sm:$0xff]
  %s742 = scalar_lea.vmem [#allocation2], 32
  %v743 = vld [vmem:[%s742] sm:$0xff]
  %v744 = vld [vmem:[%s742 + $0x8] sm:$0xff]
  %v745 = vld [vmem:[%s742 + $0x10] sm:$0xff]
  %v746 = vld [vmem:[%s742 + $0x18] sm:$0xff]
  %v747 = vpack.c.bf16 %v740, %v740
  %748 = vmatprep.subr.bf16.mxu0 %v564
  %749 = vmatpush1.bf16.msra.mxu0 %v563
  %750 = vmatprep.subr.bf16.mxu0 %v568
  %751 = vmatpush1.bf16.msra.mxu0 %v567
  %752 = vmatprep.subr.bf16.mxu0 %v572
  %753 = vmatpush1.bf16.msra.mxu0 %v571
  %754 = vmatprep.subr.bf16.mxu0 %v576
  %755 = vmatpush1.bf16.msra.mxu0 %v575
  %756 = vmatprep.subr.bf16.mxu0 %v580
  %757 = vmatpush1.bf16.msra.mxu0 %v579
  %758 = vmatprep.subr.bf16.mxu0 %v584
  %759 = vmatpush1.bf16.msra.mxu0 %v583
  %760 = vmatprep.subr.bf16.mxu0 %v588
  %761 = vmatpush1.bf16.msra.mxu0 %v587
  %762 = vmatprep.subr.bf16.mxu0 %v592
  %763 = vmatpush1.bf16.msra.mxu0 %v591
  %764 = vmatprep.subr.bf16.mxu0 0
  %765 = vmatpush1.bf16.msra.mxu0 0
  %766 = vmatprep.subr.bf16.mxu0 0
  %767 = vmatpush1.bf16.msra.mxu0 0
  %768 = vmatprep.subr.bf16.mxu0 0
  %769 = vmatpush1.bf16.msra.mxu0 0
  %770 = vmatprep.subr.bf16.mxu0 0
  %771 = vmatpush1.bf16.msra.mxu0 0
  %772 = vmatprep.subr.bf16.mxu0 0
  %773 = vmatpush1.bf16.msra.mxu0 0
  %774 = vmatprep.subr.bf16.mxu0 0
  %775 = vmatpush1.bf16.msra.mxu0 0
  %776 = vmatprep.subr.bf16.mxu0 0
  %777 = vmatpush1.bf16.msra.mxu0 0
  %778 = vmatprep.subr.bf16.mxu0 0
  %779 = vmatpush1.bf16.msra.mxu0 0
  %780 = vmatprep.mubr.bf16.mxu0 0
  %781 = vmatmul.mubr.bf16.gmra.mrb[0].mxu0 %v747
  %v782 = vpop.f32.mrb[0].mxu0
  %v783 = vadd.f32 0.0, %v782
  %v784 = vpop.f32.mrb[0].mxu0
  %v785 = vadd.f32 0.0, %v784
  %v786 = vpop.f32.mrb[0].mxu0
  %v787 = vpop.f32.mrb[0].mxu0
  %788 = vdwg.mxu0
  %789 = vmatprep.subr.bf16.mxu0 %v566
  %790 = vmatpush1.bf16.msra.mxu0 %v565
  %791 = vmatprep.subr.bf16.mxu0 %v570
  %792 = vmatpush1.bf16.msra.mxu0 %v569
  %793 = vmatprep.subr.bf16.mxu0 %v574
  %794 = vmatpush1.bf16.msra.mxu0 %v573
  %795 = vmatprep.subr.bf16.mxu0 %v578
  %796 = vmatpush1.bf16.msra.mxu0 %v577
  %797 = vmatprep.subr.bf16.mxu0 %v582
  %798 = vmatpush1.bf16.msra.mxu0 %v581
  %799 = vmatprep.subr.bf16.mxu0 %v586
  %800 = vmatpush1.bf16.msra.mxu0 %v585
  %801 = vmatprep.subr.bf16.mxu0 %v590
  %802 = vmatpush1.bf16.msra.mxu0 %v589
  %803 = vmatprep.subr.bf16.mxu0 %v594
  %804 = vmatpush1.bf16.msra.mxu0 %v593
  %805 = vmatprep.subr.bf16.mxu0 0
  %806 = vmatpush1.bf16.msra.mxu0 0
  %807 = vmatprep.subr.bf16.mxu0 0
  %808 = vmatpush1.bf16.msra.mxu0 0
  %809 = vmatprep.subr.bf16.mxu0 0
  %810 = vmatpush1.bf16.msra.mxu0 0
  %811 = vmatprep.subr.bf16.mxu0 0
  %812 = vmatpush1.bf16.msra.mxu0 0
  %813 = vmatprep.subr.bf16.mxu0 0
  %814 = vmatpush1.bf16.msra.mxu0 0
  %815 = vmatprep.subr.bf16.mxu0 0
  %816 = vmatpush1.bf16.msra.mxu0 0
  %817 = vmatprep.subr.bf16.mxu0 0
  %818 = vmatpush1.bf16.msra.mxu0 0
  %819 = vmatprep.subr.bf16.mxu0 0
  %820 = vmatpush1.bf16.msra.mxu0 0
  %821 = vmatprep.mubr.bf16.mxu0 0
  %822 = vmatmul.mubr.bf16.gmra.mrb[0].mxu0 %v747
  %v823 = vpop.f32.mrb[0].mxu0
  %v824 = vadd.f32 0.0, %v823
  %v825 = vpop.f32.mrb[0].mxu0
  %v826 = vadd.f32 0.0, %v825
  %v827 = vpop.f32.mrb[0].mxu0
  %v828 = vpop.f32.mrb[0].mxu0
  %829 = vdwg.mxu0
  %v830 = vadd.f32 %v743, %v783
  %v831 = vadd.f32 %v744, %v785
  %v832 = vadd.f32 %v745, %v824
  %v833 = vadd.f32 %v746, %v826
  %v834 = vxor.u32 %v830, 2147483648
  %v835 = vxor.u32 %v831, 2147483648
  %v836 = vxor.u32 %v832, 2147483648
  %v837 = vmul.f32 %v834, 1.442695
  %v838 = vpow.pop %v837
  %v839 = vmul.f32 %v835, 1.442695
  %v840 = vpow.pop %v839
  %v841 = vmul.f32 %v836, 1.442695
  %v842 = vpow.pop %v841
  %v843 = vadd.f32 %v838, 1.0
  %v844 = vadd.f32 %v840, 1.0
  %v845 = vadd.f32 %v842, 1.0
  %v846 = vrcp.pop %v843
  %v847 = vmul.f32 1.0, %v846
  %v848 = vrcp.pop %v844
  %v849 = vmul.f32 1.0, %v848
  %v850 = vrcp.pop %v845
  %v851 = vmul.f32 1.0, %v850
  %v852 = vtanh.pop %v833
  %v853 = vmul.f32 %v849, %v741
  %v854 = vmul.f32 %v847, %v852
  %v855 = vadd.f32 %v853, %v854
  %v856 = vtanh.pop %v855
  %v857 = vmul.f32 %v851, %v856
  %858 = vst [vmem:[#allocation4] sm:$0xff] %v855
  %859 = vst [vmem:[#allocation3] sm:$0xff] %v857
  %s860 = scalar_lea.vmem %s4, 8
  %861 = vst [vmem:[%s860] sm:$0xff] %v857
  %v862 = vld [vmem:[#allocation3] sm:$0xff]
  %v863 = vld [vmem:[#allocation4] sm:$0xff]
  %s864 = scalar_lea.vmem [#allocation2], 64
  %v865 = vld [vmem:[%s864] sm:$0xff]
  %v866 = vld [vmem:[%s864 + $0x8] sm:$0xff]
  %v867 = vld [vmem:[%s864 + $0x10] sm:$0xff]
  %v868 = vld [vmem:[%s864 + $0x18] sm:$0xff]
  %v869 = vpack.c.bf16 %v862, %v862
  %870 = vmatprep.subr.bf16.mxu0 %v564
  %871 = vmatpush1.bf16.msra.mxu0 %v563
  %872 = vmatprep.subr.bf16.mxu0 %v568
  %873 = vmatpush1.bf16.msra.mxu0 %v567
  %874 = vmatprep.subr.bf16.mxu0 %v572
  %875 = vmatpush1.bf16.msra.mxu0 %v571
  %876 = vmatprep.subr.bf16.mxu0 %v576
  %877 = vmatpush1.bf16.msra.mxu0 %v575
  %878 = vmatprep.subr.bf16.mxu0 %v580
  %879 = vmatpush1.bf16.msra.mxu0 %v579
  %880 = vmatprep.subr.bf16.mxu0 %v584
  %881 = vmatpush1.bf16.msra.mxu0 %v583
  %882 = vmatprep.subr.bf16.mxu0 %v588
  %883 = vmatpush1.bf16.msra.mxu0 %v587
  %884 = vmatprep.subr.bf16.mxu0 %v592
  %885 = vmatpush1.bf16.msra.mxu0 %v591
  %886 = vmatprep.subr.bf16.mxu0 0
  %887 = vmatpush1.bf16.msra.mxu0 0
  %888 = vmatprep.subr.bf16.mxu0 0
  %889 = vmatpush1.bf16.msra.mxu0 0
  %890 = vmatprep.subr.bf16.mxu0 0
  %891 = vmatpush1.bf16.msra.mxu0 0
  %892 = vmatprep.subr.bf16.mxu0 0
  %893 = vmatpush1.bf16.msra.mxu0 0
  %894 = vmatprep.subr.bf16.mxu0 0
  %895 = vmatpush1.bf16.msra.mxu0 0
  %896 = vmatprep.subr.bf16.mxu0 0
  %897 = vmatpush1.bf16.msra.mxu0 0
  %898 = vmatprep.subr.bf16.mxu0 0
  %899 = vmatpush1.bf16.msra.mxu0 0
  %900 = vmatprep.subr.bf16.mxu0 0
  %901 = vmatpush1.bf16.msra.mxu0 0
  %902 = vmatprep.mubr.bf16.mxu0 0
  %903 = vmatmul.mubr.bf16.gmra.mrb[0].mxu0 %v869
  %v904 = vpop.f32.mrb[0].mxu0
  %v905 = vadd.f32 0.0, %v904
  %v906 = vpop.f32.mrb[0].mxu0
  %v907 = vadd.f32 0.0, %v906
  %v908 = vpop.f32.mrb[0].mxu0
  %v909 = vpop.f32.mrb[0].mxu0
  %910 = vdwg.mxu0
  %911 = vmatprep.subr.bf16.mxu0 %v566
  %912 = vmatpush1.bf16.msra.mxu0 %v565
  %913 = vmatprep.subr.bf16.mxu0 %v570
  %914 = vmatpush1.bf16.msra.mxu0 %v569
  %915 = vmatprep.subr.bf16.mxu0 %v574
  %916 = vmatpush1.bf16.msra.mxu0 %v573
  %917 = vmatprep.subr.bf16.mxu0 %v578
  %918 = vmatpush1.bf16.msra.mxu0 %v577
  %919 = vmatprep.subr.bf16.mxu0 %v582
  %920 = vmatpush1.bf16.msra.mxu0 %v581
  %921 = vmatprep.subr.bf16.mxu0 %v586
  %922 = vmatpush1.bf16.msra.mxu0 %v585
  %923 = vmatprep.subr.bf16.mxu0 %v590
  %924 = vmatpush1.bf16.msra.mxu0 %v589
  %925 = vmatprep.subr.bf16.mxu0 %v594
  %926 = vmatpush1.bf16.msra.mxu0 %v593
  %927 = vmatprep.subr.bf16.mxu0 0
  %928 = vmatpush1.bf16.msra.mxu0 0
  %929 = vmatprep.subr.bf16.mxu0 0
  %930 = vmatpush1.bf16.msra.mxu0 0
  %931 = vmatprep.subr.bf16.mxu0 0
  %932 = vmatpush1.bf16.msra.mxu0 0
  %933 = vmatprep.subr.bf16.mxu0 0
  %934 = vmatpush1.bf16.msra.mxu0 0
  %935 = vmatprep.subr.bf16.mxu0 0
  %936 = vmatpush1.bf16.msra.mxu0 0
  %937 = vmatprep.subr.bf16.mxu0 0
  %938 = vmatpush1.bf16.msra.mxu0 0
  %939 = vmatprep.subr.bf16.mxu0 0
  %940 = vmatpush1.bf16.msra.mxu0 0
  %941 = vmatprep.subr.bf16.mxu0 0
  %942 = vmatpush1.bf16.msra.mxu0 0
  %943 = vmatprep.mubr.bf16.mxu0 0
  %944 = vmatmul.mubr.bf16.gmra.mrb[0].mxu0 %v869
  %v945 = vpop.f32.mrb[0].mxu0
  %v946 = vadd.f32 0.0, %v945
  %v947 = vpop.f32.mrb[0].mxu0
  %v948 = vadd.f32 0.0, %v947
  %v949 = vpop.f32.mrb[0].mxu0
  %v950 = vpop.f32.mrb[0].mxu0
  %951 = vdwg.mxu0
  %v952 = vadd.f32 %v865, %v905
  %v953 = vadd.f32 %v866, %v907
  %v954 = vadd.f32 %v867, %v946
  %v955 = vadd.f32 %v868, %v948
  %v956 = vxor.u32 %v952, 2147483648
  %v957 = vxor.u32 %v953, 2147483648
  %v958 = vxor.u32 %v954, 2147483648
  %v959 = vmul.f32 %v956, 1.442695
  %v960 = vpow.pop %v959
  %v961 = vmul.f32 %v957, 1.442695
  %v962 = vpow.pop %v961
  %v963 = vmul.f32 %v958, 1.442695
  %v964 = vpow.pop %v963
  %v965 = vadd.f32 %v960, 1.0
  %v966 = vadd.f32 %v962, 1.0
  %v967 = vadd.f32 %v964, 1.0
  %v968 = vrcp.pop %v965
  %v969 = vmul.f32 1.0, %v968
  %v970 = vrcp.pop %v966
  %v971 = vmul.f32 1.0, %v970
  %v972 = vrcp.pop %v967
  %v973 = vmul.f32 1.0, %v972
  %v974 = vtanh.pop %v955
  %v975 = vmul.f32 %v971, %v863
  %v976 = vmul.f32 %v969, %v974
  %v977 = vadd.f32 %v975, %v976
  %v978 = vtanh.pop %v977
  %v979 = vmul.f32 %v973, %v978
  %980 = vst [vmem:[#allocation4] sm:$0xff] %v977
  %981 = vst [vmem:[#allocation3] sm:$0xff] %v979
  %s982 = scalar_lea.vmem %s4, 16
  %983 = vst [vmem:[%s982] sm:$0xff] %v979
  %v984 = vld [vmem:[#allocation3] sm:$0xff]
  %v985 = vld [vmem:[#allocation4] sm:$0xff]
  %s986 = scalar_lea.vmem [#allocation2], 96
  %v987 = vld [vmem:[%s986] sm:$0xff]
  %v988 = vld [vmem:[%s986 + $0x8] sm:$0xff]
  %v989 = vld [vmem:[%s986 + $0x10] sm:$0xff]
  %v990 = vld [vmem:[%s986 + $0x18] sm:$0xff]
  %v991 = vpack.c.bf16 %v984, %v984
  %992 = vmatprep.subr.bf16.mxu0 %v564
  %993 = vmatpush1.bf16.msra.mxu0 %v563
  %994 = vmatprep.subr.bf16.mxu0 %v568
  %995 = vmatpush1.bf16.msra.mxu0 %v567
  %996 = vmatprep.subr.bf16.mxu0 %v572
  %997 = vmatpush1.bf16.msra.mxu0 %v571
  %998 = vmatprep.subr.bf16.mxu0 %v576
  %999 = vmatpush1.bf16.msra.mxu0 %v575
  %1000 = vmatprep.subr.bf16.mxu0 %v580
  %1001 = vmatpush1.bf16.msra.mxu0 %v579
  %1002 = vmatprep.subr.bf16.mxu0 %v584
  %1003 = vmatpush1.bf16.msra.mxu0 %v583
  %1004 = vmatprep.subr.bf16.mxu0 %v588
  %1005 = vmatpush1.bf16.msra.mxu0 %v587
  %1006 = vmatprep.subr.bf16.mxu0 %v592
  %1007 = vmatpush1.bf16.msra.mxu0 %v591
  %1008 = vmatprep.subr.bf16.mxu0 0
  %1009 = vmatpush1.bf16.msra.mxu0 0
  %1010 = vmatprep.subr.bf16.mxu0 0
  %1011 = vmatpush1.bf16.msra.mxu0 0
  %1012 = vmatprep.subr.bf16.mxu0 0
  %1013 = vmatpush1.bf16.msra.mxu0 0
  %1014 = vmatprep.subr.bf16.mxu0 0
  %1015 = vmatpush1.bf16.msra.mxu0 0
  %1016 = vmatprep.subr.bf16.mxu0 0
  %1017 = vmatpush1.bf16.msra.mxu0 0
  %1018 = vmatprep.subr.bf16.mxu0 0
  %1019 = vmatpush1.bf16.msra.mxu0 0
  %1020 = vmatprep.subr.bf16.mxu0 0
  %1021 = vmatpush1.bf16.msra.mxu0 0
  %1022 = vmatprep.subr.bf16.mxu0 0
  %1023 = vmatpush1.bf16.msra.mxu0 0
  %1024 = vmatprep.mubr.bf16.mxu0 0
  %1025 = vmatmul.mubr.bf16.gmra.mrb[0].mxu0 %v991
  %v1026 = vpop.f32.mrb[0].mxu0
  %v1027 = vadd.f32 0.0, %v1026
  %v1028 = vpop.f32.mrb[0].mxu0
  %v1029 = vadd.f32 0.0, %v1028
  %v1030 = vpop.f32.mrb[0].mxu0
  %v1031 = vpop.f32.mrb[0].mxu0
  %1032 = vdwg.mxu0
  %1033 = vmatprep.subr.bf16.mxu0 %v566
  %1034 = vmatpush1.bf16.msra.mxu0 %v565
  %1035 = vmatprep.subr.bf16.mxu0 %v570
  %1036 = vmatpush1.bf16.msra.mxu0 %v569
  %1037 = vmatprep.subr.bf16.mxu0 %v574
  %1038 = vmatpush1.bf16.msra.mxu0 %v573
  %1039 = vmatprep.subr.bf16.mxu0 %v578
  %1040 = vmatpush1.bf16.msra.mxu0 %v577
  %1041 = vmatprep.subr.bf16.mxu0 %v582
  %1042 = vmatpush1.bf16.msra.mxu0 %v581
  %1043 = vmatprep.subr.bf16.mxu0 %v586
  %1044 = vmatpush1.bf16.msra.mxu0 %v585
  %1045 = vmatprep.subr.bf16.mxu0 %v590
  %1046 = vmatpush1.bf16.msra.mxu0 %v589
  %1047 = vmatprep.subr.bf16.mxu0 %v594
  %1048 = vmatpush1.bf16.msra.mxu0 %v593
  %1049 = vmatprep.subr.bf16.mxu0 0
  %1050 = vmatpush1.bf16.msra.mxu0 0
  %1051 = vmatprep.subr.bf16.mxu0 0
  %1052 = vmatpush1.bf16.msra.mxu0 0
  %1053 = vmatprep.subr.bf16.mxu0 0
  %1054 = vmatpush1.bf16.msra.mxu0 0
  %1055 = vmatprep.subr.bf16.mxu0 0
  %1056 = vmatpush1.bf16.msra.mxu0 0
  %1057 = vmatprep.subr.bf16.mxu0 0
  %1058 = vmatpush1.bf16.msra.mxu0 0
  %1059 = vmatprep.subr.bf16.mxu0 0
  %1060 = vmatpush1.bf16.msra.mxu0 0
  %1061 = vmatprep.subr.bf16.mxu0 0
  %1062 = vmatpush1.bf16.msra.mxu0 0
  %1063 = vmatprep.subr.bf16.mxu0 0
  %1064 = vmatpush1.bf16.msra.mxu0 0
  %1065 = vmatprep.mubr.bf16.mxu0 0
  %1066 = vmatmul.mubr.bf16.gmra.mrb[0].mxu0 %v991
  %v1067 = vpop.f32.mrb[0].mxu0
  %v1068 = vadd.f32 0.0, %v1067
  %v1069 = vpop.f32.mrb[0].mxu0
  %v1070 = vadd.f32 0.0, %v1069
  %v1071 = vpop.f32.mrb[0].mxu0
  %v1072 = vpop.f32.mrb[0].mxu0
  %1073 = vdwg.mxu0
  %v1074 = vadd.f32 %v987, %v1027
  %v1075 = vadd.f32 %v988, %v1029
  %v1076 = vadd.f32 %v989, %v1068
  %v1077 = vadd.f32 %v990, %v1070
  %v1078 = vxor.u32 %v1074, 2147483648
  %v1079 = vxor.u32 %v1075, 2147483648
  %v1080 = vxor.u32 %v1076, 2147483648
  %v1081 = vmul.f32 %v1078, 1.442695
  %v1082 = vpow.pop %v1081
  %v1083 = vmul.f32 %v1079, 1.442695
  %v1084 = vpow.pop %v1083
  %v1085 = vmul.f32 %v1080, 1.442695
  %v1086 = vpow.pop %v1085
  %v1087 = vadd.f32 %v1082, 1.0
  %v1088 = vadd.f32 %v1084, 1.0
  %v1089 = vadd.f32 %v1086, 1.0
  %v1090 = vrcp.pop %v1087
  %v1091 = vmul.f32 1.0, %v1090
  %v1092 = vrcp.pop %v1088
  %v1093 = vmul.f32 1.0, %v1092
  %v1094 = vrcp.pop %v1089
  %v1095 = vmul.f32 1.0, %v1094
  %v1096 = vtanh.pop %v1077
  %v1097 = vmul.f32 %v1093, %v985
  %v1098 = vmul.f32 %v1091, %v1096
  %v1099 = vadd.f32 %v1097, %v1098
  %v1100 = vtanh.pop %v1099
  %v1101 = vmul.f32 %v1095, %v1100
  %1102 = vst [vmem:[#allocation4] sm:$0xff] %v1099
  %1103 = vst [vmem:[#allocation3] sm:$0xff] %v1101
  %s1104 = scalar_lea.vmem %s4, 24
  %1105 = vst [vmem:[%s1104] sm:$0xff] %v1101
  %v1106 = vld [vmem:[#allocation3] sm:$0xff]
  %v1107 = vld [vmem:[#allocation4] sm:$0xff]
  %s1108 = scalar_lea.vmem [#allocation2], 128
  %v1109 = vld [vmem:[%s1108] sm:$0xff]
  %v1110 = vld [vmem:[%s1108 + $0x8] sm:$0xff]
  %v1111 = vld [vmem:[%s1108 + $0x10] sm:$0xff]
  %v1112 = vld [vmem:[%s1108 + $0x18] sm:$0xff]
  %v1113 = vpack.c.bf16 %v1106, %v1106
  %1114 = vmatprep.subr.bf16.mxu0 %v564
  %1115 = vmatpush1.bf16.msra.mxu0 %v563
  %1116 = vmatprep.subr.bf16.mxu0 %v568
  %1117 = vmatpush1.bf16.msra.mxu0 %v567
  %1118 = vmatprep.subr.bf16.mxu0 %v572
  %1119 = vmatpush1.bf16.msra.mxu0 %v571
  %1120 = vmatprep.subr.bf16.mxu0 %v576
  %1121 = vmatpush1.bf16.msra.mxu0 %v575
  %1122 = vmatprep.subr.bf16.mxu0 %v580
  %1123 = vmatpush1.bf16.msra.mxu0 %v579
  %1124 = vmatprep.subr.bf16.mxu0 %v584
  %1125 = vmatpush1.bf16.msra.mxu0 %v583
  %1126 = vmatprep.subr.bf16.mxu0 %v588
  %1127 = vmatpush1.bf16.msra.mxu0 %v587
  %1128 = vmatprep.subr.bf16.mxu0 %v592
  %1129 = vmatpush1.bf16.msra.mxu0 %v591
  %1130 = vmatprep.subr.bf16.mxu0 0
  %1131 = vmatpush1.bf16.msra.mxu0 0
  %1132 = vmatprep.subr.bf16.mxu0 0
  %1133 = vmatpush1.bf16.msra.mxu0 0
  %1134 = vmatprep.subr.bf16.mxu0 0
  %1135 = vmatpush1.bf16.msra.mxu0 0
  %1136 = vmatprep.subr.bf16.mxu0 0
  %1137 = vmatpush1.bf16.msra.mxu0 0
  %1138 = vmatprep.subr.bf16.mxu0 0
  %1139 = vmatpush1.bf16.msra.mxu0 0
  %1140 = vmatprep.subr.bf16.mxu0 0
  %1141 = vmatpush1.bf16.msra.mxu0 0
  %1142 = vmatprep.subr.bf16.mxu0 0
  %1143 = vmatpush1.bf16.msra.mxu0 0
  %1144 = vmatprep.subr.bf16.mxu0 0
  %1145 = vmatpush1.bf16.msra.mxu0 0
  %1146 = vmatprep.mubr.bf16.mxu0 0
  %1147 = vmatmul.mubr.bf16.gmra.mrb[0].mxu0 %v1113
  %v1148 = vpop.f32.mrb[0].mxu0
  %v1149 = vadd.f32 0.0, %v1148
  %v1150 = vpop.f32.mrb[0].mxu0
  %v1151 = vadd.f32 0.0, %v1150
  %v1152 = vpop.f32.mrb[0].mxu0
  %v1153 = vpop.f32.mrb[0].mxu0
  %1154 = vdwg.mxu0
  %1155 = vmatprep.subr.bf16.mxu0 %v566
  %1156 = vmatpush1.bf16.msra.mxu0 %v565
  %1157 = vmatprep.subr.bf16.mxu0 %v570
  %1158 = vmatpush1.bf16.msra.mxu0 %v569
  %1159 = vmatprep.subr.bf16.mxu0 %v574
  %1160 = vmatpush1.bf16.msra.mxu0 %v573
  %1161 = vmatprep.subr.bf16.mxu0 %v578
  %1162 = vmatpush1.bf16.msra.mxu0 %v577
  %1163 = vmatprep.subr.bf16.mxu0 %v582
  %1164 = vmatpush1.bf16.msra.mxu0 %v581
  %1165 = vmatprep.subr.bf16.mxu0 %v586
  %1166 = vmatpush1.bf16.msra.mxu0 %v585
  %1167 = vmatprep.subr.bf16.mxu0 %v590
  %1168 = vmatpush1.bf16.msra.mxu0 %v589
  %1169 = vmatprep.subr.bf16.mxu0 %v594
  %1170 = vmatpush1.bf16.msra.mxu0 %v593
  %1171 = vmatprep.subr.bf16.mxu0 0
  %1172 = vmatpush1.bf16.msra.mxu0 0
  %1173 = vmatprep.subr.bf16.mxu0 0
  %1174 = vmatpush1.bf16.msra.mxu0 0
  %1175 = vmatprep.subr.bf16.mxu0 0
  %1176 = vmatpush1.bf16.msra.mxu0 0
  %1177 = vmatprep.subr.bf16.mxu0 0
  %1178 = vmatpush1.bf16.msra.mxu0 0
  %1179 = vmatprep.subr.bf16.mxu0 0
  %1180 = vmatpush1.bf16.msra.mxu0 0
  %1181 = vmatprep.subr.bf16.mxu0 0
  %1182 = vmatpush1.bf16.msra.mxu0 0
  %1183 = vmatprep.subr.bf16.mxu0 0
  %1184 = vmatpush1.bf16.msra.mxu0 0
  %1185 = vmatprep.subr.bf16.mxu0 0
  %1186 = vmatpush1.bf16.msra.mxu0 0
  %1187 = vmatprep.mubr.bf16.mxu0 0
  %1188 = vmatmul.mubr.bf16.gmra.mrb[0].mxu0 %v1113
  %v1189 = vpop.f32.mrb[0].mxu0
  %v1190 = vadd.f32 0.0, %v1189
  %v1191 = vpop.f32.mrb[0].mxu0
  %v1192 = vadd.f32 0.0, %v1191
  %v1193 = vpop.f32.mrb[0].mxu0
  %v1194 = vpop.f32.mrb[0].mxu0
  %1195 = vdwg.mxu0
  %v1196 = vadd.f32 %v1109, %v1149
  %v1197 = vadd.f32 %v1110, %v1151
  %v1198 = vadd.f32 %v1111, %v1190
  %v1199 = vadd.f32 %v1112, %v1192
  %v1200 = vxor.u32 %v1196, 2147483648
  %v1201 = vxor.u32 %v1197, 2147483648
  %v1202 = vxor.u32 %v1198, 2147483648
  %v1203 = vmul.f32 %v1200, 1.442695
  %v1204 = vpow.pop %v1203
  %v1205 = vmul.f32 %v1201, 1.442695
  %v1206 = vpow.pop %v1205
  %v1207 = vmul.f32 %v1202, 1.442695
  %v1208 = vpow.pop %v1207
  %v1209 = vadd.f32 %v1204, 1.0
  %v1210 = vadd.f32 %v1206, 1.0
  %v1211 = vadd.f32 %v1208, 1.0
  %v1212 = vrcp.pop %v1209
  %v1213 = vmul.f32 1.0, %v1212
  %v1214 = vrcp.pop %v1210
  %v1215 = vmul.f32 1.0, %v1214
  %v1216 = vrcp.pop %v1211
  %v1217 = vmul.f32 1.0, %v1216
  %v1218 = vtanh.pop %v1199
  %v1219 = vmul.f32 %v1215, %v1107
  %v1220 = vmul.f32 %v1213, %v1218
  %v1221 = vadd.f32 %v1219, %v1220
  %v1222 = vtanh.pop %v1221
  %v1223 = vmul.f32 %v1217, %v1222
  %1224 = vst [vmem:[#allocation4] sm:$0xff] %v1221
  %1225 = vst [vmem:[#allocation3] sm:$0xff] %v1223
  %s1226 = scalar_lea.vmem %s4, 32
  %1227 = vst [vmem:[%s1226] sm:$0xff] %v1223
  %v1228 = vld [vmem:[#allocation3] sm:$0xff]
  %v1229 = vld [vmem:[#allocation4] sm:$0xff]
  %s1230 = scalar_lea.vmem [#allocation2], 160
  %v1231 = vld [vmem:[%s1230] sm:$0xff]
  %v1232 = vld [vmem:[%s1230 + $0x8] sm:$0xff]
  %v1233 = vld [vmem:[%s1230 + $0x10] sm:$0xff]
  %v1234 = vld [vmem:[%s1230 + $0x18] sm:$0xff]
  %v1235 = vpack.c.bf16 %v1228, %v1228
  %1236 = vmatprep.subr.bf16.mxu0 %v564
  %1237 = vmatpush1.bf16.msra.mxu0 %v563
  %1238 = vmatprep.subr.bf16.mxu0 %v568
  %1239 = vmatpush1.bf16.msra.mxu0 %v567
  %1240 = vmatprep.subr.bf16.mxu0 %v572
  %1241 = vmatpush1.bf16.msra.mxu0 %v571
  %1242 = vmatprep.subr.bf16.mxu0 %v576
  %1243 = vmatpush1.bf16.msra.mxu0 %v575
  %1244 = vmatprep.subr.bf16.mxu0 %v580
  %1245 = vmatpush1.bf16.msra.mxu0 %v579
  %1246 = vmatprep.subr.bf16.mxu0 %v584
  %1247 = vmatpush1.bf16.msra.mxu0 %v583
  %1248 = vmatprep.subr.bf16.mxu0 %v588
  %1249 = vmatpush1.bf16.msra.mxu0 %v587
  %1250 = vmatprep.subr.bf16.mxu0 %v592
  %1251 = vmatpush1.bf16.msra.mxu0 %v591
  %1252 = vmatprep.subr.bf16.mxu0 0
  %1253 = vmatpush1.bf16.msra.mxu0 0
  %1254 = vmatprep.subr.bf16.mxu0 0
  %1255 = vmatpush1.bf16.msra.mxu0 0
  %1256 = vmatprep.subr.bf16.mxu0 0
  %1257 = vmatpush1.bf16.msra.mxu0 0
  %1258 = vmatprep.subr.bf16.mxu0 0
  %1259 = vmatpush1.bf16.msra.mxu0 0
  %1260 = vmatprep.subr.bf16.mxu0 0
  %1261 = vmatpush1.bf16.msra.mxu0 0
  %1262 = vmatprep.subr.bf16.mxu0 0
  %1263 = vmatpush1.bf16.msra.mxu0 0
  %1264 = vmatprep.subr.bf16.mxu0 0
  %1265 = vmatpush1.bf16.msra.mxu0 0
  %1266 = vmatprep.subr.bf16.mxu0 0
  %1267 = vmatpush1.bf16.msra.mxu0 0
  %1268 = vmatprep.mubr.bf16.mxu0 0
  %1269 = vmatmul.mubr.bf16.gmra.mrb[0].mxu0 %v1235
  %v1270 = vpop.f32.mrb[0].mxu0
  %v1271 = vadd.f32 0.0, %v1270
  %v1272 = vpop.f32.mrb[0].mxu0
  %v1273 = vadd.f32 0.0, %v1272
  %v1274 = vpop.f32.mrb[0].mxu0
  %v1275 = vpop.f32.mrb[0].mxu0
  %1276 = vdwg.mxu0
  %1277 = vmatprep.subr.bf16.mxu0 %v566
  %1278 = vmatpush1.bf16.msra.mxu0 %v565
  %1279 = vmatprep.subr.bf16.mxu0 %v570
  %1280 = vmatpush1.bf16.msra.mxu0 %v569
  %1281 = vmatprep.subr.bf16.mxu0 %v574
  %1282 = vmatpush1.bf16.msra.mxu0 %v573
  %1283 = vmatprep.subr.bf16.mxu0 %v578
  %1284 = vmatpush1.bf16.msra.mxu0 %v577
  %1285 = vmatprep.subr.bf16.mxu0 %v582
  %1286 = vmatpush1.bf16.msra.mxu0 %v581
  %1287 = vmatprep.subr.bf16.mxu0 %v586
  %1288 = vmatpush1.bf16.msra.mxu0 %v585
  %1289 = vmatprep.subr.bf16.mxu0 %v590
  %1290 = vmatpush1.bf16.msra.mxu0 %v589
  %1291 = vmatprep.subr.bf16.mxu0 %v594
  %1292 = vmatpush1.bf16.msra.mxu0 %v593
  %1293 = vmatprep.subr.bf16.mxu0 0
  %1294 = vmatpush1.bf16.msra.mxu0 0
  %1295 = vmatprep.subr.bf16.mxu0 0
  %1296 = vmatpush1.bf16.msra.mxu0 0
  %1297 = vmatprep.subr.bf16.mxu0 0
  %1298 = vmatpush1.bf16.msra.mxu0 0
  %1299 = vmatprep.subr.bf16.mxu0 0
  %1300 = vmatpush1.bf16.msra.mxu0 0
  %1301 = vmatprep.subr.bf16.mxu0 0
  %1302 = vmatpush1.bf16.msra.mxu0 0
  %1303 = vmatprep.subr.bf16.mxu0 0
  %1304 = vmatpush1.bf16.msra.mxu0 0
  %1305 = vmatprep.subr.bf16.mxu0 0
  %1306 = vmatpush1.bf16.msra.mxu0 0
  %1307 = vmatprep.subr.bf16.mxu0 0
  %1308 = vmatpush1.bf16.msra.mxu0 0
  %1309 = vmatprep.mubr.bf16.mxu0 0
  %1310 = vmatmul.mubr.bf16.gmra.mrb[0].mxu0 %v1235
  %v1311 = vpop.f32.mrb[0].mxu0
  %v1312 = vadd.f32 0.0, %v1311
  %v1313 = vpop.f32.mrb[0].mxu0
  %v1314 = vadd.f32 0.0, %v1313
  %v1315 = vpop.f32.mrb[0].mxu0
  %v1316 = vpop.f32.mrb[0].mxu0
  %1317 = vdwg.mxu0
  %v1318 = vadd.f32 %v1231, %v1271
  %v1319 = vadd.f32 %v1232, %v1273
  %v1320 = vadd.f32 %v1233, %v1312
  %v1321 = vadd.f32 %v1234, %v1314
  %v1322 = vxor.u32 %v1318, 2147483648
  %v1323 = vxor.u32 %v1319, 2147483648
  %v1324 = vxor.u32 %v1320, 2147483648
  %v1325 = vmul.f32 %v1322, 1.442695
  %v1326 = vpow.pop %v1325
  %v1327 = vmul.f32 %v1323, 1.442695
  %v1328 = vpow.pop %v1327
  %v1329 = vmul.f32 %v1324, 1.442695
  %v1330 = vpow.pop %v1329
  %v1331 = vadd.f32 %v1326, 1.0
  %v1332 = vadd.f32 %v1328, 1.0
  %v1333 = vadd.f32 %v1330, 1.0
  %v1334 = vrcp.pop %v1331
  %v1335 = vmul.f32 1.0, %v1334
  %v1336 = vrcp.pop %v1332
  %v1337 = vmul.f32 1.0, %v1336
  %v1338 = vrcp.pop %v1333
  %v1339 = vmul.f32 1.0, %v1338
  %v1340 = vtanh.pop %v1321
  %v1341 = vmul.f32 %v1337, %v1229
  %v1342 = vmul.f32 %v1335, %v1340
  %v1343 = vadd.f32 %v1341, %v1342
  %v1344 = vtanh.pop %v1343
  %v1345 = vmul.f32 %v1339, %v1344
  %1346 = vst [vmem:[#allocation4] sm:$0xff] %v1343
  %1347 = vst [vmem:[#allocation3] sm:$0xff] %v1345
  %s1348 = scalar_lea.vmem %s4, 40
  %1349 = vst [vmem:[%s1348] sm:$0xff] %v1345
  %v1350 = vld [vmem:[#allocation3] sm:$0xff]
  %v1351 = vld [vmem:[#allocation4] sm:$0xff]
  %s1352 = scalar_lea.vmem [#allocation2], 192
  %v1353 = vld [vmem:[%s1352] sm:$0xff]
  %v1354 = vld [vmem:[%s1352 + $0x8] sm:$0xff]
  %v1355 = vld [vmem:[%s1352 + $0x10] sm:$0xff]
  %v1356 = vld [vmem:[%s1352 + $0x18] sm:$0xff]
  %v1357 = vpack.c.bf16 %v1350, %v1350
  %1358 = vmatprep.subr.bf16.mxu0 %v564
  %1359 = vmatpush1.bf16.msra.mxu0 %v563
  %1360 = vmatprep.subr.bf16.mxu0 %v568
  %1361 = vmatpush1.bf16.msra.mxu0 %v567
  %1362 = vmatprep.subr.bf16.mxu0 %v572
  %1363 = vmatpush1.bf16.msra.mxu0 %v571
  %1364 = vmatprep.subr.bf16.mxu0 %v576
  %1365 = vmatpush1.bf16.msra.mxu0 %v575
  %1366 = vmatprep.subr.bf16.mxu0 %v580
  %1367 = vmatpush1.bf16.msra.mxu0 %v579
  %1368 = vmatprep.subr.bf16.mxu0 %v584
  %1369 = vmatpush1.bf16.msra.mxu0 %v583
  %1370 = vmatprep.subr.bf16.mxu0 %v588
  %1371 = vmatpush1.bf16.msra.mxu0 %v587
  %1372 = vmatprep.subr.bf16.mxu0 %v592
  %1373 = vmatpush1.bf16.msra.mxu0 %v591
  %1374 = vmatprep.subr.bf16.mxu0 0
  %1375 = vmatpush1.bf16.msra.mxu0 0
  %1376 = vmatprep.subr.bf16.mxu0 0
  %1377 = vmatpush1.bf16.msra.mxu0 0
  %1378 = vmatprep.subr.bf16.mxu0 0
  %1379 = vmatpush1.bf16.msra.mxu0 0
  %1380 = vmatprep.subr.bf16.mxu0 0
  %1381 = vmatpush1.bf16.msra.mxu0 0
  %1382 = vmatprep.subr.bf16.mxu0 0
  %1383 = vmatpush1.bf16.msra.mxu0 0
  %1384 = vmatprep.subr.bf16.mxu0 0
  %1385 = vmatpush1.bf16.msra.mxu0 0
  %1386 = vmatprep.subr.bf16.mxu0 0
  %1387 = vmatpush1.bf16.msra.mxu0 0
  %1388 = vmatprep.subr.bf16.mxu0 0
  %1389 = vmatpush1.bf16.msra.mxu0 0
  %1390 = vmatprep.mubr.bf16.mxu0 0
  %1391 = vmatmul.mubr.bf16.gmra.mrb[0].mxu0 %v1357
  %v1392 = vpop.f32.mrb[0].mxu0
  %v1393 = vadd.f32 0.0, %v1392
  %v1394 = vpop.f32.mrb[0].mxu0
  %v1395 = vadd.f32 0.0, %v1394
  %v1396 = vpop.f32.mrb[0].mxu0
  %v1397 = vpop.f32.mrb[0].mxu0
  %1398 = vdwg.mxu0
  %1399 = vmatprep.subr.bf16.mxu0 %v566
  %1400 = vmatpush1.bf16.msra.mxu0 %v565
  %1401 = vmatprep.subr.bf16.mxu0 %v570
  %1402 = vmatpush1.bf16.msra.mxu0 %v569
  %1403 = vmatprep.subr.bf16.mxu0 %v574
  %1404 = vmatpush1.bf16.msra.mxu0 %v573
  %1405 = vmatprep.subr.bf16.mxu0 %v578
  %1406 = vmatpush1.bf16.msra.mxu0 %v577
  %1407 = vmatprep.subr.bf16.mxu0 %v582
  %1408 = vmatpush1.bf16.msra.mxu0 %v581
  %1409 = vmatprep.subr.bf16.mxu0 %v586
  %1410 = vmatpush1.bf16.msra.mxu0 %v585
  %1411 = vmatprep.subr.bf16.mxu0 %v590
  %1412 = vmatpush1.bf16.msra.mxu0 %v589
  %1413 = vmatprep.subr.bf16.mxu0 %v594
  %1414 = vmatpush1.bf16.msra.mxu0 %v593
  %1415 = vmatprep.subr.bf16.mxu0 0
  %1416 = vmatpush1.bf16.msra.mxu0 0
  %1417 = vmatprep.subr.bf16.mxu0 0
  %1418 = vmatpush1.bf16.msra.mxu0 0
  %1419 = vmatprep.subr.bf16.mxu0 0
  %1420 = vmatpush1.bf16.msra.mxu0 0
  %1421 = vmatprep.subr.bf16.mxu0 0
  %1422 = vmatpush1.bf16.msra.mxu0 0
  %1423 = vmatprep.subr.bf16.mxu0 0
  %1424 = vmatpush1.bf16.msra.mxu0 0
  %1425 = vmatprep.subr.bf16.mxu0 0
  %1426 = vmatpush1.bf16.msra.mxu0 0
  %1427 = vmatprep.subr.bf16.mxu0 0
  %1428 = vmatpush1.bf16.msra.mxu0 0
  %1429 = vmatprep.subr.bf16.mxu0 0
  %1430 = vmatpush1.bf16.msra.mxu0 0
  %1431 = vmatprep.mubr.bf16.mxu0 0
  %1432 = vmatmul.mubr.bf16.gmra.mrb[0].mxu0 %v1357
  %v1433 = vpop.f32.mrb[0].mxu0
  %v1434 = vadd.f32 0.0, %v1433
  %v1435 = vpop.f32.mrb[0].mxu0
  %v1436 = vadd.f32 0.0, %v1435
  %v1437 = vpop.f32.mrb[0].mxu0
  %v1438 = vpop.f32.mrb[0].mxu0
  %1439 = vdwg.mxu0
  %v1440 = vadd.f32 %v1353, %v1393
  %v1441 = vadd.f32 %v1354, %v1395
  %v1442 = vadd.f32 %v1355, %v1434
  %v1443 = vadd.f32 %v1356, %v1436
  %v1444 = vxor.u32 %v1440, 2147483648
  %v1445 = vxor.u32 %v1441, 2147483648
  %v1446 = vxor.u32 %v1442, 2147483648
  %v1447 = vmul.f32 %v1444, 1.442695
  %v1448 = vpow.pop %v1447
  %v1449 = vmul.f32 %v1445, 1.442695
  %v1450 = vpow.pop %v1449
  %v1451 = vmul.f32 %v1446, 1.442695
  %v1452 = vpow.pop %v1451
  %v1453 = vadd.f32 %v1448, 1.0
  %v1454 = vadd.f32 %v1450, 1.0
  %v1455 = vadd.f32 %v1452, 1.0
  %v1456 = vrcp.pop %v1453
  %v1457 = vmul.f32 1.0, %v1456
  %v1458 = vrcp.pop %v1454
  %v1459 = vmul.f32 1.0, %v1458
  %v1460 = vrcp.pop %v1455
  %v1461 = vmul.f32 1.0, %v1460
  %v1462 = vtanh.pop %v1443
  %v1463 = vmul.f32 %v1459, %v1351
  %v1464 = vmul.f32 %v1457, %v1462
  %v1465 = vadd.f32 %v1463, %v1464
  %v1466 = vtanh.pop %v1465
  %v1467 = vmul.f32 %v1461, %v1466
  %1468 = vst [vmem:[#allocation4] sm:$0xff] %v1465
  %1469 = vst [vmem:[#allocation3] sm:$0xff] %v1467
  %s1470 = scalar_lea.vmem %s4, 48
  %1471 = vst [vmem:[%s1470] sm:$0xff] %v1467
  %v1472 = vld [vmem:[#allocation3] sm:$0xff]
  %v1473 = vld [vmem:[#allocation4] sm:$0xff]
  %s1474 = scalar_lea.vmem [#allocation2], 224
  %v1475 = vld [vmem:[%s1474] sm:$0xff]
  %v1476 = vld [vmem:[%s1474 + $0x8] sm:$0xff]
  %v1477 = vld [vmem:[%s1474 + $0x10] sm:$0xff]
  %v1478 = vld [vmem:[%s1474 + $0x18] sm:$0xff]
  %v1479 = vpack.c.bf16 %v1472, %v1472
  %1480 = vmatprep.subr.bf16.mxu0 %v564
  %1481 = vmatpush1.bf16.msra.mxu0 %v563
  %1482 = vmatprep.subr.bf16.mxu0 %v568
  %1483 = vmatpush1.bf16.msra.mxu0 %v567
  %1484 = vmatprep.subr.bf16.mxu0 %v572
  %1485 = vmatpush1.bf16.msra.mxu0 %v571
  %1486 = vmatprep.subr.bf16.mxu0 %v576
  %1487 = vmatpush1.bf16.msra.mxu0 %v575
  %1488 = vmatprep.subr.bf16.mxu0 %v580
  %1489 = vmatpush1.bf16.msra.mxu0 %v579
  %1490 = vmatprep.subr.bf16.mxu0 %v584
  %1491 = vmatpush1.bf16.msra.mxu0 %v583
  %1492 = vmatprep.subr.bf16.mxu0 %v588
  %1493 = vmatpush1.bf16.msra.mxu0 %v587
  %1494 = vmatprep.subr.bf16.mxu0 %v592
  %1495 = vmatpush1.bf16.msra.mxu0 %v591
  %1496 = vmatprep.subr.bf16.mxu0 0
  %1497 = vmatpush1.bf16.msra.mxu0 0
  %1498 = vmatprep.subr.bf16.mxu0 0
  %1499 = vmatpush1.bf16.msra.mxu0 0
  %1500 = vmatprep.subr.bf16.mxu0 0
  %1501 = vmatpush1.bf16.msra.mxu0 0
  %1502 = vmatprep.subr.bf16.mxu0 0
  %1503 = vmatpush1.bf16.msra.mxu0 0
  %1504 = vmatprep.subr.bf16.mxu0 0
  %1505 = vmatpush1.bf16.msra.mxu0 0
  %1506 = vmatprep.subr.bf16.mxu0 0
  %1507 = vmatpush1.bf16.msra.mxu0 0
  %1508 = vmatprep.subr.bf16.mxu0 0
  %1509 = vmatpush1.bf16.msra.mxu0 0
  %1510 = vmatprep.subr.bf16.mxu0 0
  %1511 = vmatpush1.bf16.msra.mxu0 0
  %1512 = vmatprep.mubr.bf16.mxu0 0
  %1513 = vmatmul.mubr.bf16.gmra.mrb[0].mxu0 %v1479
  %v1514 = vpop.f32.mrb[0].mxu0
  %v1515 = vadd.f32 0.0, %v1514
  %v1516 = vpop.f32.mrb[0].mxu0
  %v1517 = vadd.f32 0.0, %v1516
  %v1518 = vpop.f32.mrb[0].mxu0
  %v1519 = vpop.f32.mrb[0].mxu0
  %1520 = vdwg.mxu0
  %1521 = vmatprep.subr.bf16.mxu0 %v566
  %1522 = vmatpush1.bf16.msra.mxu0 %v565
  %1523 = vmatprep.subr.bf16.mxu0 %v570
  %1524 = vmatpush1.bf16.msra.mxu0 %v569
  %1525 = vmatprep.subr.bf16.mxu0 %v574
  %1526 = vmatpush1.bf16.msra.mxu0 %v573
  %1527 = vmatprep.subr.bf16.mxu0 %v578
  %1528 = vmatpush1.bf16.msra.mxu0 %v577
  %1529 = vmatprep.subr.bf16.mxu0 %v582
  %1530 = vmatpush1.bf16.msra.mxu0 %v581
  %1531 = vmatprep.subr.bf16.mxu0 %v586
  %1532 = vmatpush1.bf16.msra.mxu0 %v585
  %1533 = vmatprep.subr.bf16.mxu0 %v590
  %1534 = vmatpush1.bf16.msra.mxu0 %v589
  %1535 = vmatprep.subr.bf16.mxu0 %v594
  %1536 = vmatpush1.bf16.msra.mxu0 %v593
  %1537 = vmatprep.subr.bf16.mxu0 0
  %1538 = vmatpush1.bf16.msra.mxu0 0
  %1539 = vmatprep.subr.bf16.mxu0 0
  %1540 = vmatpush1.bf16.msra.mxu0 0
  %1541 = vmatprep.subr.bf16.mxu0 0
  %1542 = vmatpush1.bf16.msra.mxu0 0
  %1543 = vmatprep.subr.bf16.mxu0 0
  %1544 = vmatpush1.bf16.msra.mxu0 0
  %1545 = vmatprep.subr.bf16.mxu0 0
  %1546 = vmatpush1.bf16.msra.mxu0 0
  %1547 = vmatprep.subr.bf16.mxu0 0
  %1548 = vmatpush1.bf16.msra.mxu0 0
  %1549 = vmatprep.subr.bf16.mxu0 0
  %1550 = vmatpush1.bf16.msra.mxu0 0
  %1551 = vmatprep.subr.bf16.mxu0 0
  %1552 = vmatpush1.bf16.msra.mxu0 0
  %1553 = vmatprep.mubr.bf16.mxu0 0
  %1554 = vmatmul.mubr.bf16.gmra.mrb[0].mxu0 %v1479
  %v1555 = vpop.f32.mrb[0].mxu0
  %v1556 = vadd.f32 0.0, %v1555
  %v1557 = vpop.f32.mrb[0].mxu0
  %v1558 = vadd.f32 0.0, %v1557
  %v1559 = vpop.f32.mrb[0].mxu0
  %v1560 = vpop.f32.mrb[0].mxu0
  %1561 = vdwg.mxu0
  %v1562 = vadd.f32 %v1475, %v1515
  %v1563 = vadd.f32 %v1476, %v1517
  %v1564 = vadd.f32 %v1477, %v1556
  %v1565 = vadd.f32 %v1478, %v1558
  %v1566 = vxor.u32 %v1562, 2147483648
  %v1567 = vxor.u32 %v1563, 2147483648
  %v1568 = vxor.u32 %v1564, 2147483648
  %v1569 = vmul.f32 %v1566, 1.442695
  %v1570 = vpow.pop %v1569
  %v1571 = vmul.f32 %v1567, 1.442695
  %v1572 = vpow.pop %v1571
  %v1573 = vmul.f32 %v1568, 1.442695
  %v1574 = vpow.pop %v1573
  %v1575 = vadd.f32 %v1570, 1.0
  %v1576 = vadd.f32 %v1572, 1.0
  %v1577 = vadd.f32 %v1574, 1.0
  %v1578 = vrcp.pop %v1575
  %v1579 = vmul.f32 1.0, %v1578
  %v1580 = vrcp.pop %v1576
  %v1581 = vmul.f32 1.0, %v1580
  %v1582 = vrcp.pop %v1577
  %v1583 = vmul.f32 1.0, %v1582
  %v1584 = vtanh.pop %v1565
  %v1585 = vmul.f32 %v1581, %v1473
  %v1586 = vmul.f32 %v1579, %v1584
  %v1587 = vadd.f32 %v1585, %v1586
  %v1588 = vtanh.pop %v1587
  %v1589 = vmul.f32 %v1583, %v1588
  %1590 = vst [vmem:[#allocation4] sm:$0xff] %v1587
  %1591 = vst [vmem:[#allocation3] sm:$0xff] %v1589
  %s1592 = scalar_lea.vmem %s4, 56
  %1593 = vst [vmem:[%s1592] sm:$0xff] %v1589
  // Predicated region
  $region22: #{lrnn_forward.3} parent=0 // pred_check
    _
  $region23: #{lrnn_forward.3} parent=0 // pred_check_branch
    %1595 = sbr.rel (0) target = $region25
  $region24: #{lrnn_forward.3} parent=0 // pred_region
    _
  $region25: #{lrnn_forward.3} parent=0 // pred_fallthru
    _
  // Predicated region
  $region26: #{lrnn_forward.3} parent=0 // pred_check
    _
  $region27: #{lrnn_forward.3} parent=0 // pred_check_branch
    %1597 = sbr.rel (0) target = $region29
  $region28: #{lrnn_forward.3} parent=0 // pred_region
    _
  $region29: #{lrnn_forward.3} parent=0 // pred_fallthru
    _

// kernel: lrnn_forward.2
$region0: #{lrnn_forward.2}
  #allocation0 [shape = 'u32[]', space=smem, size = 0x4, offset = 0x4, fixed_abs, tag = 'smem constant byte address 0x4 - core index']
  #allocation1 [shape = 'u32[144,128]{1,0:T(1,128)}', space=vmem, size = 0x12000, scoped, tag = 'internal scratch']
  #allocation2 [shape = 'f32[8,8,512]{2,1,0:T(8,128)}', space=vmem, size = 0x20000, scoped, tag = 'scratch operand']
  #allocation3 [shape = 'f32[8,128]{1,0:T(8,128)}', space=vmem, size = 0x1000, scoped, tag = 'scratch operand']
  #allocation4 [shape = 'f32[8,128]{1,0:T(8,128)}', space=vmem, size = 0x1000, scoped, tag = 'scratch operand']
  %s0 = inlined_call_operand.vmem [shape: f32[8,8,128], index: 0, kind: input, shape index: {}]
  %s1 = inlined_call_operand.hbm [shape: bf16[128,512], index: 1, kind: input, shape index: {}]
  %s2 = inlined_call_operand.hbm [shape: bf16[128,512], index: 2, kind: input, shape index: {}]
  %s3 = inlined_call_operand.vmem [shape: f32[1,512], index: 3, kind: input, shape index: {}]
  %s4 = inlined_call_operand.vmem [shape: f32[8,8,128], index: 4, kind: output, shape index: {}]
  %s5 = sld [smem:[#allocation0]]
  $region38: #{lrnn_forward.2} parent=0
    _
  %s7 = ssub.s32 1, %s5
  %s8 = scalar_select 0, %s7, %s5
  $region1: #{lrnn_forward.2} parent=0
    #allocation5 [shape = 'u8[131072]{0}', space=vmem, size = 0x20000, scoped, tag = 'input window, operand 1, single buffered']
    #allocation6 [shape = 's32[1]{0}', space=sflag, size = 0x4, scoped, tag = 'scoped memory for lrnn_forward.2']
    #allocation7 [shape = 'u8[131072]{0}', space=vmem, size = 0x20000, scoped, tag = 'input window, operand 2, single buffered']
    #allocation8 [shape = 's32[1]{0}', space=sflag, size = 0x4, scoped, tag = 'scoped memory for lrnn_forward.2']
    %9 = vsyncpa [#allocation6], 0
    %10 = vsyncpa [#allocation8], 0
    // Predicated region
    $region2: #{lrnn_forward.2} parent=1 // pred_check
      _
    $region3: #{lrnn_forward.2} parent=1 // pred_check_branch
      %12 = sbr.rel (0) target = $region5
    $region4: #{lrnn_forward.2} parent=1 // pred_region
      _
    $region5: #{lrnn_forward.2} parent=1 // pred_fallthru
      _
    // Predicated region
    $region6: #{lrnn_forward.2} parent=1 // pred_check
      _
    $region7: #{lrnn_forward.2} parent=1 // pred_check_branch
      %14 = sbr.rel (0) target = $region9
    $region8: #{lrnn_forward.2} parent=1 // pred_region
      %s16 = ssub.s32 4096, 4096
      %17 = vsyncadd [#allocation6], %s16
      %s18 = sshll.u32 [#allocation5], 4
      %s19 = int_to_ptr.vmem [resolvable:$true] %s18
      %24 = dma.hbm_to_vmem [thread:$0]  %s1, 4096, %s19, [#allocation6], 256, 256, 16
    $region9: #{lrnn_forward.2} parent=1 // pred_fallthru
      _
    // Predicated region
    $region10: #{lrnn_forward.2} parent=1 // pred_check
      _
    $region11: #{lrnn_forward.2} parent=1 // pred_check_branch
      %26 = sbr.rel (0) target = $region13
    $region12: #{lrnn_forward.2} parent=1 // pred_region
      %s28 = ssub.s32 4096, 4096
      %29 = vsyncadd [#allocation8], %s28
      %s30 = sshll.u32 [#allocation7], 4
      %s31 = int_to_ptr.vmem [resolvable:$true] %s30
      %36 = dma.hbm_to_vmem [thread:$0]  %s2, 4096, %s31, [#allocation8], 256, 256, 16
    $region13: #{lrnn_forward.2} parent=1 // pred_fallthru
      _
    // Predicated region
    $region14: #{lrnn_forward.2} parent=1 // pred_check
      _
    $region15: #{lrnn_forward.2} parent=1 // pred_check_branch
      %38 = sbr.rel (0) target = $region17
    $region16: #{lrnn_forward.2} parent=1 // pred_region
      _
    $region17: #{lrnn_forward.2} parent=1 // pred_fallthru
      _
    // Predicated region
    $region18: #{lrnn_forward.2} parent=1 // pred_check
      _
    $region19: #{lrnn_forward.2} parent=1 // pred_check_branch
      %40 = sbr.rel (0) target = $region21
    $region20: #{lrnn_forward.2} parent=1 // pred_region
      %41 = dma.done [#allocation6], 4096
    $region21: #{lrnn_forward.2} parent=1 // pred_fallthru
      _
    // Predicated region
    $region22: #{lrnn_forward.2} parent=1 // pred_check
      _
    $region23: #{lrnn_forward.2} parent=1 // pred_check_branch
      %43 = sbr.rel (0) target = $region25
    $region24: #{lrnn_forward.2} parent=1 // pred_region
      %44 = dma.done [#allocation8], 4096
    $region25: #{lrnn_forward.2} parent=1 // pred_fallthru
      _
    %p46 = scmp.eq.s32.totalorder 0, 0
    // Predicated region
    $region26: #{lrnn_forward.2} parent=1 // pred_check
      %p47 = pneg %p46
    $region27: #{lrnn_forward.2} parent=1 // pred_check_branch
      %49 = sbr.rel (%p47) target = $region29
    $region28: #{lrnn_forward.2} parent=1 // pred_region
      %50 = vst [vmem:[#allocation3] sm:$0xff] 0.0
      %51 = vst [vmem:[#allocation4] sm:$0xff] 0.0
    $region29: #{lrnn_forward.2} parent=1 // pred_fallthru
      _
    %v52 = vld [vmem:[#allocation5] sm:$0xff]
    %v53 = vld [vmem:[#allocation5 + $0x8] sm:$0xff]
    %v54 = vld [vmem:[#allocation5 + $0x10] sm:$0xff]
    %v55 = vld [vmem:[#allocation5 + $0x18] sm:$0xff]
    %v56 = vld [vmem:[#allocation5 + $0x20] sm:$0xff]
    %v57 = vld [vmem:[#allocation5 + $0x28] sm:$0xff]
    %v58 = vld [vmem:[#allocation5 + $0x30] sm:$0xff]
    %v59 = vld [vmem:[#allocation5 + $0x38] sm:$0xff]
    %v60 = vld [vmem:[#allocation5 + $0x40] sm:$0xff]
    %v61 = vld [vmem:[#allocation5 + $0x48] sm:$0xff]
    %v62 = vld [vmem:[#allocation5 + $0x50] sm:$0xff]
    %v63 = vld [vmem:[#allocation5 + $0x58] sm:$0xff]
    %v64 = vld [vmem:[#allocation5 + $0x60] sm:$0xff]
    %v65 = vld [vmem:[#allocation5 + $0x68] sm:$0xff]
    %v66 = vld [vmem:[#allocation5 + $0x70] sm:$0xff]
    %v67 = vld [vmem:[#allocation5 + $0x78] sm:$0xff]
    %v68 = vld [vmem:[#allocation5 + $0x80] sm:$0xff]
    %v69 = vld [vmem:[#allocation5 + $0x88] sm:$0xff]
    %v70 = vld [vmem:[#allocation5 + $0x90] sm:$0xff]
    %v71 = vld [vmem:[#allocation5 + $0x98] sm:$0xff]
    %v72 = vld [vmem:[#allocation5 + $0xa0] sm:$0xff]
    %v73 = vld [vmem:[#allocation5 + $0xa8] sm:$0xff]
    %v74 = vld [vmem:[#allocation5 + $0xb0] sm:$0xff]
    %v75 = vld [vmem:[#allocation5 + $0xb8] sm:$0xff]
    %v76 = vld [vmem:[#allocation5 + $0xc0] sm:$0xff]
    %v77 = vld [vmem:[#allocation5 + $0xc8] sm:$0xff]
    %v78 = vld [vmem:[#allocation5 + $0xd0] sm:$0xff]
    %v79 = vld [vmem:[#allocation5 + $0xd8] sm:$0xff]
    %v80 = vld [vmem:[#allocation5 + $0xe0] sm:$0xff]
    %v81 = vld [vmem:[#allocation5 + $0xe8] sm:$0xff]
    %v82 = vld [vmem:[#allocation5 + $0xf0] sm:$0xff]
    %v83 = vld [vmem:[#allocation5 + $0xf8] sm:$0xff]
    %v84 = vld [vmem:[%s3] sm:$0xf]
    %v85 = vld [vmem:[%s0] sm:$0xff]
    %v86 = vld [vmem:[%s0 + $0x8] sm:$0xff]
    %v87 = vld [vmem:[%s0 + $0x10] sm:$0xff]
    %v88 = vld [vmem:[%s0 + $0x18] sm:$0xff]
    %v89 = vld [vmem:[%s0 + $0x20] sm:$0xff]
    %v90 = vld [vmem:[%s0 + $0x28] sm:$0xff]
    %v91 = vld [vmem:[%s0 + $0x30] sm:$0xff]
    %v92 = vld [vmem:[%s0 + $0x38] sm:$0xff]
    %v93 = vpack.c.bf16 %v86, %v85
    %v94 = vpack.c.bf16 %v88, %v87
    %v95 = vpack.c.bf16 %v90, %v89
    %v96 = vpack.c.bf16 %v92, %v91
    %v98 = vlaneseq
    %v99 = vshrl.u32 %v98, 7
    %v100 = vsub.s32 0, %v99
    %v101 = vrot.slane %v84, %v100
    %v102 = vlaneseq
    %v103 = vshrl.u32 %v102, 7
    %v104 = vsub.s32 1, %v103
    %v105 = vrot.slane %v84, %v104
    %v106 = vlaneseq
    %v107 = vshrl.u32 %v106, 7
    %v108 = vsub.s32 2, %v107
    %v109 = vrot.slane %v84, %v108
    %v110 = vlaneseq
    %v111 = vshrl.u32 %v110, 7
    %v112 = vsub.s32 3, %v111
    %v113 = vrot.slane %v84, %v112
    %v150 = vunpack.c.l.b16 %v52
    %v151 = vunpack.c.h.b16 %v52
    %v152 = vunpack.c.l.b16 %v53
    %v153 = vunpack.c.h.b16 %v53
    %v154 = vunpack.c.l.b16 %v54
    %v155 = vunpack.c.h.b16 %v54
    %v156 = vunpack.c.l.b16 %v55
    %v157 = vunpack.c.h.b16 %v55
    %v158 = vunpack.c.l.b16 %v56
    %v159 = vunpack.c.h.b16 %v56
    %v160 = vunpack.c.l.b16 %v57
    %v161 = vunpack.c.h.b16 %v57
    %v162 = vunpack.c.l.b16 %v58
    %v163 = vunpack.c.h.b16 %v58
    %v164 = vunpack.c.l.b16 %v59
    %v165 = vunpack.c.h.b16 %v59
    %v166 = vunpack.c.l.b16 %v60
    %v167 = vunpack.c.h.b16 %v60
    %v168 = vunpack.c.l.b16 %v61
    %v169 = vunpack.c.h.b16 %v61
    %v170 = vunpack.c.l.b16 %v62
    %v171 = vunpack.c.h.b16 %v62
    %v172 = vunpack.c.l.b16 %v63
    %v173 = vunpack.c.h.b16 %v63
    %v174 = vunpack.c.l.b16 %v64
    %v175 = vunpack.c.h.b16 %v64
    %v176 = vunpack.c.l.b16 %v65
    %v177 = vunpack.c.h.b16 %v65
    %v178 = vunpack.c.l.b16 %v66
    %v179 = vunpack.c.h.b16 %v66
    %v180 = vunpack.c.l.b16 %v67
    %v181 = vunpack.c.h.b16 %v67
    %v182 = vunpack.c.l.b16 %v68
    %v183 = vunpack.c.h.b16 %v68
    %v184 = vunpack.c.l.b16 %v69
    %v185 = vunpack.c.h.b16 %v69
    %v186 = vunpack.c.l.b16 %v70
    %v187 = vunpack.c.h.b16 %v70
    %v188 = vunpack.c.l.b16 %v71
    %v189 = vunpack.c.h.b16 %v71
    %v190 = vunpack.c.l.b16 %v72
    %v191 = vunpack.c.h.b16 %v72
    %v192 = vunpack.c.l.b16 %v73
    %v193 = vunpack.c.h.b16 %v73
    %v194 = vunpack.c.l.b16 %v74
    %v195 = vunpack.c.h.b16 %v74
    %v196 = vunpack.c.l.b16 %v75
    %v197 = vunpack.c.h.b16 %v75
    %v198 = vunpack.c.l.b16 %v76
    %v199 = vunpack.c.h.b16 %v76
    %v200 = vunpack.c.l.b16 %v77
    %v201 = vunpack.c.h.b16 %v77
    %v202 = vunpack.c.l.b16 %v78
    %v203 = vunpack.c.h.b16 %v78
    %v204 = vunpack.c.l.b16 %v79
    %v205 = vunpack.c.h.b16 %v79
    %v206 = vunpack.c.l.b16 %v80
    %v207 = vunpack.c.h.b16 %v80
    %v208 = vunpack.c.l.b16 %v81
    %v209 = vunpack.c.h.b16 %v81
    %v210 = vunpack.c.l.b16 %v82
    %v211 = vunpack.c.h.b16 %v82
    %v212 = vunpack.c.l.b16 %v83
    %v213 = vunpack.c.h.b16 %v83
    %v214 = vpack.c.b16 %v154, %v150
    %v215 = vpack.c.b16 %v155, %v151
    %v216 = vpack.c.b16 %v156, %v152
    %v217 = vpack.c.b16 %v157, %v153
    %v218 = vpack.c.b16 %v162, %v158
    %v219 = vpack.c.b16 %v163, %v159
    %v220 = vpack.c.b16 %v164, %v160
    %v221 = vpack.c.b16 %v165, %v161
    %v222 = vpack.c.b16 %v170, %v166
    %v223 = vpack.c.b16 %v171, %v167
    %v224 = vpack.c.b16 %v172, %v168
    %v225 = vpack.c.b16 %v173, %v169
    %v226 = vpack.c.b16 %v178, %v174
    %v227 = vpack.c.b16 %v179, %v175
    %v228 = vpack.c.b16 %v180, %v176
    %v229 = vpack.c.b16 %v181, %v177
    %v230 = vpack.c.b16 %v186, %v182
    %v231 = vpack.c.b16 %v187, %v183
    %v232 = vpack.c.b16 %v188, %v184
    %v233 = vpack.c.b16 %v189, %v185
    %v234 = vpack.c.b16 %v194, %v190
    %v235 = vpack.c.b16 %v195, %v191
    %v236 = vpack.c.b16 %v196, %v192
    %v237 = vpack.c.b16 %v197, %v193
    %v238 = vpack.c.b16 %v202, %v198
    %v239 = vpack.c.b16 %v203, %v199
    %v240 = vpack.c.b16 %v204, %v200
    %v241 = vpack.c.b16 %v205, %v201
    %v242 = vpack.c.b16 %v210, %v206
    %v243 = vpack.c.b16 %v211, %v207
    %v244 = vpack.c.b16 %v212, %v208
    %v245 = vpack.c.b16 %v213, %v209
    %278 = vmatprep.subr.bf16.mxu0 %v215
    %279 = vmatpush1.bf16.msra.mxu0 %v214
    %280 = vmatprep.subr.bf16.mxu0 %v219
    %281 = vmatpush1.bf16.msra.mxu0 %v218
    %282 = vmatprep.subr.bf16.mxu0 %v223
    %283 = vmatpush1.bf16.msra.mxu0 %v222
    %284 = vmatprep.subr.bf16.mxu0 %v227
    %285 = vmatpush1.bf16.msra.mxu0 %v226
    %286 = vmatprep.subr.bf16.mxu0 %v231
    %287 = vmatpush1.bf16.msra.mxu0 %v230
    %288 = vmatprep.subr.bf16.mxu0 %v235
    %289 = vmatpush1.bf16.msra.mxu0 %v234
    %290 = vmatprep.subr.bf16.mxu0 %v239
    %291 = vmatpush1.bf16.msra.mxu0 %v238
    %292 = vmatprep.subr.bf16.mxu0 %v243
    %293 = vmatpush1.bf16.msra.mxu0 %v242
    %294 = vmatprep.subr.bf16.mxu0 0
    %295 = vmatpush1.bf16.msra.mxu0 0
    %296 = vmatprep.subr.bf16.mxu0 0
    %297 = vmatpush1.bf16.msra.mxu0 0
    %298 = vmatprep.subr.bf16.mxu0 0
    %299 = vmatpush1.bf16.msra.mxu0 0
    %300 = vmatprep.subr.bf16.mxu0 0
    %301 = vmatpush1.bf16.msra.mxu0 0
    %302 = vmatprep.subr.bf16.mxu0 0
    %303 = vmatpush1.bf16.msra.mxu0 0
    %304 = vmatprep.subr.bf16.mxu0 0
    %305 = vmatpush1.bf16.msra.mxu0 0
    %306 = vmatprep.subr.bf16.mxu0 0
    %307 = vmatpush1.bf16.msra.mxu0 0
    %308 = vmatprep.subr.bf16.mxu0 0
    %309 = vmatpush1.bf16.msra.mxu0 0
    %310 = vmatprep.mubr.bf16.mxu0 0
    %311 = vmatmul.mubr.bf16.gmra.mrb[0].mxu0 %v93
    %v312 = vpop.f32.mrb[0].mxu0
    %v313 = vadd.f32 %v101, %v312
    %v314 = vpop.f32.mrb[0].mxu0
    %v315 = vadd.f32 %v105, %v314
    %v316 = vpop.f32.mrb[0].mxu0
    %v317 = vadd.f32 %v101, %v316
    %v318 = vpop.f32.mrb[0].mxu0
    %v319 = vadd.f32 %v105, %v318
    %320 = vmatprep.mubr.bf16.mxu0 0
    %321 = vmatmul.mubr.bf16.gmra.mrb[0].mxu0 %v94
    %v322 = vpop.f32.mrb[0].mxu0
    %v323 = vadd.f32 %v101, %v322
    %v324 = vpop.f32.mrb[0].mxu0
    %v325 = vadd.f32 %v105, %v324
    %v326 = vpop.f32.mrb[0].mxu0
    %v327 = vadd.f32 %v101, %v326
    %v328 = vpop.f32.mrb[0].mxu0
    %v329 = vadd.f32 %v105, %v328
    %330 = vmatprep.mubr.bf16.mxu0 0
    %331 = vmatmul.mubr.bf16.gmra.mrb[0].mxu0 %v95
    %v332 = vpop.f32.mrb[0].mxu0
    %v333 = vadd.f32 %v101, %v332
    %v334 = vpop.f32.mrb[0].mxu0
    %v335 = vadd.f32 %v105, %v334
    %v336 = vpop.f32.mrb[0].mxu0
    %v337 = vadd.f32 %v101, %v336
    %v338 = vpop.f32.mrb[0].mxu0
    %v339 = vadd.f32 %v105, %v338
    %340 = vmatprep.mubr.bf16.mxu0 0
    %341 = vmatmul.mubr.bf16.gmra.mrb[0].mxu0 %v96
    %v342 = vpop.f32.mrb[0].mxu0
    %v343 = vadd.f32 %v101, %v342
    %v344 = vpop.f32.mrb[0].mxu0
    %v345 = vadd.f32 %v105, %v344
    %v346 = vpop.f32.mrb[0].mxu0
    %v347 = vadd.f32 %v101, %v346
    %v348 = vpop.f32.mrb[0].mxu0
    %v349 = vadd.f32 %v105, %v348
    %350 = vdwg.mxu0
    %351 = vmatprep.subr.bf16.mxu0 %v217
    %352 = vmatpush1.bf16.msra.mxu0 %v216
    %353 = vmatprep.subr.bf16.mxu0 %v221
    %354 = vmatpush1.bf16.msra.mxu0 %v220
    %355 = vmatprep.subr.bf16.mxu0 %v225
    %356 = vmatpush1.bf16.msra.mxu0 %v224
    %357 = vmatprep.subr.bf16.mxu0 %v229
    %358 = vmatpush1.bf16.msra.mxu0 %v228
    %359 = vmatprep.subr.bf16.mxu0 %v233
    %360 = vmatpush1.bf16.msra.mxu0 %v232
    %361 = vmatprep.subr.bf16.mxu0 %v237
    %362 = vmatpush1.bf16.msra.mxu0 %v236
    %363 = vmatprep.subr.bf16.mxu0 %v241
    %364 = vmatpush1.bf16.msra.mxu0 %v240
    %365 = vmatprep.subr.bf16.mxu0 %v245
    %366 = vmatpush1.bf16.msra.mxu0 %v244
    %367 = vmatprep.subr.bf16.mxu0 0
    %368 = vmatpush1.bf16.msra.mxu0 0
    %369 = vmatprep.subr.bf16.mxu0 0
    %370 = vmatpush1.bf16.msra.mxu0 0
    %371 = vmatprep.subr.bf16.mxu0 0
    %372 = vmatpush1.bf16.msra.mxu0 0
    %373 = vmatprep.subr.bf16.mxu0 0
    %374 = vmatpush1.bf16.msra.mxu0 0
    %375 = vmatprep.subr.bf16.mxu0 0
    %376 = vmatpush1.bf16.msra.mxu0 0
    %377 = vmatprep.subr.bf16.mxu0 0
    %378 = vmatpush1.bf16.msra.mxu0 0
    %379 = vmatprep.subr.bf16.mxu0 0
    %380 = vmatpush1.bf16.msra.mxu0 0
    %381 = vmatprep.subr.bf16.mxu0 0
    %382 = vmatpush1.bf16.msra.mxu0 0
    %383 = vmatprep.mubr.bf16.mxu0 0
    %384 = vmatmul.mubr.bf16.gmra.mrb[0].mxu0 %v93
    %v385 = vpop.f32.mrb[0].mxu0
    %v386 = vadd.f32 %v109, %v385
    %v387 = vpop.f32.mrb[0].mxu0
    %v388 = vadd.f32 %v113, %v387
    %v389 = vpop.f32.mrb[0].mxu0
    %v390 = vadd.f32 %v109, %v389
    %v391 = vpop.f32.mrb[0].mxu0
    %v392 = vadd.f32 %v113, %v391
    %393 = vmatprep.mubr.bf16.mxu0 0
    %394 = vmatmul.mubr.bf16.gmra.mrb[0].mxu0 %v94
    %v395 = vpop.f32.mrb[0].mxu0
    %v396 = vadd.f32 %v109, %v395
    %v397 = vpop.f32.mrb[0].mxu0
    %v398 = vadd.f32 %v113, %v397
    %v399 = vpop.f32.mrb[0].mxu0
    %v400 = vadd.f32 %v109, %v399
    %v401 = vpop.f32.mrb[0].mxu0
    %v402 = vadd.f32 %v113, %v401
    %403 = vmatprep.mubr.bf16.mxu0 0
    %404 = vmatmul.mubr.bf16.gmra.mrb[0].mxu0 %v95
    %v405 = vpop.f32.mrb[0].mxu0
    %v406 = vadd.f32 %v109, %v405
    %v407 = vpop.f32.mrb[0].mxu0
    %v408 = vadd.f32 %v113, %v407
    %v409 = vpop.f32.mrb[0].mxu0
    %v410 = vadd.f32 %v109, %v409
    %v411 = vpop.f32.mrb[0].mxu0
    %v412 = vadd.f32 %v113, %v411
    %413 = vmatprep.mubr.bf16.mxu0 0
    %414 = vmatmul.mubr.bf16.gmra.mrb[0].mxu0 %v96
    %v415 = vpop.f32.mrb[0].mxu0
    %v416 = vadd.f32 %v109, %v415
    %v417 = vpop.f32.mrb[0].mxu0
    %v418 = vadd.f32 %v113, %v417
    %v419 = vpop.f32.mrb[0].mxu0
    %v420 = vadd.f32 %v109, %v419
    %v421 = vpop.f32.mrb[0].mxu0
    %v422 = vadd.f32 %v113, %v421
    %423 = vdwg.mxu0
    %424 = vst [vmem:[#allocation2] sm:$0xff] %v313
    %425 = vst [vmem:[#allocation2 + $0x8] sm:$0xff] %v315
    %426 = vst [vmem:[#allocation2 + $0x10] sm:$0xff] %v386
    %427 = vst [vmem:[#allocation2 + $0x18] sm:$0xff] %v388
    %428 = vst [vmem:[#allocation2 + $0x20] sm:$0xff] %v317
    %429 = vst [vmem:[#allocation2 + $0x28] sm:$0xff] %v319
    %430 = vst [vmem:[#allocation2 + $0x30] sm:$0xff] %v390
    %431 = vst [vmem:[#allocation2 + $0x38] sm:$0xff] %v392
    %432 = vst [vmem:[#allocation2 + $0x40] sm:$0xff] %v323
    %433 = vst [vmem:[#allocation2 + $0x48] sm:$0xff] %v325
    %434 = vst [vmem:[#allocation2 + $0x50] sm:$0xff] %v396
    %435 = vst [vmem:[#allocation2 + $0x58] sm:$0xff] %v398
    %436 = vst [vmem:[#allocation2 + $0x60] sm:$0xff] %v327
    %437 = vst [vmem:[#allocation2 + $0x68] sm:$0xff] %v329
    %438 = vst [vmem:[#allocation2 + $0x70] sm:$0xff] %v400
    %439 = vst [vmem:[#allocation2 + $0x78] sm:$0xff] %v402
    %440 = vst [vmem:[#allocation2 + $0x80] sm:$0xff] %v333
    %441 = vst [vmem:[#allocation2 + $0x88] sm:$0xff] %v335
    %442 = vst [vmem:[#allocation2 + $0x90] sm:$0xff] %v406
    %443 = vst [vmem:[#allocation2 + $0x98] sm:$0xff] %v408
    %444 = vst [vmem:[#allocation2 + $0xa0] sm:$0xff] %v337
    %445 = vst [vmem:[#allocation2 + $0xa8] sm:$0xff] %v339
    %446 = vst [vmem:[#allocation2 + $0xb0] sm:$0xff] %v410
    %447 = vst [vmem:[#allocation2 + $0xb8] sm:$0xff] %v412
    %448 = vst [vmem:[#allocation2 + $0xc0] sm:$0xff] %v343
    %449 = vst [vmem:[#allocation2 + $0xc8] sm:$0xff] %v345
    %450 = vst [vmem:[#allocation2 + $0xd0] sm:$0xff] %v416
    %451 = vst [vmem:[#allocation2 + $0xd8] sm:$0xff] %v418
    %452 = vst [vmem:[#allocation2 + $0xe0] sm:$0xff] %v347
    %453 = vst [vmem:[#allocation2 + $0xe8] sm:$0xff] %v349
    %454 = vst [vmem:[#allocation2 + $0xf0] sm:$0xff] %v420
    %455 = vst [vmem:[#allocation2 + $0xf8] sm:$0xff] %v422
    %v456 = vld [vmem:[#allocation7] sm:$0xff]
    %v457 = vld [vmem:[#allocation7 + $0x8] sm:$0xff]
    %v458 = vld [vmem:[#allocation7 + $0x10] sm:$0xff]
    %v459 = vld [vmem:[#allocation7 + $0x18] sm:$0xff]
    %v460 = vld [vmem:[#allocation7 + $0x20] sm:$0xff]
    %v461 = vld [vmem:[#allocation7 + $0x28] sm:$0xff]
    %v462 = vld [vmem:[#allocation7 + $0x30] sm:$0xff]
    %v463 = vld [vmem:[#allocation7 + $0x38] sm:$0xff]
    %v464 = vld [vmem:[#allocation7 + $0x40] sm:$0xff]
    %v465 = vld [vmem:[#allocation7 + $0x48] sm:$0xff]
    %v466 = vld [vmem:[#allocation7 + $0x50] sm:$0xff]
    %v467 = vld [vmem:[#allocation7 + $0x58] sm:$0xff]
    %v468 = vld [vmem:[#allocation7 + $0x60] sm:$0xff]
    %v469 = vld [vmem:[#allocation7 + $0x68] sm:$0xff]
    %v470 = vld [vmem:[#allocation7 + $0x70] sm:$0xff]
    %v471 = vld [vmem:[#allocation7 + $0x78] sm:$0xff]
    %v472 = vld [vmem:[#allocation7 + $0x80] sm:$0xff]
    %v473 = vld [vmem:[#allocation7 + $0x88] sm:$0xff]
    %v474 = vld [vmem:[#allocation7 + $0x90] sm:$0xff]
    %v475 = vld [vmem:[#allocation7 + $0x98] sm:$0xff]
    %v476 = vld [vmem:[#allocation7 + $0xa0] sm:$0xff]
    %v477 = vld [vmem:[#allocation7 + $0xa8] sm:$0xff]
    %v478 = vld [vmem:[#allocation7 + $0xb0] sm:$0xff]
    %v479 = vld [vmem:[#allocation7 + $0xb8] sm:$0xff]
    %v480 = vld [vmem:[#allocation7 + $0xc0] sm:$0xff]
    %v481 = vld [vmem:[#allocation7 + $0xc8] sm:$0xff]
    %v482 = vld [vmem:[#allocation7 + $0xd0] sm:$0xff]
    %v483 = vld [vmem:[#allocation7 + $0xd8] sm:$0xff]
    %v484 = vld [vmem:[#allocation7 + $0xe0] sm:$0xff]
    %v485 = vld [vmem:[#allocation7 + $0xe8] sm:$0xff]
    %v486 = vld [vmem:[#allocation7 + $0xf0] sm:$0xff]
    %v487 = vld [vmem:[#allocation7 + $0xf8] sm:$0xff]
    %v488 = vld [vmem:[#allocation3] sm:$0xff]
    %v489 = vld [vmem:[#allocation4] sm:$0xff]
    %v490 = vld [vmem:[#allocation2] sm:$0xff]
    %v491 = vld [vmem:[#allocation2 + $0x8] sm:$0xff]
    %v492 = vld [vmem:[#allocation2 + $0x10] sm:$0xff]
    %v493 = vld [vmem:[#allocation2 + $0x18] sm:$0xff]
    %v494 = vpack.c.bf16 %v488, %v488
    %v527 = vunpack.c.l.b16 %v456
    %v528 = vunpack.c.h.b16 %v456
    %v529 = vunpack.c.l.b16 %v457
    %v530 = vunpack.c.h.b16 %v457
    %v531 = vunpack.c.l.b16 %v458
    %v532 = vunpack.c.h.b16 %v458
    %v533 = vunpack.c.l.b16 %v459
    %v534 = vunpack.c.h.b16 %v459
    %v535 = vunpack.c.l.b16 %v460
    %v536 = vunpack.c.h.b16 %v460
    %v537 = vunpack.c.l.b16 %v461
    %v538 = vunpack.c.h.b16 %v461
    %v539 = vunpack.c.l.b16 %v462
    %v540 = vunpack.c.h.b16 %v462
    %v541 = vunpack.c.l.b16 %v463
    %v542 = vunpack.c.h.b16 %v463
    %v543 = vunpack.c.l.b16 %v464
    %v544 = vunpack.c.h.b16 %v464
    %v545 = vunpack.c.l.b16 %v465
    %v546 = vunpack.c.h.b16 %v465
    %v547 = vunpack.c.l.b16 %v466
    %v548 = vunpack.c.h.b16 %v466
    %v549 = vunpack.c.l.b16 %v467
    %v550 = vunpack.c.h.b16 %v467
    %v551 = vunpack.c.l.b16 %v468
    %v552 = vunpack.c.h.b16 %v468
    %v553 = vunpack.c.l.b16 %v469
    %v554 = vunpack.c.h.b16 %v469
    %v555 = vunpack.c.l.b16 %v470
    %v556 = vunpack.c.h.b16 %v470
    %v557 = vunpack.c.l.b16 %v471
    %v558 = vunpack.c.h.b16 %v471
    %v559 = vunpack.c.l.b16 %v472
    %v560 = vunpack.c.h.b16 %v472
    %v561 = vunpack.c.l.b16 %v473
    %v562 = vunpack.c.h.b16 %v473
    %v563 = vunpack.c.l.b16 %v474
    %v564 = vunpack.c.h.b16 %v474
    %v565 = vunpack.c.l.b16 %v475
    %v566 = vunpack.c.h.b16 %v475
    %v567 = vunpack.c.l.b16 %v476
    %v568 = vunpack.c.h.b16 %v476
    %v569 = vunpack.c.l.b16 %v477
    %v570 = vunpack.c.h.b16 %v477
    %v571 = vunpack.c.l.b16 %v478
    %v572 = vunpack.c.h.b16 %v478
    %v573 = vunpack.c.l.b16 %v479
    %v574 = vunpack.c.h.b16 %v479
    %v575 = vunpack.c.l.b16 %v480
    %v576 = vunpack.c.h.b16 %v480
    %v577 = vunpack.c.l.b16 %v481
    %v578 = vunpack.c.h.b16 %v481
    %v579 = vunpack.c.l.b16 %v482
    %v580 = vunpack.c.h.b16 %v482
    %v581 = vunpack.c.l.b16 %v483
    %v582 = vunpack.c.h.b16 %v483
    %v583 = vunpack.c.l.b16 %v484
    %v584 = vunpack.c.h.b16 %v484
    %v585 = vunpack.c.l.b16 %v485
    %v586 = vunpack.c.h.b16 %v485
    %v587 = vunpack.c.l.b16 %v486
    %v588 = vunpack.c.h.b16 %v486
    %v589 = vunpack.c.l.b16 %v487
    %v590 = vunpack.c.h.b16 %v487
    %v591 = vpack.c.b16 %v531, %v527
    %v592 = vpack.c.b16 %v532, %v528
    %v593 = vpack.c.b16 %v533, %v529
    %v594 = vpack.c.b16 %v534, %v530
    %v595 = vpack.c.b16 %v539, %v535
    %v596 = vpack.c.b16 %v540, %v536
    %v597 = vpack.c.b16 %v541, %v537
    %v598 = vpack.c.b16 %v542, %v538
    %v599 = vpack.c.b16 %v547, %v543
    %v600 = vpack.c.b16 %v548, %v544
    %v601 = vpack.c.b16 %v549, %v545
    %v602 = vpack.c.b16 %v550, %v546
    %v603 = vpack.c.b16 %v555, %v551
    %v604 = vpack.c.b16 %v556, %v552
    %v605 = vpack.c.b16 %v557, %v553
    %v606 = vpack.c.b16 %v558, %v554
    %v607 = vpack.c.b16 %v563, %v559
    %v608 = vpack.c.b16 %v564, %v560
    %v609 = vpack.c.b16 %v565, %v561
    %v610 = vpack.c.b16 %v566, %v562
    %v611 = vpack.c.b16 %v571, %v567
    %v612 = vpack.c.b16 %v572, %v568
    %v613 = vpack.c.b16 %v573, %v569
    %v614 = vpack.c.b16 %v574, %v570
    %v615 = vpack.c.b16 %v579, %v575
    %v616 = vpack.c.b16 %v580, %v576
    %v617 = vpack.c.b16 %v581, %v577
    %v618 = vpack.c.b16 %v582, %v578
    %v619 = vpack.c.b16 %v587, %v583
    %v620 = vpack.c.b16 %v588, %v584
    %v621 = vpack.c.b16 %v589, %v585
    %v622 = vpack.c.b16 %v590, %v586
    %655 = vmatprep.subr.bf16.mxu0 %v592
    %656 = vmatpush1.bf16.msra.mxu0 %v591
    %657 = vmatprep.subr.bf16.mxu0 %v596
    %658 = vmatpush1.bf16.msra.mxu0 %v595
    %659 = vmatprep.subr.bf16.mxu0 %v600
    %660 = vmatpush1.bf16.msra.mxu0 %v599
    %661 = vmatprep.subr.bf16.mxu0 %v604
    %662 = vmatpush1.bf16.msra.mxu0 %v603
    %663 = vmatprep.subr.bf16.mxu0 %v608
    %664 = vmatpush1.bf16.msra.mxu0 %v607
    %665 = vmatprep.subr.bf16.mxu0 %v612
    %666 = vmatpush1.bf16.msra.mxu0 %v611
    %667 = vmatprep.subr.bf16.mxu0 %v616
    %668 = vmatpush1.bf16.msra.mxu0 %v615
    %669 = vmatprep.subr.bf16.mxu0 %v620
    %670 = vmatpush1.bf16.msra.mxu0 %v619
    %671 = vmatprep.subr.bf16.mxu0 0
    %672 = vmatpush1.bf16.msra.mxu0 0
    %673 = vmatprep.subr.bf16.mxu0 0
    %674 = vmatpush1.bf16.msra.mxu0 0
    %675 = vmatprep.subr.bf16.mxu0 0
    %676 = vmatpush1.bf16.msra.mxu0 0
    %677 = vmatprep.subr.bf16.mxu0 0
    %678 = vmatpush1.bf16.msra.mxu0 0
    %679 = vmatprep.subr.bf16.mxu0 0
    %680 = vmatpush1.bf16.msra.mxu0 0
    %681 = vmatprep.subr.bf16.mxu0 0
    %682 = vmatpush1.bf16.msra.mxu0 0
    %683 = vmatprep.subr.bf16.mxu0 0
    %684 = vmatpush1.bf16.msra.mxu0 0
    %685 = vmatprep.subr.bf16.mxu0 0
    %686 = vmatpush1.bf16.msra.mxu0 0
    %687 = vmatprep.mubr.bf16.mxu0 0
    %688 = vmatmul.mubr.bf16.gmra.mrb[0].mxu0 %v494
    %v689 = vpop.f32.mrb[0].mxu0
    %v690 = vadd.f32 0.0, %v689
    %v691 = vpop.f32.mrb[0].mxu0
    %v692 = vadd.f32 0.0, %v691
    %v693 = vpop.f32.mrb[0].mxu0
    %v694 = vpop.f32.mrb[0].mxu0
    %695 = vdwg.mxu0
    %696 = vmatprep.subr.bf16.mxu0 %v594
    %697 = vmatpush1.bf16.msra.mxu0 %v593
    %698 = vmatprep.subr.bf16.mxu0 %v598
    %699 = vmatpush1.bf16.msra.mxu0 %v597
    %700 = vmatprep.subr.bf16.mxu0 %v602
    %701 = vmatpush1.bf16.msra.mxu0 %v601
    %702 = vmatprep.subr.bf16.mxu0 %v606
    %703 = vmatpush1.bf16.msra.mxu0 %v605
    %704 = vmatprep.subr.bf16.mxu0 %v610
    %705 = vmatpush1.bf16.msra.mxu0 %v609
    %706 = vmatprep.subr.bf16.mxu0 %v614
    %707 = vmatpush1.bf16.msra.mxu0 %v613
    %708 = vmatprep.subr.bf16.mxu0 %v618
    %709 = vmatpush1.bf16.msra.mxu0 %v617
    %710 = vmatprep.subr.bf16.mxu0 %v622
    %711 = vmatpush1.bf16.msra.mxu0 %v621
    %712 = vmatprep.subr.bf16.mxu0 0
    %713 = vmatpush1.bf16.msra.mxu0 0
    %714 = vmatprep.subr.bf16.mxu0 0
    %715 = vmatpush1.bf16.msra.mxu0 0
    %716 = vmatprep.subr.bf16.mxu0 0
    %717 = vmatpush1.bf16.msra.mxu0 0
    %718 = vmatprep.subr.bf16.mxu0 0
    %719 = vmatpush1.bf16.msra.mxu0 0
    %720 = vmatprep.subr.bf16.mxu0 0
    %721 = vmatpush1.bf16.msra.mxu0 0
    %722 = vmatprep.subr.bf16.mxu0 0
    %723 = vmatpush1.bf16.msra.mxu0 0
    %724 = vmatprep.subr.bf16.mxu0 0
    %725 = vmatpush1.bf16.msra.mxu0 0
    %726 = vmatprep.subr.bf16.mxu0 0
    %727 = vmatpush1.bf16.msra.mxu0 0
    %728 = vmatprep.mubr.bf16.mxu0 0
    %729 = vmatmul.mubr.bf16.gmra.mrb[0].mxu0 %v494
    %v730 = vpop.f32.mrb[0].mxu0
    %v731 = vadd.f32 0.0, %v730
    %v732 = vpop.f32.mrb[0].mxu0
    %v733 = vadd.f32 0.0, %v732
    %v734 = vpop.f32.mrb[0].mxu0
    %v735 = vpop.f32.mrb[0].mxu0
    %736 = vdwg.mxu0
    %v737 = vadd.f32 %v490, %v690
    %v738 = vadd.f32 %v491, %v692
    %v739 = vadd.f32 %v492, %v731
    %v740 = vadd.f32 %v493, %v733
    %v741 = vxor.u32 %v737, 2147483648
    %v742 = vxor.u32 %v738, 2147483648
    %v743 = vxor.u32 %v739, 2147483648
    %v744 = vmul.f32 %v741, 1.442695
    %v745 = vpow.pop %v744
    %v746 = vmul.f32 %v742, 1.442695
    %v747 = vpow.pop %v746
    %v748 = vmul.f32 %v743, 1.442695
    %v749 = vpow.pop %v748
    %v750 = vadd.f32 %v745, 1.0
    %v751 = vadd.f32 %v747, 1.0
    %v752 = vadd.f32 %v749, 1.0
    %v753 = vrcp.pop %v750
    %v754 = vmul.f32 1.0, %v753
    %v755 = vrcp.pop %v751
    %v756 = vmul.f32 1.0, %v755
    %v757 = vrcp.pop %v752
    %v758 = vmul.f32 1.0, %v757
    %v759 = vtanh.pop %v740
    %v760 = vmul.f32 %v756, %v489
    %v761 = vmul.f32 %v754, %v759
    %v762 = vadd.f32 %v760, %v761
    %v763 = vtanh.pop %v762
    %v764 = vmul.f32 %v758, %v763
    %765 = vst [vmem:[#allocation4] sm:$0xff] %v762
    %766 = vst [vmem:[#allocation3] sm:$0xff] %v764
    %767 = vst [vmem:[%s4] sm:$0xff] %v764
    %v768 = vld [vmem:[#allocation3] sm:$0xff]
    %v769 = vld [vmem:[#allocation4] sm:$0xff]
    %s770 = scalar_lea.vmem [#allocation2], 32
    %v771 = vld [vmem:[%s770] sm:$0xff]
    %v772 = vld [vmem:[%s770 + $0x8] sm:$0xff]
    %v773 = vld [vmem:[%s770 + $0x10] sm:$0xff]
    %v774 = vld [vmem:[%s770 + $0x18] sm:$0xff]
    %v775 = vpack.c.bf16 %v768, %v768
    %776 = vmatprep.subr.bf16.mxu0 %v592
    %777 = vmatpush1.bf16.msra.mxu0 %v591
    %778 = vmatprep.subr.bf16.mxu0 %v596
    %779 = vmatpush1.bf16.msra.mxu0 %v595
    %780 = vmatprep.subr.bf16.mxu0 %v600
    %781 = vmatpush1.bf16.msra.mxu0 %v599
    %782 = vmatprep.subr.bf16.mxu0 %v604
    %783 = vmatpush1.bf16.msra.mxu0 %v603
    %784 = vmatprep.subr.bf16.mxu0 %v608
    %785 = vmatpush1.bf16.msra.mxu0 %v607
    %786 = vmatprep.subr.bf16.mxu0 %v612
    %787 = vmatpush1.bf16.msra.mxu0 %v611
    %788 = vmatprep.subr.bf16.mxu0 %v616
    %789 = vmatpush1.bf16.msra.mxu0 %v615
    %790 = vmatprep.subr.bf16.mxu0 %v620
    %791 = vmatpush1.bf16.msra.mxu0 %v619
    %792 = vmatprep.subr.bf16.mxu0 0
    %793 = vmatpush1.bf16.msra.mxu0 0
    %794 = vmatprep.subr.bf16.mxu0 0
    %795 = vmatpush1.bf16.msra.mxu0 0
    %796 = vmatprep.subr.bf16.mxu0 0
    %797 = vmatpush1.bf16.msra.mxu0 0
    %798 = vmatprep.subr.bf16.mxu0 0
    %799 = vmatpush1.bf16.msra.mxu0 0
    %800 = vmatprep.subr.bf16.mxu0 0
    %801 = vmatpush1.bf16.msra.mxu0 0
    %802 = vmatprep.subr.bf16.mxu0 0
    %803 = vmatpush1.bf16.msra.mxu0 0
    %804 = vmatprep.subr.bf16.mxu0 0
    %805 = vmatpush1.bf16.msra.mxu0 0
    %806 = vmatprep.subr.bf16.mxu0 0
    %807 = vmatpush1.bf16.msra.mxu0 0
    %808 = vmatprep.mubr.bf16.mxu0 0
    %809 = vmatmul.mubr.bf16.gmra.mrb[0].mxu0 %v775
    %v810 = vpop.f32.mrb[0].mxu0
    %v811 = vadd.f32 0.0, %v810
    %v812 = vpop.f32.mrb[0].mxu0
    %v813 = vadd.f32 0.0, %v812
    %v814 = vpop.f32.mrb[0].mxu0
    %v815 = vpop.f32.mrb[0].mxu0
    %816 = vdwg.mxu0
    %817 = vmatprep.subr.bf16.mxu0 %v594
    %818 = vmatpush1.bf16.msra.mxu0 %v593
    %819 = vmatprep.subr.bf16.mxu0 %v598
    %820 = vmatpush1.bf16.msra.mxu0 %v597
    %821 = vmatprep.subr.bf16.mxu0 %v602
    %822 = vmatpush1.bf16.msra.mxu0 %v601
    %823 = vmatprep.subr.bf16.mxu0 %v606
    %824 = vmatpush1.bf16.msra.mxu0 %v605
    %825 = vmatprep.subr.bf16.mxu0 %v610
    %826 = vmatpush1.bf16.msra.mxu0 %v609
    %827 = vmatprep.subr.bf16.mxu0 %v614
    %828 = vmatpush1.bf16.msra.mxu0 %v613
    %829 = vmatprep.subr.bf16.mxu0 %v618
    %830 = vmatpush1.bf16.msra.mxu0 %v617
    %831 = vmatprep.subr.bf16.mxu0 %v622
    %832 = vmatpush1.bf16.msra.mxu0 %v621
    %833 = vmatprep.subr.bf16.mxu0 0
    %834 = vmatpush1.bf16.msra.mxu0 0
    %835 = vmatprep.subr.bf16.mxu0 0
    %836 = vmatpush1.bf16.msra.mxu0 0
    %837 = vmatprep.subr.bf16.mxu0 0
    %838 = vmatpush1.bf16.msra.mxu0 0
    %839 = vmatprep.subr.bf16.mxu0 0
    %840 = vmatpush1.bf16.msra.mxu0 0
    %841 = vmatprep.subr.bf16.mxu0 0
    %842 = vmatpush1.bf16.msra.mxu0 0
    %843 = vmatprep.subr.bf16.mxu0 0
    %844 = vmatpush1.bf16.msra.mxu0 0
    %845 = vmatprep.subr.bf16.mxu0 0
    %846 = vmatpush1.bf16.msra.mxu0 0
    %847 = vmatprep.subr.bf16.mxu0 0
    %848 = vmatpush1.bf16.msra.mxu0 0
    %849 = vmatprep.mubr.bf16.mxu0 0
    %850 = vmatmul.mubr.bf16.gmra.mrb[0].mxu0 %v775
    %v851 = vpop.f32.mrb[0].mxu0
    %v852 = vadd.f32 0.0, %v851
    %v853 = vpop.f32.mrb[0].mxu0
    %v854 = vadd.f32 0.0, %v853
    %v855 = vpop.f32.mrb[0].mxu0
    %v856 = vpop.f32.mrb[0].mxu0
    %857 = vdwg.mxu0
    %v858 = vadd.f32 %v771, %v811
    %v859 = vadd.f32 %v772, %v813
    %v860 = vadd.f32 %v773, %v852
    %v861 = vadd.f32 %v774, %v854
    %v862 = vxor.u32 %v858, 2147483648
    %v863 = vxor.u32 %v859, 2147483648
    %v864 = vxor.u32 %v860, 2147483648
    %v865 = vmul.f32 %v862, 1.442695
    %v866 = vpow.pop %v865
    %v867 = vmul.f32 %v863, 1.442695
    %v868 = vpow.pop %v867
    %v869 = vmul.f32 %v864, 1.442695
    %v870 = vpow.pop %v869
    %v871 = vadd.f32 %v866, 1.0
    %v872 = vadd.f32 %v868, 1.0
    %v873 = vadd.f32 %v870, 1.0
    %v874 = vrcp.pop %v871
    %v875 = vmul.f32 1.0, %v874
    %v876 = vrcp.pop %v872
    %v877 = vmul.f32 1.0, %v876
    %v878 = vrcp.pop %v873
    %v879 = vmul.f32 1.0, %v878
    %v880 = vtanh.pop %v861
    %v881 = vmul.f32 %v877, %v769
    %v882 = vmul.f32 %v875, %v880
    %v883 = vadd.f32 %v881, %v882
    %v884 = vtanh.pop %v883
    %v885 = vmul.f32 %v879, %v884
    %886 = vst [vmem:[#allocation4] sm:$0xff] %v883
    %887 = vst [vmem:[#allocation3] sm:$0xff] %v885
    %s888 = scalar_lea.vmem %s4, 8
    %889 = vst [vmem:[%s888] sm:$0xff] %v885
    %v890 = vld [vmem:[#allocation3] sm:$0xff]
    %v891 = vld [vmem:[#allocation4] sm:$0xff]
    %s892 = scalar_lea.vmem [#allocation2], 64
    %v893 = vld [vmem:[%s892] sm:$0xff]
    %v894 = vld [vmem:[%s892 + $0x8] sm:$0xff]
    %v895 = vld [vmem:[%s892 + $0x10] sm:$0xff]
    %v896 = vld [vmem:[%s892 + $0x18] sm:$0xff]
    %v897 = vpack.c.bf16 %v890, %v890
    %898 = vmatprep.subr.bf16.mxu0 %v592
    %899 = vmatpush1.bf16.msra.mxu0 %v591
    %900 = vmatprep.subr.bf16.mxu0 %v596
    %901 = vmatpush1.bf16.msra.mxu0 %v595
    %902 = vmatprep.subr.bf16.mxu0 %v600
    %903 = vmatpush1.bf16.msra.mxu0 %v599
    %904 = vmatprep.subr.bf16.mxu0 %v604
    %905 = vmatpush1.bf16.msra.mxu0 %v603
    %906 = vmatprep.subr.bf16.mxu0 %v608
    %907 = vmatpush1.bf16.msra.mxu0 %v607
    %908 = vmatprep.subr.bf16.mxu0 %v612
    %909 = vmatpush1.bf16.msra.mxu0 %v611
    %910 = vmatprep.subr.bf16.mxu0 %v616
    %911 = vmatpush1.bf16.msra.mxu0 %v615
    %912 = vmatprep.subr.bf16.mxu0 %v620
    %913 = vmatpush1.bf16.msra.mxu0 %v619
    %914 = vmatprep.subr.bf16.mxu0 0
    %915 = vmatpush1.bf16.msra.mxu0 0
    %916 = vmatprep.subr.bf16.mxu0 0
    %917 = vmatpush1.bf16.msra.mxu0 0
    %918 = vmatprep.subr.bf16.mxu0 0
    %919 = vmatpush1.bf16.msra.mxu0 0
    %920 = vmatprep.subr.bf16.mxu0 0
    %921 = vmatpush1.bf16.msra.mxu0 0
    %922 = vmatprep.subr.bf16.mxu0 0
    %923 = vmatpush1.bf16.msra.mxu0 0
    %924 = vmatprep.subr.bf16.mxu0 0
    %925 = vmatpush1.bf16.msra.mxu0 0
    %926 = vmatprep.subr.bf16.mxu0 0
    %927 = vmatpush1.bf16.msra.mxu0 0
    %928 = vmatprep.subr.bf16.mxu0 0
    %929 = vmatpush1.bf16.msra.mxu0 0
    %930 = vmatprep.mubr.bf16.mxu0 0
    %931 = vmatmul.mubr.bf16.gmra.mrb[0].mxu0 %v897
    %v932 = vpop.f32.mrb[0].mxu0
    %v933 = vadd.f32 0.0, %v932
    %v934 = vpop.f32.mrb[0].mxu0
    %v935 = vadd.f32 0.0, %v934
    %v936 = vpop.f32.mrb[0].mxu0
    %v937 = vpop.f32.mrb[0].mxu0
    %938 = vdwg.mxu0
    %939 = vmatprep.subr.bf16.mxu0 %v594
    %940 = vmatpush1.bf16.msra.mxu0 %v593
    %941 = vmatprep.subr.bf16.mxu0 %v598
    %942 = vmatpush1.bf16.msra.mxu0 %v597
    %943 = vmatprep.subr.bf16.mxu0 %v602
    %944 = vmatpush1.bf16.msra.mxu0 %v601
    %945 = vmatprep.subr.bf16.mxu0 %v606
    %946 = vmatpush1.bf16.msra.mxu0 %v605
    %947 = vmatprep.subr.bf16.mxu0 %v610
    %948 = vmatpush1.bf16.msra.mxu0 %v609
    %949 = vmatprep.subr.bf16.mxu0 %v614
    %950 = vmatpush1.bf16.msra.mxu0 %v613
    %951 = vmatprep.subr.bf16.mxu0 %v618
    %952 = vmatpush1.bf16.msra.mxu0 %v617
    %953 = vmatprep.subr.bf16.mxu0 %v622
    %954 = vmatpush1.bf16.msra.mxu0 %v621
    %955 = vmatprep.subr.bf16.mxu0 0
    %956 = vmatpush1.bf16.msra.mxu0 0
    %957 = vmatprep.subr.bf16.mxu0 0
    %958 = vmatpush1.bf16.msra.mxu0 0
    %959 = vmatprep.subr.bf16.mxu0 0
    %960 = vmatpush1.bf16.msra.mxu0 0
    %961 = vmatprep.subr.bf16.mxu0 0
    %962 = vmatpush1.bf16.msra.mxu0 0
    %963 = vmatprep.subr.bf16.mxu0 0
    %964 = vmatpush1.bf16.msra.mxu0 0
    %965 = vmatprep.subr.bf16.mxu0 0
    %966 = vmatpush1.bf16.msra.mxu0 0
    %967 = vmatprep.subr.bf16.mxu0 0
    %968 = vmatpush1.bf16.msra.mxu0 0
    %969 = vmatprep.subr.bf16.mxu0 0
    %970 = vmatpush1.bf16.msra.mxu0 0
    %971 = vmatprep.mubr.bf16.mxu0 0
    %972 = vmatmul.mubr.bf16.gmra.mrb[0].mxu0 %v897
    %v973 = vpop.f32.mrb[0].mxu0
    %v974 = vadd.f32 0.0, %v973
    %v975 = vpop.f32.mrb[0].mxu0
    %v976 = vadd.f32 0.0, %v975
    %v977 = vpop.f32.mrb[0].mxu0
    %v978 = vpop.f32.mrb[0].mxu0
    %979 = vdwg.mxu0
    %v980 = vadd.f32 %v893, %v933
    %v981 = vadd.f32 %v894, %v935
    %v982 = vadd.f32 %v895, %v974
    %v983 = vadd.f32 %v896, %v976
    %v984 = vxor.u32 %v980, 2147483648
    %v985 = vxor.u32 %v981, 2147483648
    %v986 = vxor.u32 %v982, 2147483648
    %v987 = vmul.f32 %v984, 1.442695
    %v988 = vpow.pop %v987
    %v989 = vmul.f32 %v985, 1.442695
    %v990 = vpow.pop %v989
    %v991 = vmul.f32 %v986, 1.442695
    %v992 = vpow.pop %v991
    %v993 = vadd.f32 %v988, 1.0
    %v994 = vadd.f32 %v990, 1.0
    %v995 = vadd.f32 %v992, 1.0
    %v996 = vrcp.pop %v993
    %v997 = vmul.f32 1.0, %v996
    %v998 = vrcp.pop %v994
    %v999 = vmul.f32 1.0, %v998
    %v1000 = vrcp.pop %v995
    %v1001 = vmul.f32 1.0, %v1000
    %v1002 = vtanh.pop %v983
    %v1003 = vmul.f32 %v999, %v891
    %v1004 = vmul.f32 %v997, %v1002
    %v1005 = vadd.f32 %v1003, %v1004
    %v1006 = vtanh.pop %v1005
    %v1007 = vmul.f32 %v1001, %v1006
    %1008 = vst [vmem:[#allocation4] sm:$0xff] %v1005
    %1009 = vst [vmem:[#allocation3] sm:$0xff] %v1007
    %s1010 = scalar_lea.vmem %s4, 16
    %1011 = vst [vmem:[%s1010] sm:$0xff] %v1007
    %v1012 = vld [vmem:[#allocation3] sm:$0xff]
    %v1013 = vld [vmem:[#allocation4] sm:$0xff]
    %s1014 = scalar_lea.vmem [#allocation2], 96
    %v1015 = vld [vmem:[%s1014] sm:$0xff]
    %v1016 = vld [vmem:[%s1014 + $0x8] sm:$0xff]
    %v1017 = vld [vmem:[%s1014 + $0x10] sm:$0xff]
    %v1018 = vld [vmem:[%s1014 + $0x18] sm:$0xff]
    %v1019 = vpack.c.bf16 %v1012, %v1012
    %1020 = vmatprep.subr.bf16.mxu0 %v592
    %1021 = vmatpush1.bf16.msra.mxu0 %v591
    %1022 = vmatprep.subr.bf16.mxu0 %v596
    %1023 = vmatpush1.bf16.msra.mxu0 %v595
    %1024 = vmatprep.subr.bf16.mxu0 %v600
    %1025 = vmatpush1.bf16.msra.mxu0 %v599
    %1026 = vmatprep.subr.bf16.mxu0 %v604
    %1027 = vmatpush1.bf16.msra.mxu0 %v603
    %1028 = vmatprep.subr.bf16.mxu0 %v608
    %1029 = vmatpush1.bf16.msra.mxu0 %v607
    %1030 = vmatprep.subr.bf16.mxu0 %v612
    %1031 = vmatpush1.bf16.msra.mxu0 %v611
    %1032 = vmatprep.subr.bf16.mxu0 %v616
    %1033 = vmatpush1.bf16.msra.mxu0 %v615
    %1034 = vmatprep.subr.bf16.mxu0 %v620
    %1035 = vmatpush1.bf16.msra.mxu0 %v619
    %1036 = vmatprep.subr.bf16.mxu0 0
    %1037 = vmatpush1.bf16.msra.mxu0 0
    %1038 = vmatprep.subr.bf16.mxu0 0
    %1039 = vmatpush1.bf16.msra.mxu0 0
    %1040 = vmatprep.subr.bf16.mxu0 0
    %1041 = vmatpush1.bf16.msra.mxu0 0
    %1042 = vmatprep.subr.bf16.mxu0 0
    %1043 = vmatpush1.bf16.msra.mxu0 0
    %1044 = vmatprep.subr.bf16.mxu0 0
    %1045 = vmatpush1.bf16.msra.mxu0 0
    %1046 = vmatprep.subr.bf16.mxu0 0
    %1047 = vmatpush1.bf16.msra.mxu0 0
    %1048 = vmatprep.subr.bf16.mxu0 0
    %1049 = vmatpush1.bf16.msra.mxu0 0
    %1050 = vmatprep.subr.bf16.mxu0 0
    %1051 = vmatpush1.bf16.msra.mxu0 0
    %1052 = vmatprep.mubr.bf16.mxu0 0
    %1053 = vmatmul.mubr.bf16.gmra.mrb[0].mxu0 %v1019
    %v1054 = vpop.f32.mrb[0].mxu0
    %v1055 = vadd.f32 0.0, %v1054
    %v1056 = vpop.f32.mrb[0].mxu0
    %v1057 = vadd.f32 0.0, %v1056
    %v1058 = vpop.f32.mrb[0].mxu0
    %v1059 = vpop.f32.mrb[0].mxu0
    %1060 = vdwg.mxu0
    %1061 = vmatprep.subr.bf16.mxu0 %v594
    %1062 = vmatpush1.bf16.msra.mxu0 %v593
    %1063 = vmatprep.subr.bf16.mxu0 %v598
    %1064 = vmatpush1.bf16.msra.mxu0 %v597
    %1065 = vmatprep.subr.bf16.mxu0 %v602
    %1066 = vmatpush1.bf16.msra.mxu0 %v601
    %1067 = vmatprep.subr.bf16.mxu0 %v606
    %1068 = vmatpush1.bf16.msra.mxu0 %v605
    %1069 = vmatprep.subr.bf16.mxu0 %v610
    %1070 = vmatpush1.bf16.msra.mxu0 %v609
    %1071 = vmatprep.subr.bf16.mxu0 %v614
    %1072 = vmatpush1.bf16.msra.mxu0 %v613
    %1073 = vmatprep.subr.bf16.mxu0 %v618
    %1074 = vmatpush1.bf16.msra.mxu0 %v617
    %1075 = vmatprep.subr.bf16.mxu0 %v622
    %1076 = vmatpush1.bf16.msra.mxu0 %v621
    %1077 = vmatprep.subr.bf16.mxu0 0
    %1078 = vmatpush1.bf16.msra.mxu0 0
    %1079 = vmatprep.subr.bf16.mxu0 0
    %1080 = vmatpush1.bf16.msra.mxu0 0
    %1081 = vmatprep.subr.bf16.mxu0 0
    %1082 = vmatpush1.bf16.msra.mxu0 0
    %1083 = vmatprep.subr.bf16.mxu0 0
    %1084 = vmatpush1.bf16.msra.mxu0 0
    %1085 = vmatprep.subr.bf16.mxu0 0
    %1086 = vmatpush1.bf16.msra.mxu0 0
    %1087 = vmatprep.subr.bf16.mxu0 0
    %1088 = vmatpush1.bf16.msra.mxu0 0
    %1089 = vmatprep.subr.bf16.mxu0 0
    %1090 = vmatpush1.bf16.msra.mxu0 0
    %1091 = vmatprep.subr.bf16.mxu0 0
    %1092 = vmatpush1.bf16.msra.mxu0 0
    %1093 = vmatprep.mubr.bf16.mxu0 0
    %1094 = vmatmul.mubr.bf16.gmra.mrb[0].mxu0 %v1019
    %v1095 = vpop.f32.mrb[0].mxu0
    %v1096 = vadd.f32 0.0, %v1095
    %v1097 = vpop.f32.mrb[0].mxu0
    %v1098 = vadd.f32 0.0, %v1097
    %v1099 = vpop.f32.mrb[0].mxu0
    %v1100 = vpop.f32.mrb[0].mxu0
    %1101 = vdwg.mxu0
    %v1102 = vadd.f32 %v1015, %v1055
    %v1103 = vadd.f32 %v1016, %v1057
    %v1104 = vadd.f32 %v1017, %v1096
    %v1105 = vadd.f32 %v1018, %v1098
    %v1106 = vxor.u32 %v1102, 2147483648
    %v1107 = vxor.u32 %v1103, 2147483648
    %v1108 = vxor.u32 %v1104, 2147483648
    %v1109 = vmul.f32 %v1106, 1.442695
    %v1110 = vpow.pop %v1109
    %v1111 = vmul.f32 %v1107, 1.442695
    %v1112 = vpow.pop %v1111
    %v1113 = vmul.f32 %v1108, 1.442695
    %v1114 = vpow.pop %v1113
    %v1115 = vadd.f32 %v1110, 1.0
    %v1116 = vadd.f32 %v1112, 1.0
    %v1117 = vadd.f32 %v1114, 1.0
    %v1118 = vrcp.pop %v1115
    %v1119 = vmul.f32 1.0, %v1118
    %v1120 = vrcp.pop %v1116
    %v1121 = vmul.f32 1.0, %v1120
    %v1122 = vrcp.pop %v1117
    %v1123 = vmul.f32 1.0, %v1122
    %v1124 = vtanh.pop %v1105
    %v1125 = vmul.f32 %v1121, %v1013
    %v1126 = vmul.f32 %v1119, %v1124
    %v1127 = vadd.f32 %v1125, %v1126
    %v1128 = vtanh.pop %v1127
    %v1129 = vmul.f32 %v1123, %v1128
    %1130 = vst [vmem:[#allocation4] sm:$0xff] %v1127
    %1131 = vst [vmem:[#allocation3] sm:$0xff] %v1129
    %s1132 = scalar_lea.vmem %s4, 24
    %1133 = vst [vmem:[%s1132] sm:$0xff] %v1129
    %v1134 = vld [vmem:[#allocation3] sm:$0xff]
    %v1135 = vld [vmem:[#allocation4] sm:$0xff]
    %s1136 = scalar_lea.vmem [#allocation2], 128
    %v1137 = vld [vmem:[%s1136] sm:$0xff]
    %v1138 = vld [vmem:[%s1136 + $0x8] sm:$0xff]
    %v1139 = vld [vmem:[%s1136 + $0x10] sm:$0xff]
    %v1140 = vld [vmem:[%s1136 + $0x18] sm:$0xff]
    %v1141 = vpack.c.bf16 %v1134, %v1134
    %1142 = vmatprep.subr.bf16.mxu0 %v592
    %1143 = vmatpush1.bf16.msra.mxu0 %v591
    %1144 = vmatprep.subr.bf16.mxu0 %v596
    %1145 = vmatpush1.bf16.msra.mxu0 %v595
    %1146 = vmatprep.subr.bf16.mxu0 %v600
    %1147 = vmatpush1.bf16.msra.mxu0 %v599
    %1148 = vmatprep.subr.bf16.mxu0 %v604
    %1149 = vmatpush1.bf16.msra.mxu0 %v603
    %1150 = vmatprep.subr.bf16.mxu0 %v608
    %1151 = vmatpush1.bf16.msra.mxu0 %v607
    %1152 = vmatprep.subr.bf16.mxu0 %v612
    %1153 = vmatpush1.bf16.msra.mxu0 %v611
    %1154 = vmatprep.subr.bf16.mxu0 %v616
    %1155 = vmatpush1.bf16.msra.mxu0 %v615
    %1156 = vmatprep.subr.bf16.mxu0 %v620
    %1157 = vmatpush1.bf16.msra.mxu0 %v619
    %1158 = vmatprep.subr.bf16.mxu0 0
    %1159 = vmatpush1.bf16.msra.mxu0 0
    %1160 = vmatprep.subr.bf16.mxu0 0
    %1161 = vmatpush1.bf16.msra.mxu0 0
    %1162 = vmatprep.subr.bf16.mxu0 0
    %1163 = vmatpush1.bf16.msra.mxu0 0
    %1164 = vmatprep.subr.bf16.mxu0 0
    %1165 = vmatpush1.bf16.msra.mxu0 0
    %1166 = vmatprep.subr.bf16.mxu0 0
    %1167 = vmatpush1.bf16.msra.mxu0 0
    %1168 = vmatprep.subr.bf16.mxu0 0
    %1169 = vmatpush1.bf16.msra.mxu0 0
    %1170 = vmatprep.subr.bf16.mxu0 0
    %1171 = vmatpush1.bf16.msra.mxu0 0
    %1172 = vmatprep.subr.bf16.mxu0 0
    %1173 = vmatpush1.bf16.msra.mxu0 0
    %1174 = vmatprep.mubr.bf16.mxu0 0
    %1175 = vmatmul.mubr.bf16.gmra.mrb[0].mxu0 %v1141
    %v1176 = vpop.f32.mrb[0].mxu0
    %v1177 = vadd.f32 0.0, %v1176
    %v1178 = vpop.f32.mrb[0].mxu0
    %v1179 = vadd.f32 0.0, %v1178
    %v1180 = vpop.f32.mrb[0].mxu0
    %v1181 = vpop.f32.mrb[0].mxu0
    %1182 = vdwg.mxu0
    %1183 = vmatprep.subr.bf16.mxu0 %v594
    %1184 = vmatpush1.bf16.msra.mxu0 %v593
    %1185 = vmatprep.subr.bf16.mxu0 %v598
    %1186 = vmatpush1.bf16.msra.mxu0 %v597
    %1187 = vmatprep.subr.bf16.mxu0 %v602
    %1188 = vmatpush1.bf16.msra.mxu0 %v601
    %1189 = vmatprep.subr.bf16.mxu0 %v606
    %1190 = vmatpush1.bf16.msra.mxu0 %v605
    %1191 = vmatprep.subr.bf16.mxu0 %v610
    %1192 = vmatpush1.bf16.msra.mxu0 %v609
    %1193 = vmatprep.subr.bf16.mxu0 %v614
    %1194 = vmatpush1.bf16.msra.mxu0 %v613
    %1195 = vmatprep.subr.bf16.mxu0 %v618
    %1196 = vmatpush1.bf16.msra.mxu0 %v617
    %1197 = vmatprep.subr.bf16.mxu0 %v622
    %1198 = vmatpush1.bf16.msra.mxu0 %v621
    %1199 = vmatprep.subr.bf16.mxu0 0
    %1200 = vmatpush1.bf16.msra.mxu0 0
    %1201 = vmatprep.subr.bf16.mxu0 0
    %1202 = vmatpush1.bf16.msra.mxu0 0
    %1203 = vmatprep.subr.bf16.mxu0 0
    %1204 = vmatpush1.bf16.msra.mxu0 0
    %1205 = vmatprep.subr.bf16.mxu0 0
    %1206 = vmatpush1.bf16.msra.mxu0 0
    %1207 = vmatprep.subr.bf16.mxu0 0
    %1208 = vmatpush1.bf16.msra.mxu0 0
    %1209 = vmatprep.subr.bf16.mxu0 0
    %1210 = vmatpush1.bf16.msra.mxu0 0
    %1211 = vmatprep.subr.bf16.mxu0 0
    %1212 = vmatpush1.bf16.msra.mxu0 0
    %1213 = vmatprep.subr.bf16.mxu0 0
    %1214 = vmatpush1.bf16.msra.mxu0 0
    %1215 = vmatprep.mubr.bf16.mxu0 0
    %1216 = vmatmul.mubr.bf16.gmra.mrb[0].mxu0 %v1141
    %v1217 = vpop.f32.mrb[0].mxu0
    %v1218 = vadd.f32 0.0, %v1217
    %v1219 = vpop.f32.mrb[0].mxu0
    %v1220 = vadd.f32 0.0, %v1219
    %v1221 = vpop.f32.mrb[0].mxu0
    %v1222 = vpop.f32.mrb[0].mxu0
    %1223 = vdwg.mxu0
    %v1224 = vadd.f32 %v1137, %v1177
    %v1225 = vadd.f32 %v1138, %v1179
    %v1226 = vadd.f32 %v1139, %v1218
    %v1227 = vadd.f32 %v1140, %v1220
    %v1228 = vxor.u32 %v1224, 2147483648
    %v1229 = vxor.u32 %v1225, 2147483648
    %v1230 = vxor.u32 %v1226, 2147483648
    %v1231 = vmul.f32 %v1228, 1.442695
    %v1232 = vpow.pop %v1231
    %v1233 = vmul.f32 %v1229, 1.442695
    %v1234 = vpow.pop %v1233
    %v1235 = vmul.f32 %v1230, 1.442695
    %v1236 = vpow.pop %v1235
    %v1237 = vadd.f32 %v1232, 1.0
    %v1238 = vadd.f32 %v1234, 1.0
    %v1239 = vadd.f32 %v1236, 1.0
    %v1240 = vrcp.pop %v1237
    %v1241 = vmul.f32 1.0, %v1240
    %v1242 = vrcp.pop %v1238
    %v1243 = vmul.f32 1.0, %v1242
    %v1244 = vrcp.pop %v1239
    %v1245 = vmul.f32 1.0, %v1244
    %v1246 = vtanh.pop %v1227
    %v1247 = vmul.f32 %v1243, %v1135
    %v1248 = vmul.f32 %v1241, %v1246
    %v1249 = vadd.f32 %v1247, %v1248
    %v1250 = vtanh.pop %v1249
    %v1251 = vmul.f32 %v1245, %v1250
    %1252 = vst [vmem:[#allocation4] sm:$0xff] %v1249
    %1253 = vst [vmem:[#allocation3] sm:$0xff] %v1251
    %s1254 = scalar_lea.vmem %s4, 32
    %1255 = vst [vmem:[%s1254] sm:$0xff] %v1251
    %v1256 = vld [vmem:[#allocation3] sm:$0xff]
    %v1257 = vld [vmem:[#allocation4] sm:$0xff]
    %s1258 = scalar_lea.vmem [#allocation2], 160
    %v1259 = vld [vmem:[%s1258] sm:$0xff]
    %v1260 = vld [vmem:[%s1258 + $0x8] sm:$0xff]
    %v1261 = vld [vmem:[%s1258 + $0x10] sm:$0xff]
    %v1262 = vld [vmem:[%s1258 + $0x18] sm:$0xff]
    %v1263 = vpack.c.bf16 %v1256, %v1256
    %1264 = vmatprep.subr.bf16.mxu0 %v592
    %1265 = vmatpush1.bf16.msra.mxu0 %v591
    %1266 = vmatprep.subr.bf16.mxu0 %v596
    %1267 = vmatpush1.bf16.msra.mxu0 %v595
    %1268 = vmatprep.subr.bf16.mxu0 %v600
    %1269 = vmatpush1.bf16.msra.mxu0 %v599
    %1270 = vmatprep.subr.bf16.mxu0 %v604
    %1271 = vmatpush1.bf16.msra.mxu0 %v603
    %1272 = vmatprep.subr.bf16.mxu0 %v608
    %1273 = vmatpush1.bf16.msra.mxu0 %v607
    %1274 = vmatprep.subr.bf16.mxu0 %v612
    %1275 = vmatpush1.bf16.msra.mxu0 %v611
    %1276 = vmatprep.subr.bf16.mxu0 %v616
    %1277 = vmatpush1.bf16.msra.mxu0 %v615
    %1278 = vmatprep.subr.bf16.mxu0 %v620
    %1279 = vmatpush1.bf16.msra.mxu0 %v619
    %1280 = vmatprep.subr.bf16.mxu0 0
    %1281 = vmatpush1.bf16.msra.mxu0 0
    %1282 = vmatprep.subr.bf16.mxu0 0
    %1283 = vmatpush1.bf16.msra.mxu0 0
    %1284 = vmatprep.subr.bf16.mxu0 0
    %1285 = vmatpush1.bf16.msra.mxu0 0
    %1286 = vmatprep.subr.bf16.mxu0 0
    %1287 = vmatpush1.bf16.msra.mxu0 0
    %1288 = vmatprep.subr.bf16.mxu0 0
    %1289 = vmatpush1.bf16.msra.mxu0 0
    %1290 = vmatprep.subr.bf16.mxu0 0
    %1291 = vmatpush1.bf16.msra.mxu0 0
    %1292 = vmatprep.subr.bf16.mxu0 0
    %1293 = vmatpush1.bf16.msra.mxu0 0
    %1294 = vmatprep.subr.bf16.mxu0 0
    %1295 = vmatpush1.bf16.msra.mxu0 0
    %1296 = vmatprep.mubr.bf16.mxu0 0
    %1297 = vmatmul.mubr.bf16.gmra.mrb[0].mxu0 %v1263
    %v1298 = vpop.f32.mrb[0].mxu0
    %v1299 = vadd.f32 0.0, %v1298
    %v1300 = vpop.f32.mrb[0].mxu0
    %v1301 = vadd.f32 0.0, %v1300
    %v1302 = vpop.f32.mrb[0].mxu0
    %v1303 = vpop.f32.mrb[0].mxu0
    %1304 = vdwg.mxu0
    %1305 = vmatprep.subr.bf16.mxu0 %v594
    %1306 = vmatpush1.bf16.msra.mxu0 %v593
    %1307 = vmatprep.subr.bf16.mxu0 %v598
    %1308 = vmatpush1.bf16.msra.mxu0 %v597
    %1309 = vmatprep.subr.bf16.mxu0 %v602
    %1310 = vmatpush1.bf16.msra.mxu0 %v601
    %1311 = vmatprep.subr.bf16.mxu0 %v606
    %1312 = vmatpush1.bf16.msra.mxu0 %v605
    %1313 = vmatprep.subr.bf16.mxu0 %v610
    %1314 = vmatpush1.bf16.msra.mxu0 %v609
    %1315 = vmatprep.subr.bf16.mxu0 %v614
    %1316 = vmatpush1.bf16.msra.mxu0 %v613
    %1317 = vmatprep.subr.bf16.mxu0 %v618
    %1318 = vmatpush1.bf16.msra.mxu0 %v617
    %1319 = vmatprep.subr.bf16.mxu0 %v622
    %1320 = vmatpush1.bf16.msra.mxu0 %v621
    %1321 = vmatprep.subr.bf16.mxu0 0
    %1322 = vmatpush1.bf16.msra.mxu0 0
    %1323 = vmatprep.subr.bf16.mxu0 0
    %1324 = vmatpush1.bf16.msra.mxu0 0
    %1325 = vmatprep.subr.bf16.mxu0 0
    %1326 = vmatpush1.bf16.msra.mxu0 0
    %1327 = vmatprep.subr.bf16.mxu0 0
    %1328 = vmatpush1.bf16.msra.mxu0 0
    %1329 = vmatprep.subr.bf16.mxu0 0
    %1330 = vmatpush1.bf16.msra.mxu0 0
    %1331 = vmatprep.subr.bf16.mxu0 0
    %1332 = vmatpush1.bf16.msra.mxu0 0
    %1333 = vmatprep.subr.bf16.mxu0 0
    %1334 = vmatpush1.bf16.msra.mxu0 0
    %1335 = vmatprep.subr.bf16.mxu0 0
    %1336 = vmatpush1.bf16.msra.mxu0 0
    %1337 = vmatprep.mubr.bf16.mxu0 0
    %1338 = vmatmul.mubr.bf16.gmra.mrb[0].mxu0 %v1263
    %v1339 = vpop.f32.mrb[0].mxu0
    %v1340 = vadd.f32 0.0, %v1339
    %v1341 = vpop.f32.mrb[0].mxu0
    %v1342 = vadd.f32 0.0, %v1341
    %v1343 = vpop.f32.mrb[0].mxu0
    %v1344 = vpop.f32.mrb[0].mxu0
    %1345 = vdwg.mxu0
    %v1346 = vadd.f32 %v1259, %v1299
    %v1347 = vadd.f32 %v1260, %v1301
    %v1348 = vadd.f32 %v1261, %v1340
    %v1349 = vadd.f32 %v1262, %v1342
    %v1350 = vxor.u32 %v1346, 2147483648
    %v1351 = vxor.u32 %v1347, 2147483648
    %v1352 = vxor.u32 %v1348, 2147483648
    %v1353 = vmul.f32 %v1350, 1.442695
    %v1354 = vpow.pop %v1353
    %v1355 = vmul.f32 %v1351, 1.442695
    %v1356 = vpow.pop %v1355
    %v1357 = vmul.f32 %v1352, 1.442695
    %v1358 = vpow.pop %v1357
    %v1359 = vadd.f32 %v1354, 1.0
    %v1360 = vadd.f32 %v1356, 1.0
    %v1361 = vadd.f32 %v1358, 1.0
    %v1362 = vrcp.pop %v1359
    %v1363 = vmul.f32 1.0, %v1362
    %v1364 = vrcp.pop %v1360
    %v1365 = vmul.f32 1.0, %v1364
    %v1366 = vrcp.pop %v1361
    %v1367 = vmul.f32 1.0, %v1366
    %v1368 = vtanh.pop %v1349
    %v1369 = vmul.f32 %v1365, %v1257
    %v1370 = vmul.f32 %v1363, %v1368
    %v1371 = vadd.f32 %v1369, %v1370
    %v1372 = vtanh.pop %v1371
    %v1373 = vmul.f32 %v1367, %v1372
    %1374 = vst [vmem:[#allocation4] sm:$0xff] %v1371
    %1375 = vst [vmem:[#allocation3] sm:$0xff] %v1373
    %s1376 = scalar_lea.vmem %s4, 40
    %1377 = vst [vmem:[%s1376] sm:$0xff] %v1373
    %v1378 = vld [vmem:[#allocation3] sm:$0xff]
    %v1379 = vld [vmem:[#allocation4] sm:$0xff]
    %s1380 = scalar_lea.vmem [#allocation2], 192
    %v1381 = vld [vmem:[%s1380] sm:$0xff]
    %v1382 = vld [vmem:[%s1380 + $0x8] sm:$0xff]
    %v1383 = vld [vmem:[%s1380 + $0x10] sm:$0xff]
    %v1384 = vld [vmem:[%s1380 + $0x18] sm:$0xff]
    %v1385 = vpack.c.bf16 %v1378, %v1378
    %1386 = vmatprep.subr.bf16.mxu0 %v592
    %1387 = vmatpush1.bf16.msra.mxu0 %v591
    %1388 = vmatprep.subr.bf16.mxu0 %v596
    %1389 = vmatpush1.bf16.msra.mxu0 %v595
    %1390 = vmatprep.subr.bf16.mxu0 %v600
    %1391 = vmatpush1.bf16.msra.mxu0 %v599
    %1392 = vmatprep.subr.bf16.mxu0 %v604
    %1393 = vmatpush1.bf16.msra.mxu0 %v603
    %1394 = vmatprep.subr.bf16.mxu0 %v608
    %1395 = vmatpush1.bf16.msra.mxu0 %v607
    %1396 = vmatprep.subr.bf16.mxu0 %v612
    %1397 = vmatpush1.bf16.msra.mxu0 %v611
    %1398 = vmatprep.subr.bf16.mxu0 %v616
    %1399 = vmatpush1.bf16.msra.mxu0 %v615
    %1400 = vmatprep.subr.bf16.mxu0 %v620
    %1401 = vmatpush1.bf16.msra.mxu0 %v619
    %1402 = vmatprep.subr.bf16.mxu0 0
    %1403 = vmatpush1.bf16.msra.mxu0 0
    %1404 = vmatprep.subr.bf16.mxu0 0
    %1405 = vmatpush1.bf16.msra.mxu0 0
    %1406 = vmatprep.subr.bf16.mxu0 0
    %1407 = vmatpush1.bf16.msra.mxu0 0
    %1408 = vmatprep.subr.bf16.mxu0 0
    %1409 = vmatpush1.bf16.msra.mxu0 0
    %1410 = vmatprep.subr.bf16.mxu0 0
    %1411 = vmatpush1.bf16.msra.mxu0 0
    %1412 = vmatprep.subr.bf16.mxu0 0
    %1413 = vmatpush1.bf16.msra.mxu0 0
    %1414 = vmatprep.subr.bf16.mxu0 0
    %1415 = vmatpush1.bf16.msra.mxu0 0
    %1416 = vmatprep.subr.bf16.mxu0 0
    %1417 = vmatpush1.bf16.msra.mxu0 0
    %1418 = vmatprep.mubr.bf16.mxu0 0
    %1419 = vmatmul.mubr.bf16.gmra.mrb[0].mxu0 %v1385
    %v1420 = vpop.f32.mrb[0].mxu0
    %v1421 = vadd.f32 0.0, %v1420
    %v1422 = vpop.f32.mrb[0].mxu0
    %v1423 = vadd.f32 0.0, %v1422
    %v1424 = vpop.f32.mrb[0].mxu0
    %v1425 = vpop.f32.mrb[0].mxu0
    %1426 = vdwg.mxu0
    %1427 = vmatprep.subr.bf16.mxu0 %v594
    %1428 = vmatpush1.bf16.msra.mxu0 %v593
    %1429 = vmatprep.subr.bf16.mxu0 %v598
    %1430 = vmatpush1.bf16.msra.mxu0 %v597
    %1431 = vmatprep.subr.bf16.mxu0 %v602
    %1432 = vmatpush1.bf16.msra.mxu0 %v601
    %1433 = vmatprep.subr.bf16.mxu0 %v606
    %1434 = vmatpush1.bf16.msra.mxu0 %v605
    %1435 = vmatprep.subr.bf16.mxu0 %v610
    %1436 = vmatpush1.bf16.msra.mxu0 %v609
    %1437 = vmatprep.subr.bf16.mxu0 %v614
    %1438 = vmatpush1.bf16.msra.mxu0 %v613
    %1439 = vmatprep.subr.bf16.mxu0 %v618
    %1440 = vmatpush1.bf16.msra.mxu0 %v617
    %1441 = vmatprep.subr.bf16.mxu0 %v622
    %1442 = vmatpush1.bf16.msra.mxu0 %v621
    %1443 = vmatprep.subr.bf16.mxu0 0
    %1444 = vmatpush1.bf16.msra.mxu0 0
    %1445 = vmatprep.subr.bf16.mxu0 0
    %1446 = vmatpush1.bf16.msra.mxu0 0
    %1447 = vmatprep.subr.bf16.mxu0 0
    %1448 = vmatpush1.bf16.msra.mxu0 0
    %1449 = vmatprep.subr.bf16.mxu0 0
    %1450 = vmatpush1.bf16.msra.mxu0 0
    %1451 = vmatprep.subr.bf16.mxu0 0
    %1452 = vmatpush1.bf16.msra.mxu0 0
    %1453 = vmatprep.subr.bf16.mxu0 0
    %1454 = vmatpush1.bf16.msra.mxu0 0
    %1455 = vmatprep.subr.bf16.mxu0 0
    %1456 = vmatpush1.bf16.msra.mxu0 0
    %1457 = vmatprep.subr.bf16.mxu0 0
    %1458 = vmatpush1.bf16.msra.mxu0 0
    %1459 = vmatprep.mubr.bf16.mxu0 0
    %1460 = vmatmul.mubr.bf16.gmra.mrb[0].mxu0 %v1385
    %v1461 = vpop.f32.mrb[0].mxu0
    %v1462 = vadd.f32 0.0, %v1461
    %v1463 = vpop.f32.mrb[0].mxu0
    %v1464 = vadd.f32 0.0, %v1463
    %v1465 = vpop.f32.mrb[0].mxu0
    %v1466 = vpop.f32.mrb[0].mxu0
    %1467 = vdwg.mxu0
    %v1468 = vadd.f32 %v1381, %v1421
    %v1469 = vadd.f32 %v1382, %v1423
    %v1470 = vadd.f32 %v1383, %v1462
    %v1471 = vadd.f32 %v1384, %v1464
    %v1472 = vxor.u32 %v1468, 2147483648
    %v1473 = vxor.u32 %v1469, 2147483648
    %v1474 = vxor.u32 %v1470, 2147483648
    %v1475 = vmul.f32 %v1472, 1.442695
    %v1476 = vpow.pop %v1475
    %v1477 = vmul.f32 %v1473, 1.442695
    %v1478 = vpow.pop %v1477
    %v1479 = vmul.f32 %v1474, 1.442695
    %v1480 = vpow.pop %v1479
    %v1481 = vadd.f32 %v1476, 1.0
    %v1482 = vadd.f32 %v1478, 1.0
    %v1483 = vadd.f32 %v1480, 1.0
    %v1484 = vrcp.pop %v1481
    %v1485 = vmul.f32 1.0, %v1484
    %v1486 = vrcp.pop %v1482
    %v1487 = vmul.f32 1.0, %v1486
    %v1488 = vrcp.pop %v1483
    %v1489 = vmul.f32 1.0, %v1488
    %v1490 = vtanh.pop %v1471
    %v1491 = vmul.f32 %v1487, %v1379
    %v1492 = vmul.f32 %v1485, %v1490
    %v1493 = vadd.f32 %v1491, %v1492
    %v1494 = vtanh.pop %v1493
    %v1495 = vmul.f32 %v1489, %v1494
    %1496 = vst [vmem:[#allocation4] sm:$0xff] %v1493
    %1497 = vst [vmem:[#allocation3] sm:$0xff] %v1495
    %s1498 = scalar_lea.vmem %s4, 48
    %1499 = vst [vmem:[%s1498] sm:$0xff] %v1495
    %v1500 = vld [vmem:[#allocation3] sm:$0xff]
    %v1501 = vld [vmem:[#allocation4] sm:$0xff]
    %s1502 = scalar_lea.vmem [#allocation2], 224
    %v1503 = vld [vmem:[%s1502] sm:$0xff]
    %v1504 = vld [vmem:[%s1502 + $0x8] sm:$0xff]
    %v1505 = vld [vmem:[%s1502 + $0x10] sm:$0xff]
    %v1506 = vld [vmem:[%s1502 + $0x18] sm:$0xff]
    %v1507 = vpack.c.bf16 %v1500, %v1500
    %1508 = vmatprep.subr.bf16.mxu0 %v592
    %1509 = vmatpush1.bf16.msra.mxu0 %v591
    %1510 = vmatprep.subr.bf16.mxu0 %v596
    %1511 = vmatpush1.bf16.msra.mxu0 %v595
    %1512 = vmatprep.subr.bf16.mxu0 %v600
    %1513 = vmatpush1.bf16.msra.mxu0 %v599
    %1514 = vmatprep.subr.bf16.mxu0 %v604
    %1515 = vmatpush1.bf16.msra.mxu0 %v603
    %1516 = vmatprep.subr.bf16.mxu0 %v608
    %1517 = vmatpush1.bf16.msra.mxu0 %v607
    %1518 = vmatprep.subr.bf16.mxu0 %v612
    %1519 = vmatpush1.bf16.msra.mxu0 %v611
    %1520 = vmatprep.subr.bf16.mxu0 %v616
    %1521 = vmatpush1.bf16.msra.mxu0 %v615
    %1522 = vmatprep.subr.bf16.mxu0 %v620
    %1523 = vmatpush1.bf16.msra.mxu0 %v619
    %1524 = vmatprep.subr.bf16.mxu0 0
    %1525 = vmatpush1.bf16.msra.mxu0 0
    %1526 = vmatprep.subr.bf16.mxu0 0
    %1527 = vmatpush1.bf16.msra.mxu0 0
    %1528 = vmatprep.subr.bf16.mxu0 0
    %1529 = vmatpush1.bf16.msra.mxu0 0
    %1530 = vmatprep.subr.bf16.mxu0 0
    %1531 = vmatpush1.bf16.msra.mxu0 0
    %1532 = vmatprep.subr.bf16.mxu0 0
    %1533 = vmatpush1.bf16.msra.mxu0 0
    %1534 = vmatprep.subr.bf16.mxu0 0
    %1535 = vmatpush1.bf16.msra.mxu0 0
    %1536 = vmatprep.subr.bf16.mxu0 0
    %1537 = vmatpush1.bf16.msra.mxu0 0
    %1538 = vmatprep.subr.bf16.mxu0 0
    %1539 = vmatpush1.bf16.msra.mxu0 0
    %1540 = vmatprep.mubr.bf16.mxu0 0
    %1541 = vmatmul.mubr.bf16.gmra.mrb[0].mxu0 %v1507
    %v1542 = vpop.f32.mrb[0].mxu0
    %v1543 = vadd.f32 0.0, %v1542
    %v1544 = vpop.f32.mrb[0].mxu0
    %v1545 = vadd.f32 0.0, %v1544
    %v1546 = vpop.f32.mrb[0].mxu0
    %v1547 = vpop.f32.mrb[0].mxu0
    %1548 = vdwg.mxu0
    %1549 = vmatprep.subr.bf16.mxu0 %v594
    %1550 = vmatpush1.bf16.msra.mxu0 %v593
    %1551 = vmatprep.subr.bf16.mxu0 %v598
    %1552 = vmatpush1.bf16.msra.mxu0 %v597
    %1553 = vmatprep.subr.bf16.mxu0 %v602
    %1554 = vmatpush1.bf16.msra.mxu0 %v601
    %1555 = vmatprep.subr.bf16.mxu0 %v606
    %1556 = vmatpush1.bf16.msra.mxu0 %v605
    %1557 = vmatprep.subr.bf16.mxu0 %v610
    %1558 = vmatpush1.bf16.msra.mxu0 %v609
    %1559 = vmatprep.subr.bf16.mxu0 %v614
    %1560 = vmatpush1.bf16.msra.mxu0 %v613
    %1561 = vmatprep.subr.bf16.mxu0 %v618
    %1562 = vmatpush1.bf16.msra.mxu0 %v617
    %1563 = vmatprep.subr.bf16.mxu0 %v622
    %1564 = vmatpush1.bf16.msra.mxu0 %v621
    %1565 = vmatprep.subr.bf16.mxu0 0
    %1566 = vmatpush1.bf16.msra.mxu0 0
    %1567 = vmatprep.subr.bf16.mxu0 0
    %1568 = vmatpush1.bf16.msra.mxu0 0
    %1569 = vmatprep.subr.bf16.mxu0 0
    %1570 = vmatpush1.bf16.msra.mxu0 0
    %1571 = vmatprep.subr.bf16.mxu0 0
    %1572 = vmatpush1.bf16.msra.mxu0 0
    %1573 = vmatprep.subr.bf16.mxu0 0
    %1574 = vmatpush1.bf16.msra.mxu0 0
    %1575 = vmatprep.subr.bf16.mxu0 0
    %1576 = vmatpush1.bf16.msra.mxu0 0
    %1577 = vmatprep.subr.bf16.mxu0 0
    %1578 = vmatpush1.bf16.msra.mxu0 0
    %1579 = vmatprep.subr.bf16.mxu0 0
    %1580 = vmatpush1.bf16.msra.mxu0 0
    %1581 = vmatprep.mubr.bf16.mxu0 0
    %1582 = vmatmul.mubr.bf16.gmra.mrb[0].mxu0 %v1507
    %v1583 = vpop.f32.mrb[0].mxu0
    %v1584 = vadd.f32 0.0, %v1583
    %v1585 = vpop.f32.mrb[0].mxu0
    %v1586 = vadd.f32 0.0, %v1585
    %v1587 = vpop.f32.mrb[0].mxu0
    %v1588 = vpop.f32.mrb[0].mxu0
    %1589 = vdwg.mxu0
    %v1590 = vadd.f32 %v1503, %v1543
    %v1591 = vadd.f32 %v1504, %v1545
    %v1592 = vadd.f32 %v1505, %v1584
    %v1593 = vadd.f32 %v1506, %v1586
    %v1594 = vxor.u32 %v1590, 2147483648
    %v1595 = vxor.u32 %v1591, 2147483648
    %v1596 = vxor.u32 %v1592, 2147483648
    %v1597 = vmul.f32 %v1594, 1.442695
    %v1598 = vpow.pop %v1597
    %v1599 = vmul.f32 %v1595, 1.442695
    %v1600 = vpow.pop %v1599
    %v1601 = vmul.f32 %v1596, 1.442695
    %v1602 = vpow.pop %v1601
    %v1603 = vadd.f32 %v1598, 1.0
    %v1604 = vadd.f32 %v1600, 1.0
    %v1605 = vadd.f32 %v1602, 1.0
    %v1606 = vrcp.pop %v1603
    %v1607 = vmul.f32 1.0, %v1606
    %v1608 = vrcp.pop %v1604
    %v1609 = vmul.f32 1.0, %v1608
    %v1610 = vrcp.pop %v1605
    %v1611 = vmul.f32 1.0, %v1610
    %v1612 = vtanh.pop %v1593
    %v1613 = vmul.f32 %v1609, %v1501
    %v1614 = vmul.f32 %v1607, %v1612
    %v1615 = vadd.f32 %v1613, %v1614
    %v1616 = vtanh.pop %v1615
    %v1617 = vmul.f32 %v1611, %v1616
    %1618 = vst [vmem:[#allocation4] sm:$0xff] %v1615
    %1619 = vst [vmem:[#allocation3] sm:$0xff] %v1617
    %s1620 = scalar_lea.vmem %s4, 56
    %1621 = vst [vmem:[%s1620] sm:$0xff] %v1617
    // Predicated region
    $region30: #{lrnn_forward.2} parent=1 // pred_check
      _
    $region31: #{lrnn_forward.2} parent=1 // pred_check_branch
      %1623 = sbr.rel (0) target = $region33
    $region32: #{lrnn_forward.2} parent=1 // pred_region
      _
    $region33: #{lrnn_forward.2} parent=1 // pred_fallthru
      _
    // Predicated region
    $region34: #{lrnn_forward.2} parent=1 // pred_check
      _
    $region35: #{lrnn_forward.2} parent=1 // pred_check_branch
      %1625 = sbr.rel (0) target = $region37
    $region36: #{lrnn_forward.2} parent=1 // pred_region
      _
    $region37: #{lrnn_forward.2} parent=1 // pred_fallthru
      _
    %1626 = vsyncpa [#allocation6], 1
    %1627 = vsyncpa [#allocation8], 1

</llo_original>
